<compile_context>
chip_gen: v5e
topology: v5e:2x2
jax: 0.10.0
libtpu: 0.0.40
codegen_flags: <defaults>
</compile_context>

<pallas_src>
import math

import jax
import jax.numpy as jnp
from jax.experimental import pallas as pl
from jax.experimental.pallas import tpu as pltpu


def _vmem_limit(est_bytes):
    # Explicit scoped-VMEM budget (default is only 16 MiB on v5e); clamp to a
    # range that is safe on every generation (v7x physical VMEM is 64 MiB).
    return int(min(64 * 1024 * 1024, max(32 * 1024 * 1024, 2 * est_bytes + (4 << 20))))


def _pick_chunk(T, max_chunk=64):
    if T <= max_chunk:
        return T
    for c in range(max_chunk, 0, -1):
        if T % c == 0:
            return c
    return 1


# ----------------------------------------------------- fused multi-layer LSTM
def lstm_stack(x_tbe, w_ih, w_hh, b, h0, c0, *, chunk=None):
    """Fused nlayers-deep LSTM.

    x_tbe: (T, B, E) f32 time-major.  w_ih, w_hh: (L, H, 4H) bf16.
    b: (L, 1, 4H) f32 (b_ih + b_hh).  h0, c0: (L, B, H) f32.
    Returns y (T, B, H) bf16 (last layer), h_T, c_T (L, B, H) f32.
    """
    T, B, E = x_tbe.shape
    L, H, H4 = w_hh.shape
    # TODO(synk): embed_size != hidden_size would need a separate layer-0 W_ih;
    # the tied-weight configuration of the module implies E == H.
    assert H4 == 4 * H and E == H, "stacked weights require embed_size == hidden_size"
    if chunk is None:
        chunk = _pick_chunk(T)
    assert T % chunk == 0
    n_chunks = T // chunk

    def kernel(x_ref, wih_ref, whh_ref, b_ref, h0_ref, c0_ref,
               y_ref, hT_ref, cT_ref, h_sc, c_sc, act_sc, gx_sc):
        @pl.when(pl.program_id(0) == 0)
        def _():
            h_sc[...] = h0_ref[...]
            c_sc[...] = c0_ref[...]

        for l in range(L):
            # -- hoisted input projection + bias: one big MXU matmul per chunk
            if l == 0:
                xin = x_ref[...].reshape(chunk * B, E)
            else:
                xin = act_sc[...].reshape(chunk * B, H)
            gx = (jnp.dot(xin.astype(jnp.bfloat16), wih_ref[l],
                          preferred_element_type=jnp.float32)
                  + b_ref[l])                              # bias added once per chunk
            gx_sc[...] = gx.reshape(chunk, B, 4 * H)

            whh_l = whh_ref[l]                             # loop-invariant weight
            # Last layer writes straight into the pipelined output block; no
            # extra (chunk, B, H) VMEM slab copy afterwards.
            dst = y_ref if l == L - 1 else act_sc

            # -- serial recurrence over the timesteps of this chunk
            @pl.loop(0, chunk)
            def _(t):
                h_prev = h_sc[l]
                c_prev = c_sc[l]
                gates = gx_sc[t] + jnp.dot(h_prev.astype(jnp.bfloat16), whh_l,
                                           preferred_element_type=jnp.float32)
                i_g = jax.nn.sigmoid(gates[:, 0:H])        # PyTorch gate order i,f,g,o
                f_g = jax.nn.sigmoid(gates[:, H:2 * H])
                g_g = jnp.tanh(gates[:, 2 * H:3 * H])
                o_g = jax.nn.sigmoid(gates[:, 3 * H:4 * H])
                c_new = f_g * c_prev + i_g * g_g
                h_new = o_g * jnp.tanh(c_new)
                c_sc[l] = c_new
                h_sc[l] = h_new
                dst[t] = h_new.astype(dst.dtype)           # feeds next layer / output

        @pl.when(pl.program_id(0) == pl.num_programs(0) - 1)
        def _():                                           # finalize once
            hT_ref[...] = h_sc[...]
            cT_ref[...] = c_sc[...]

    est_bytes = (2 * chunk * B * (E * 4 + H * 2)                   # pipelined x & y
                 + w_ih.nbytes + w_hh.nbytes + b.nbytes            # resident weights
                 + 4 * L * B * H * 4                               # h0/c0 + hT/cT
                 + (2 * L * B * H + chunk * B * H + chunk * B * 4 * H) * 4)  # scratch

    return pl.pallas_call(
        kernel,
        out_shape=(jax.ShapeDtypeStruct((T, B, H), jnp.bfloat16),
                   jax.ShapeDtypeStruct((L, B, H), jnp.float32),
                   jax.ShapeDtypeStruct((L, B, H), jnp.float32)),
        grid_spec=pltpu.PrefetchScalarGridSpec(
            num_scalar_prefetch=0,
            grid=(n_chunks,),
            in_specs=[
                pl.BlockSpec((chunk, B, E), lambda c: (c, 0, 0)),   # x chunk
                pl.BlockSpec((L, H, 4 * H), lambda c: (0, 0, 0)),   # W_ih (resident)
                pl.BlockSpec((L, H, 4 * H), lambda c: (0, 0, 0)),   # W_hh (resident)
                pl.BlockSpec((L, 1, 4 * H), lambda c: (0, 0, 0)),   # bias   (resident)
                pl.BlockSpec((L, B, H), lambda c: (0, 0, 0)),       # h0
                pl.BlockSpec((L, B, H), lambda c: (0, 0, 0)),       # c0
            ],
            out_specs=(
                pl.BlockSpec((chunk, B, H), lambda c: (c, 0, 0)),   # y chunk
                pl.BlockSpec((L, B, H), lambda c: (0, 0, 0)),       # h_T (resident)
                pl.BlockSpec((L, B, H), lambda c: (0, 0, 0)),       # c_T (resident)
            ),
            scratch_shapes=[
                pltpu.VMEM((L, B, H), jnp.float32),          # h state (carried)
                pltpu.VMEM((L, B, H), jnp.float32),          # c state (carried)
                pltpu.VMEM((chunk, B, H), jnp.float32),      # layer activations
                pltpu.VMEM((chunk, B, 4 * H), jnp.float32),  # hoisted input gates
            ]),
        compiler_params=pltpu.CompilerParams(
            dimension_semantics=("arbitrary",),              # serial recurrence over T
            vmem_limit_bytes=_vmem_limit(est_bytes)),
    )(x_tbe, w_ih, w_hh, b, h0, c0)


# ------------------------------------------------ decoder + log_softmax (tiled)
def decode_logsoftmax(x_flat, w_dec, b_dec, *, tile_n=256):
    """x_flat: (N, H), w_dec: (H, V) bf16, b_dec: (1, V) f32 -> (N, V) f32."""
    N, H = x_flat.shape
    V = w_dec.shape[1]
    tile_n = min(tile_n, max(8, N))
    n_pad = (-N) % tile_n
    if n_pad:
        x_flat = jnp.pad(x_flat, ((0, n_pad), (0, 0)))
    Np = N + n_pad

    def kernel(x_ref, w_ref, b_ref, o_ref):
        logits = (jnp.dot(x_ref[...].astype(jnp.bfloat16), w_ref[...],
                          preferred_element_type=jnp.float32)
                  + b_ref[...])
        m = jnp.max(logits, axis=-1, keepdims=True)
        z = logits - m
        lse = jnp.log(jnp.sum(jnp.exp(z), axis=-1, keepdims=True))
        o_ref[...] = z - lse

    # TODO(synk): for very large vocabularies (H*V bf16 approaching VMEM, e.g.
    # v7x 64 MiB) the decoder weight must additionally be V-tiled with an
    # online log-sum-exp; not needed at these shapes.
    est_bytes = 2 * (tile_n * H * 4 + tile_n * V * 4) + w_dec.nbytes + b_dec.nbytes
    out = pl.pallas_call(
        kernel,
        out_shape=jax.ShapeDtypeStruct((Np, V), jnp.float32),
        grid_spec=pltpu.PrefetchScalarGridSpec(
            num_scalar_prefetch=0,
            grid=(Np // tile_n,),
            in_specs=[pl.BlockSpec((tile_n, H), lambda i: (i, 0)),   # row tile
                      pl.BlockSpec((H, V), lambda i: (0, 0)),        # resident weight
                      pl.BlockSpec((1, V), lambda i: (0, 0))],       # resident bias
            out_specs=pl.BlockSpec((tile_n, V), lambda i: (i, 0))),
        compiler_params=pltpu.CompilerParams(
            dimension_semantics=("parallel",),   # rows shard across v7x's 2 TCs
            vmem_limit_bytes=_vmem_limit(est_bytes)),
    )(x_flat, w_dec, b_dec)
    return out[:N] if n_pad else out


# ----------------------------------------------------------- model forward
def rnn_model_forward(params, x_tokens, hidden, *, lstm_chunk=None):
    """Mirrors RNNModel.forward (LSTM, batch_first=True), eval-mode dropout."""
    # TODO(synk): training-mode dropout (p=0.5) not implemented; identity (eval) used.
    h0_all, c0_all = hidden
    B, T = x_tokens.shape
    # Gather straight into time-major (T, B, E): transpose the tiny index
    # array, not the big activation tensor.
    emb_tbe = jnp.take(params["emb_weight"], x_tokens.T, axis=0)
    y_tbh, h_n, c_n = lstm_stack(emb_tbe, params["w_ih"], params["w_hh"],
                                 params["b"], h0_all, c0_all, chunk=lstm_chunk)
    H = y_tbh.shape[-1]
    # (T, B, H) -> (B, T, H): small bf16 glue pass relative to the (B*T, V)
    # decoder output traffic; keeps row order identical to PyTorch's out.view(-1, V).
    out_flat = jnp.transpose(y_tbh, (1, 0, 2)).reshape(B * T, H)
    logprobs = decode_logsoftmax(out_flat, params["w_dec"], params["b_dec"])
    return logprobs, (h_n, c_n)


# ----------------------------------------------------------- param init
def init_params(key, ntokens, embed_size, hidden_size, nlayers):
    assert embed_size == hidden_size, "weights are tied (embed_size == hidden_size)"
    ks = jax.random.split(key, 2 + 4 * nlayers)
    initrange = 0.1
    emb_weight = jax.random.uniform(ks[0], (ntokens, embed_size),
                                    jnp.float32, -initrange, initrange)
    stdv = 1.0 / math.sqrt(hidden_size)
    w_ih, w_hh, bias = [], [], []
    for l in range(nlayers):
        k1, k2, k3, k4 = ks[2 + 4 * l: 6 + 4 * l]
        # PyTorch stores (4H, in); keep transposed (in, 4H) so kernels do x @ W.
        w_ih.append(jax.random.uniform(k1, (hidden_size, 4 * hidden_size),
                                       jnp.float32, -stdv, stdv))
        w_hh.append(jax.random.uniform(k2, (hidden_size, 4 * hidden_size),
                                       jnp.float32, -stdv, stdv))
        b_ih = jax.random.uniform(k3, (4 * hidden_size,), jnp.float32, -stdv, stdv)
        b_hh = jax.random.uniform(k4, (4 * hidden_size,), jnp.float32, -stdv, stdv)
        bias.append((b_ih + b_hh).reshape(1, 4 * hidden_size))
    w_ih = jnp.stack(w_ih).astype(jnp.bfloat16)       # (L, H, 4H) bf16 MXU operand
    w_hh = jnp.stack(w_hh).astype(jnp.bfloat16)       # (L, H, 4H)
    bias = jnp.stack(bias)                            # (L, 1, 4H) f32
    # decoder weight tied to embedding: logits = h @ W_emb.T + b_dec
    w_dec = emb_weight.T.astype(jnp.bfloat16)         # (H, V) bf16
    b_dec = jax.random.uniform(ks[1], (1, ntokens), jnp.float32, -stdv, stdv)
    return dict(emb_weight=emb_weight, w_ih=w_ih, w_hh=w_hh, b=bias,
                w_dec=w_dec, b_dec=b_dec)


# ----------------------------------------------------- pure-JAX reference
def reference_forward(params, x_tokens, hidden):
    h_all, c_all = hidden
    B, T = x_tokens.shape
    L = params["w_ih"].shape[0]
    H = params["w_hh"].shape[1]
    x = params["emb_weight"][x_tokens]                        # (B, T, E)
    h_list, c_list = [], []
    for l in range(L):
        w_ih, w_hh, b = params["w_ih"][l], params["w_hh"][l], params["b"][l]
        h, c = h_all[l], c_all[l]
        outs = []
        for t in range(T):
            xt = x[:, t, :]
            gates = (jnp.dot(xt.astype(jnp.bfloat16), w_ih,
                             preferred_element_type=jnp.float32)
                     + jnp.dot(h.astype(jnp.bfloat16), w_hh,
                               preferred_element_type=jnp.float32) + b)
            i_g = jax.nn.sigmoid(gates[:, 0:H])
            f_g = jax.nn.sigmoid(gates[:, H:2 * H])
            g_g = jnp.tanh(gates[:, 2 * H:3 * H])
            o_g = jax.nn.sigmoid(gates[:, 3 * H:4 * H])
            c = f_g * c + i_g * g_g
            h = o_g * jnp.tanh(c)
            outs.append(h)
        x = jnp.stack(outs, axis=1)                           # (B, T, H)
        h_list.append(h)
        c_list.append(c)
    out_flat = x.reshape(B * T, H)
    logits = (jnp.dot(out_flat.astype(jnp.bfloat16), params["w_dec"],
                      preferred_element_type=jnp.float32) + params["b_dec"])
    return jax.nn.log_softmax(logits, axis=-1), (jnp.stack(h_list), jnp.stack(c_list))


if __name__ == "__main__":
    ntokens, embed_size, hidden_size, nlayers = 256, 128, 128, 2
    B, T = 16, 32      # B multiple of 8, H multiple of 128 -> aligned layouts
    key = jax.random.PRNGKey(0)
    kp, kx = jax.random.split(key)
    params = init_params(kp, ntokens, embed_size, hidden_size, nlayers)
    x_tokens = jax.random.randint(kx, (B, T), 0, ntokens, dtype=jnp.int32)
    # init_hidden(batch_size) for LSTM: (h0, c0) zeros
    h0 = jnp.zeros((nlayers, B, hidden_size), jnp.float32)
    c0 = jnp.zeros((nlayers, B, hidden_size), jnp.float32)

    logprobs, (h_n, c_n) = rnn_model_forward(params, x_tokens, (h0, c0), lstm_chunk=16)
    jax.block_until_ready((logprobs, h_n, c_n))

    assert logprobs.shape == (B * T, ntokens)
    assert h_n.shape == (nlayers, B, hidden_size)
    assert c_n.shape == (nlayers, B, hidden_size)
    # rows of log_softmax must sum to 1 in prob space
    assert bool(jnp.allclose(jnp.exp(logprobs).sum(axis=-1), 1.0, atol=1e-4))

    # check against a pure-JAX reference of the same (bf16-matmul) computation
    ref_lp, (ref_h, ref_c) = reference_forward(params, x_tokens, (h0, c0))
    assert bool(jnp.allclose(logprobs, ref_lp, atol=3e-2, rtol=3e-2))
    assert bool(jnp.allclose(h_n, ref_h, atol=3e-2, rtol=3e-2))
    assert bool(jnp.allclose(c_n, ref_c, atol=3e-2, rtol=3e-2))
    print("KERNEL_OK")
</pallas_src>

<mosaic_0001>
module attributes {stable_mosaic.version = 11 : i64} {
  func.func @kernel(%arg0: i32, %arg1: memref<16x16x128xf32, #tpu.memory_space<vmem>>, %arg2: memref<2x128x512xbf16, #tpu.memory_space<vmem>>, %arg3: memref<2x128x512xbf16, #tpu.memory_space<vmem>>, %arg4: memref<2x1x512xf32, #tpu.memory_space<vmem>>, %arg5: memref<2x16x128xf32, #tpu.memory_space<vmem>>, %arg6: memref<2x16x128xf32, #tpu.memory_space<vmem>>, %arg7: memref<16x16x128xbf16, #tpu.memory_space<vmem>>, %arg8: memref<2x16x128xf32, #tpu.memory_space<vmem>>, %arg9: memref<2x16x128xf32, #tpu.memory_space<vmem>>, %arg10: memref<2x16x128xf32, #tpu.memory_space<vmem>>, %arg11: memref<2x16x128xf32, #tpu.memory_space<vmem>>, %arg12: memref<16x16x128xf32, #tpu.memory_space<vmem>>, %arg13: memref<16x16x512xf32, #tpu.memory_space<vmem>>) attributes {dimension_semantics = [#tpu.dimension_semantics<arbitrary>], iteration_bounds = array<i64: 2>, scalar_prefetch = 0 : i64, scratch_operands = 4 : i64, tpu.core_type = #tpu.core_type<tc>, window_params = [{transform_indices = @transform_0, window_bounds = array<i64: 16, 16, 128>}, {pipeline_mode = #tpu.pipeline_mode<synchronous>, transform_indices = @transform_1, window_bounds = array<i64: 2, 128, 512>}, {pipeline_mode = #tpu.pipeline_mode<synchronous>, transform_indices = @transform_2, window_bounds = array<i64: 2, 128, 512>}, {pipeline_mode = #tpu.pipeline_mode<synchronous>, transform_indices = @transform_3, window_bounds = array<i64: 2, 1, 512>}, {pipeline_mode = #tpu.pipeline_mode<synchronous>, transform_indices = @transform_4, window_bounds = array<i64: 2, 16, 128>}, {pipeline_mode = #tpu.pipeline_mode<synchronous>, transform_indices = @transform_5, window_bounds = array<i64: 2, 16, 128>}, {transform_indices = @transform_6, window_bounds = array<i64: 16, 16, 128>}, {pipeline_mode = #tpu.pipeline_mode<synchronous>, transform_indices = @transform_7, window_bounds = array<i64: 2, 16, 128>}, {pipeline_mode = #tpu.pipeline_mode<synchronous>, transform_indices = @transform_8, window_bounds = array<i64: 2, 16, 128>}]} {
    %c0_i32 = arith.constant 0 : i32
    %0 = arith.cmpi eq, %arg0, %c0_i32 : i32
    %1 = arith.extui %0 : i1 to i32
    %c0_i32_0 = arith.constant 0 : i32
    %2 = arith.cmpi ne, %1, %c0_i32_0 : i32
    scf.if %2 {
      %c0_38 = arith.constant 0 : index
      %c0_39 = arith.constant 0 : index
      %c0_40 = arith.constant 0 : index
      %36 = vector.load %arg5[%c0_38, %c0_39, %c0_40] : memref<2x16x128xf32, #tpu.memory_space<vmem>>, vector<2x16x128xf32>
      %c0_41 = arith.constant 0 : index
      %c0_42 = arith.constant 0 : index
      %c0_43 = arith.constant 0 : index
      %37 = vector.load %arg10[%c0_41, %c0_42, %c0_43] : memref<2x16x128xf32, #tpu.memory_space<vmem>>, vector<2x16x128xf32>
      tpu.vector_store %arg10[%c0_41, %c0_42, %c0_43], %36 {strides = array<i32>} : memref<2x16x128xf32, #tpu.memory_space<vmem>>, vector<2x16x128xf32>,
      %c0_44 = arith.constant 0 : index
      %c0_45 = arith.constant 0 : index
      %c0_46 = arith.constant 0 : index
      %38 = vector.load %arg6[%c0_44, %c0_45, %c0_46] : memref<2x16x128xf32, #tpu.memory_space<vmem>>, vector<2x16x128xf32>
      %c0_47 = arith.constant 0 : index
      %c0_48 = arith.constant 0 : index
      %c0_49 = arith.constant 0 : index
      %39 = vector.load %arg11[%c0_47, %c0_48, %c0_49] : memref<2x16x128xf32, #tpu.memory_space<vmem>>, vector<2x16x128xf32>
      tpu.vector_store %arg11[%c0_47, %c0_48, %c0_49], %38 {strides = array<i32>} : memref<2x16x128xf32, #tpu.memory_space<vmem>>, vector<2x16x128xf32>,
    } else {
    }
    %c0 = arith.constant 0 : index
    %c0_1 = arith.constant 0 : index
    %c0_2 = arith.constant 0 : index
    %3 = vector.load %arg1[%c0, %c0_1, %c0_2] : memref<16x16x128xf32, #tpu.memory_space<vmem>>, vector<16x16x128xf32>
    %4 = vector.shape_cast %3 : vector<16x16x128xf32> to vector<256x128xf32>
    %5 = arith.truncf %4 : vector<256x128xf32> to vector<256x128xbf16>
    %c0_3 = arith.constant 0 : index
    %c0_4 = arith.constant 0 : index
    %c0_5 = arith.constant 0 : index
    %6 = vector.load %arg2[%c0_3, %c0_4, %c0_5] : memref<2x128x512xbf16, #tpu.memory_space<vmem>>, vector<1x128x512xbf16>
    %7 = vector.shape_cast %6 : vector<1x128x512xbf16> to vector<128x512xbf16>
    %cst = arith.constant dense<0.000000e+00> : vector<256x512xf32>
    %8 = tpu.matmul %5, %7, %cst {dimension_numbers = #tpu.dot_dimension_numbers<[1], [0], [0], [1], [0, 0, 1, 1], [], []>} : vector<256x128xbf16>, vector<128x512xbf16>, vector<256x512xf32> -> vector<256x512xf32>
    %c0_6 = arith.constant 0 : index
    %c0_7 = arith.constant 0 : index
    %c0_8 = arith.constant 0 : index
    %9 = vector.load %arg4[%c0_6, %c0_7, %c0_8] : memref<2x1x512xf32, #tpu.memory_space<vmem>>, vector<1x1x512xf32>
    %10 = vector.shape_cast %9 : vector<1x1x512xf32> to vector<1x512xf32>
    %11 = vector.broadcast %10 : vector<1x512xf32> to vector<256x512xf32>
    %12 = arith.addf %8, %11 : vector<256x512xf32>
    %13 = vector.shape_cast %12 : vector<256x512xf32> to vector<16x16x512xf32>
    %c0_9 = arith.constant 0 : index
    %c0_10 = arith.constant 0 : index
    %c0_11 = arith.constant 0 : index
    %14 = vector.load %arg13[%c0_9, %c0_10, %c0_11] : memref<16x16x512xf32, #tpu.memory_space<vmem>>, vector<16x16x512xf32>
    tpu.vector_store %arg13[%c0_9, %c0_10, %c0_11], %13 {strides = array<i32>} : memref<16x16x512xf32, #tpu.memory_space<vmem>>, vector<16x16x512xf32>,
    %c0_12 = arith.constant 0 : index
    %c0_13 = arith.constant 0 : index
    %c0_14 = arith.constant 0 : index
    %15 = vector.load %arg3[%c0_12, %c0_13, %c0_14] : memref<2x128x512xbf16, #tpu.memory_space<vmem>>, vector<1x128x512xbf16>
    %16 = vector.shape_cast %15 : vector<1x128x512xbf16> to vector<128x512xbf16>
    %c0_i32_15 = arith.constant 0 : i32
    %c16_i32 = arith.constant 16 : i32
    %17 = arith.addi %c0_i32_15, %c16_i32 : i32
    %c1_i32 = arith.constant 1 : i32
    scf.for %arg14 = %c0_i32_15 to %17 step %c1_i32  : i32 {
      %c1_i32_38 = arith.constant 1 : i32
      %36 = arith.muli %arg14, %c1_i32_38 : i32
      %c0_i32_39 = arith.constant 0 : i32
      %37 = arith.addi %c0_i32_39, %36 : i32
      %c0_40 = arith.constant 0 : index
      %c0_41 = arith.constant 0 : index
      %c0_42 = arith.constant 0 : index
      %38 = vector.load %arg10[%c0_40, %c0_41, %c0_42] : memref<2x16x128xf32, #tpu.memory_space<vmem>>, vector<1x16x128xf32>
      %39 = vector.shape_cast %38 : vector<1x16x128xf32> to vector<16x128xf32>
      %c0_43 = arith.constant 0 : index
      %c0_44 = arith.constant 0 : index
      %c0_45 = arith.constant 0 : index
      %40 = vector.load %arg11[%c0_43, %c0_44, %c0_45] : memref<2x16x128xf32, #tpu.memory_space<vmem>>, vector<1x16x128xf32>
      %41 = vector.shape_cast %40 : vector<1x16x128xf32> to vector<16x128xf32>
      %42 = arith.index_cast %37 : i32 to index
      %c0_46 = arith.constant 0 : index
      %c0_47 = arith.constant 0 : index
      %43 = vector.load %arg13[%42, %c0_46, %c0_47] : memref<16x16x512xf32, #tpu.memory_space<vmem>>, vector<1x16x512xf32>
      %44 = vector.shape_cast %43 : vector<1x16x512xf32> to vector<16x512xf32>
      %45 = arith.truncf %39 : vector<16x128xf32> to vector<16x128xbf16>
      %cst_48 = arith.constant dense<0.000000e+00> : vector<16x512xf32>
      %46 = tpu.matmul %45, %16, %cst_48 {dimension_numbers = #tpu.dot_dimension_numbers<[1], [0], [0], [1], [0, 0, 1, 1], [], []>} : vector<16x128xbf16>, vector<128x512xbf16>, vector<16x512xf32> -> vector<16x512xf32>
      %47 = arith.addf %44, %46 : vector<16x512xf32>
      %48 = vector.extract_strided_slice %47 {offsets = [0, 0], sizes = [16, 128], strides = [1, 1]} : vector<16x512xf32> to vector<16x128xf32>
      %49 = arith.negf %48 : vector<16x128xf32>
      %50 = math.exp %49 : vector<16x128xf32>
      %cst_49 = arith.constant 1.000000e+00 : f32
      %51 = vector.broadcast %cst_49 : f32 to vector<16x128xf32>
      %52 = arith.addf %51, %50 : vector<16x128xf32>
      %53 = arith.divf %51, %52 : vector<16x128xf32>
      %54 = vector.extract_strided_slice %47 {offsets = [0, 128], sizes = [16, 128], strides = [1, 1]} : vector<16x512xf32> to vector<16x128xf32>
      %55 = arith.negf %54 : vector<16x128xf32>
      %56 = math.exp %55 : vector<16x128xf32>
      %cst_50 = arith.constant 1.000000e+00 : f32
      %57 = vector.broadcast %cst_50 : f32 to vector<16x128xf32>
      %58 = arith.addf %57, %56 : vector<16x128xf32>
      %59 = arith.divf %57, %58 : vector<16x128xf32>
      %60 = vector.extract_strided_slice %47 {offsets = [0, 256], sizes = [16, 128], strides = [1, 1]} : vector<16x512xf32> to vector<16x128xf32>
      %61 = math.tanh %60 : vector<16x128xf32>
      %62 = vector.extract_strided_slice %47 {offsets = [0, 384], sizes = [16, 128], strides = [1, 1]} : vector<16x512xf32> to vector<16x128xf32>
      %63 = arith.negf %62 : vector<16x128xf32>
      %64 = math.exp %63 : vector<16x128xf32>
      %cst_51 = arith.constant 1.000000e+00 : f32
      %65 = vector.broadcast %cst_51 : f32 to vector<16x128xf32>
      %66 = arith.addf %65, %64 : vector<16x128xf32>
      %67 = arith.divf %65, %66 : vector<16x128xf32>
      %68 = arith.mulf %59, %41 : vector<16x128xf32>
      %69 = arith.mulf %53, %61 : vector<16x128xf32>
      %70 = arith.addf %68, %69 : vector<16x128xf32>
      %71 = math.tanh %70 : vector<16x128xf32>
      %72 = arith.mulf %67, %71 : vector<16x128xf32>
      %c0_52 = arith.constant 0 : index
      %c0_53 = arith.constant 0 : index
      %c0_54 = arith.constant 0 : index
      %73 = vector.load %arg11[%c0_52, %c0_53, %c0_54] : memref<2x16x128xf32, #tpu.memory_space<vmem>>, vector<1x16x128xf32>
      %74 = vector.shape_cast %73 : vector<1x16x128xf32> to vector<16x128xf32>
      %75 = vector.shape_cast %70 : vector<16x128xf32> to vector<1x16x128xf32>
      tpu.vector_store %arg11[%c0_52, %c0_53, %c0_54], %75 {strides = array<i32>} : memref<2x16x128xf32, #tpu.memory_space<vmem>>, vector<1x16x128xf32>,
      %c0_55 = arith.constant 0 : index
      %c0_56 = arith.constant 0 : index
      %c0_57 = arith.constant 0 : index
      %76 = vector.load %arg10[%c0_55, %c0_56, %c0_57] : memref<2x16x128xf32, #tpu.memory_space<vmem>>, vector<1x16x128xf32>
      %77 = vector.shape_cast %76 : vector<1x16x128xf32> to vector<16x128xf32>
      %78 = vector.shape_cast %72 : vector<16x128xf32> to vector<1x16x128xf32>
      tpu.vector_store %arg10[%c0_55, %c0_56, %c0_57], %78 {strides = array<i32>} : memref<2x16x128xf32, #tpu.memory_space<vmem>>, vector<1x16x128xf32>,
      %79 = arith.index_cast %37 : i32 to index
      %c0_58 = arith.constant 0 : index
      %c0_59 = arith.constant 0 : index
      %80 = vector.load %arg12[%79, %c0_58, %c0_59] : memref<16x16x128xf32, #tpu.memory_space<vmem>>, vector<1x16x128xf32>
      %81 = vector.shape_cast %80 : vector<1x16x128xf32> to vector<16x128xf32>
      %82 = vector.shape_cast %72 : vector<16x128xf32> to vector<1x16x128xf32>
      tpu.vector_store %arg12[%79, %c0_58, %c0_59], %82 {strides = array<i32>} : memref<16x16x128xf32, #tpu.memory_space<vmem>>, vector<1x16x128xf32>,
    }
    %c16_i32_16 = arith.constant 16 : i32
    %c0_17 = arith.constant 0 : index
    %c0_18 = arith.constant 0 : index
    %c0_19 = arith.constant 0 : index
    %18 = vector.load %arg12[%c0_17, %c0_18, %c0_19] : memref<16x16x128xf32, #tpu.memory_space<vmem>>, vector<16x16x128xf32>
    %19 = vector.shape_cast %18 : vector<16x16x128xf32> to vector<256x128xf32>
    %20 = arith.truncf %19 : vector<256x128xf32> to vector<256x128xbf16>
    %c1 = arith.constant 1 : index
    %c0_20 = arith.constant 0 : index
    %c0_21 = arith.constant 0 : index
    %21 = vector.load %arg2[%c1, %c0_20, %c0_21] : memref<2x128x512xbf16, #tpu.memory_space<vmem>>, vector<1x128x512xbf16>
    %22 = vector.shape_cast %21 : vector<1x128x512xbf16> to vector<128x512xbf16>
    %cst_22 = arith.constant dense<0.000000e+00> : vector<256x512xf32>
    %23 = tpu.matmul %20, %22, %cst_22 {dimension_numbers = #tpu.dot_dimension_numbers<[1], [0], [0], [1], [0, 0, 1, 1], [], []>} : vector<256x128xbf16>, vector<128x512xbf16>, vector<256x512xf32> -> vector<256x512xf32>
    %c1_23 = arith.constant 1 : index
    %c0_24 = arith.constant 0 : index
    %c0_25 = arith.constant 0 : index
    %24 = vector.load %arg4[%c1_23, %c0_24, %c0_25] : memref<2x1x512xf32, #tpu.memory_space<vmem>>, vector<1x1x512xf32>
    %25 = vector.shape_cast %24 : vector<1x1x512xf32> to vector<1x512xf32>
    %26 = vector.broadcast %25 : vector<1x512xf32> to vector<256x512xf32>
    %27 = arith.addf %23, %26 : vector<256x512xf32>
    %28 = vector.shape_cast %27 : vector<256x512xf32> to vector<16x16x512xf32>
    %c0_26 = arith.constant 0 : index
    %c0_27 = arith.constant 0 : index
    %c0_28 = arith.constant 0 : index
    %29 = vector.load %arg13[%c0_26, %c0_27, %c0_28] : memref<16x16x512xf32, #tpu.memory_space<vmem>>, vector<16x16x512xf32>
    tpu.vector_store %arg13[%c0_26, %c0_27, %c0_28], %28 {strides = array<i32>} : memref<16x16x512xf32, #tpu.memory_space<vmem>>, vector<16x16x512xf32>,
    %c1_29 = arith.constant 1 : index
    %c0_30 = arith.constant 0 : index
    %c0_31 = arith.constant 0 : index
    %30 = vector.load %arg3[%c1_29, %c0_30, %c0_31] : memref<2x128x512xbf16, #tpu.memory_space<vmem>>, vector<1x128x512xbf16>
    %31 = vector.shape_cast %30 : vector<1x128x512xbf16> to vector<128x512xbf16>
    %c0_i32_32 = arith.constant 0 : i32
    %c16_i32_33 = arith.constant 16 : i32
    %32 = arith.addi %c0_i32_32, %c16_i32_33 : i32
    %c1_i32_34 = arith.constant 1 : i32
    scf.for %arg14 = %c0_i32_32 to %32 step %c1_i32_34  : i32 {
      %c1_i32_38 = arith.constant 1 : i32
      %36 = arith.muli %arg14, %c1_i32_38 : i32
      %c0_i32_39 = arith.constant 0 : i32
      %37 = arith.addi %c0_i32_39, %36 : i32
      %c1_40 = arith.constant 1 : index
      %c0_41 = arith.constant 0 : index
      %c0_42 = arith.constant 0 : index
      %38 = vector.load %arg10[%c1_40, %c0_41, %c0_42] : memref<2x16x128xf32, #tpu.memory_space<vmem>>, vector<1x16x128xf32>
      %39 = vector.shape_cast %38 : vector<1x16x128xf32> to vector<16x128xf32>
      %c1_43 = arith.constant 1 : index
      %c0_44 = arith.constant 0 : index
      %c0_45 = arith.constant 0 : index
      %40 = vector.load %arg11[%c1_43, %c0_44, %c0_45] : memref<2x16x128xf32, #tpu.memory_space<vmem>>, vector<1x16x128xf32>
      %41 = vector.shape_cast %40 : vector<1x16x128xf32> to vector<16x128xf32>
      %42 = arith.index_cast %37 : i32 to index
      %c0_46 = arith.constant 0 : index
      %c0_47 = arith.constant 0 : index
      %43 = vector.load %arg13[%42, %c0_46, %c0_47] : memref<16x16x512xf32, #tpu.memory_space<vmem>>, vector<1x16x512xf32>
      %44 = vector.shape_cast %43 : vector<1x16x512xf32> to vector<16x512xf32>
      %45 = arith.truncf %39 : vector<16x128xf32> to vector<16x128xbf16>
      %cst_48 = arith.constant dense<0.000000e+00> : vector<16x512xf32>
      %46 = tpu.matmul %45, %31, %cst_48 {dimension_numbers = #tpu.dot_dimension_numbers<[1], [0], [0], [1], [0, 0, 1, 1], [], []>} : vector<16x128xbf16>, vector<128x512xbf16>, vector<16x512xf32> -> vector<16x512xf32>
      %47 = arith.addf %44, %46 : vector<16x512xf32>
      %48 = vector.extract_strided_slice %47 {offsets = [0, 0], sizes = [16, 128], strides = [1, 1]} : vector<16x512xf32> to vector<16x128xf32>
      %49 = arith.negf %48 : vector<16x128xf32>
      %50 = math.exp %49 : vector<16x128xf32>
      %cst_49 = arith.constant 1.000000e+00 : f32
      %51 = vector.broadcast %cst_49 : f32 to vector<16x128xf32>
      %52 = arith.addf %51, %50 : vector<16x128xf32>
      %53 = arith.divf %51, %52 : vector<16x128xf32>
      %54 = vector.extract_strided_slice %47 {offsets = [0, 128], sizes = [16, 128], strides = [1, 1]} : vector<16x512xf32> to vector<16x128xf32>
      %55 = arith.negf %54 : vector<16x128xf32>
      %56 = math.exp %55 : vector<16x128xf32>
      %cst_50 = arith.constant 1.000000e+00 : f32
      %57 = vector.broadcast %cst_50 : f32 to vector<16x128xf32>
      %58 = arith.addf %57, %56 : vector<16x128xf32>
      %59 = arith.divf %57, %58 : vector<16x128xf32>
      %60 = vector.extract_strided_slice %47 {offsets = [0, 256], sizes = [16, 128], strides = [1, 1]} : vector<16x512xf32> to vector<16x128xf32>
      %61 = math.tanh %60 : vector<16x128xf32>
      %62 = vector.extract_strided_slice %47 {offsets = [0, 384], sizes = [16, 128], strides = [1, 1]} : vector<16x512xf32> to vector<16x128xf32>
      %63 = arith.negf %62 : vector<16x128xf32>
      %64 = math.exp %63 : vector<16x128xf32>
      %cst_51 = arith.constant 1.000000e+00 : f32
      %65 = vector.broadcast %cst_51 : f32 to vector<16x128xf32>
      %66 = arith.addf %65, %64 : vector<16x128xf32>
      %67 = arith.divf %65, %66 : vector<16x128xf32>
      %68 = arith.mulf %59, %41 : vector<16x128xf32>
      %69 = arith.mulf %53, %61 : vector<16x128xf32>
      %70 = arith.addf %68, %69 : vector<16x128xf32>
      %71 = math.tanh %70 : vector<16x128xf32>
      %72 = arith.mulf %67, %71 : vector<16x128xf32>
      %c1_52 = arith.constant 1 : index
      %c0_53 = arith.constant 0 : index
      %c0_54 = arith.constant 0 : index
      %73 = vector.load %arg11[%c1_52, %c0_53, %c0_54] : memref<2x16x128xf32, #tpu.memory_space<vmem>>, vector<1x16x128xf32>
      %74 = vector.shape_cast %73 : vector<1x16x128xf32> to vector<16x128xf32>
      %75 = vector.shape_cast %70 : vector<16x128xf32> to vector<1x16x128xf32>
      tpu.vector_store %arg11[%c1_52, %c0_53, %c0_54], %75 {strides = array<i32>} : memref<2x16x128xf32, #tpu.memory_space<vmem>>, vector<1x16x128xf32>,
      %c1_55 = arith.constant 1 : index
      %c0_56 = arith.constant 0 : index
      %c0_57 = arith.constant 0 : index
      %76 = vector.load %arg10[%c1_55, %c0_56, %c0_57] : memref<2x16x128xf32, #tpu.memory_space<vmem>>, vector<1x16x128xf32>
      %77 = vector.shape_cast %76 : vector<1x16x128xf32> to vector<16x128xf32>
      %78 = vector.shape_cast %72 : vector<16x128xf32> to vector<1x16x128xf32>
      tpu.vector_store %arg10[%c1_55, %c0_56, %c0_57], %78 {strides = array<i32>} : memref<2x16x128xf32, #tpu.memory_space<vmem>>, vector<1x16x128xf32>,
      %79 = arith.truncf %72 : vector<16x128xf32> to vector<16x128xbf16>
      %80 = arith.index_cast %37 : i32 to index
      %c0_58 = arith.constant 0 : index
      %c0_59 = arith.constant 0 : index
      %81 = vector.load %arg7[%80, %c0_58, %c0_59] : memref<16x16x128xbf16, #tpu.memory_space<vmem>>, vector<1x16x128xbf16>
      %82 = vector.shape_cast %81 : vector<1x16x128xbf16> to vector<16x128xbf16>
      %83 = vector.shape_cast %79 : vector<16x128xbf16> to vector<1x16x128xbf16>
      tpu.vector_store %arg7[%80, %c0_58, %c0_59], %83 {strides = array<i32>} : memref<16x16x128xbf16, #tpu.memory_space<vmem>>, vector<1x16x128xbf16>,
    }
    %c16_i32_35 = arith.constant 16 : i32
    %c1_i32_36 = arith.constant 1 : i32
    %33 = arith.cmpi eq, %arg0, %c1_i32_36 : i32
    %34 = arith.extui %33 : i1 to i32
    %c0_i32_37 = arith.constant 0 : i32
    %35 = arith.cmpi ne, %34, %c0_i32_37 : i32
    scf.if %35 {
      %c0_38 = arith.constant 0 : index
      %c0_39 = arith.constant 0 : index
      %c0_40 = arith.constant 0 : index
      %36 = vector.load %arg10[%c0_38, %c0_39, %c0_40] : memref<2x16x128xf32, #tpu.memory_space<vmem>>, vector<2x16x128xf32>
      %c0_41 = arith.constant 0 : index
      %c0_42 = arith.constant 0 : index
      %c0_43 = arith.constant 0 : index
      %37 = vector.load %arg8[%c0_41, %c0_42, %c0_43] : memref<2x16x128xf32, #tpu.memory_space<vmem>>, vector<2x16x128xf32>
      tpu.vector_store %arg8[%c0_41, %c0_42, %c0_43], %36 {strides = array<i32>} : memref<2x16x128xf32, #tpu.memory_space<vmem>>, vector<2x16x128xf32>,
      %c0_44 = arith.constant 0 : index
      %c0_45 = arith.constant 0 : index
      %c0_46 = arith.constant 0 : index
      %38 = vector.load %arg11[%c0_44, %c0_45, %c0_46] : memref<2x16x128xf32, #tpu.memory_space<vmem>>, vector<2x16x128xf32>
      %c0_47 = arith.constant 0 : index
      %c0_48 = arith.constant 0 : index
      %c0_49 = arith.constant 0 : index
      %39 = vector.load %arg9[%c0_47, %c0_48, %c0_49] : memref<2x16x128xf32, #tpu.memory_space<vmem>>, vector<2x16x128xf32>
      tpu.vector_store %arg9[%c0_47, %c0_48, %c0_49], %38 {strides = array<i32>} : memref<2x16x128xf32, #tpu.memory_space<vmem>>, vector<2x16x128xf32>,
    } else {
    }
    return
  }
  func.func @transform_0(%arg0: i32) -> (i32, i32, i32) {
    %c0_i32 = arith.constant 0 : i32
    %c0_i32_0 = arith.constant 0 : i32
    %c0_i32_1 = arith.constant 0 : i32
    return %arg0, %c0_i32, %c0_i32_0 : i32, i32, i32
  }
  func.func @transform_1(%arg0: i32) -> (i32, i32, i32) {
    %c0_i32 = arith.constant 0 : i32
    %c0_i32_0 = arith.constant 0 : i32
    %c0_i32_1 = arith.constant 0 : i32
    %c0_i32_2 = arith.constant 0 : i32
    return %c0_i32, %c0_i32_0, %c0_i32_1 : i32, i32, i32
  }
  func.func @transform_2(%arg0: i32) -> (i32, i32, i32) {
    %c0_i32 = arith.constant 0 : i32
    %c0_i32_0 = arith.constant 0 : i32
    %c0_i32_1 = arith.constant 0 : i32
    %c0_i32_2 = arith.constant 0 : i32
    return %c0_i32, %c0_i32_0, %c0_i32_1 : i32, i32, i32
  }
  func.func @transform_3(%arg0: i32) -> (i32, i32, i32) {
    %c0_i32 = arith.constant 0 : i32
    %c0_i32_0 = arith.constant 0 : i32
    %c0_i32_1 = arith.constant 0 : i32
    %c0_i32_2 = arith.constant 0 : i32
    return %c0_i32, %c0_i32_0, %c0_i32_1 : i32, i32, i32
  }
  func.func @transform_4(%arg0: i32) -> (i32, i32, i32) {
    %c0_i32 = arith.constant 0 : i32
    %c0_i32_0 = arith.constant 0 : i32
    %c0_i32_1 = arith.constant 0 : i32
    %c0_i32_2 = arith.constant 0 : i32
    return %c0_i32, %c0_i32_0, %c0_i32_1 : i32, i32, i32
  }
  func.func @transform_5(%arg0: i32) -> (i32, i32, i32) {
    %c0_i32 = arith.constant 0 : i32
    %c0_i32_0 = arith.constant 0 : i32
    %c0_i32_1 = arith.constant 0 : i32
    %c0_i32_2 = arith.constant 0 : i32
    return %c0_i32, %c0_i32_0, %c0_i32_1 : i32, i32, i32
  }
  func.func @transform_6(%arg0: i32) -> (i32, i32, i32) {
    %c0_i32 = arith.constant 0 : i32
    %c0_i32_0 = arith.constant 0 : i32
    %c0_i32_1 = arith.constant 0 : i32
    return %arg0, %c0_i32, %c0_i32_0 : i32, i32, i32
  }
  func.func @transform_7(%arg0: i32) -> (i32, i32, i32) {
    %c0_i32 = arith.constant 0 : i32
    %c0_i32_0 = arith.constant 0 : i32
    %c0_i32_1 = arith.constant 0 : i32
    %c0_i32_2 = arith.constant 0 : i32
    return %c0_i32, %c0_i32_0, %c0_i32_1 : i32, i32, i32
  }
  func.func @transform_8(%arg0: i32) -> (i32, i32, i32) {
    %c0_i32 = arith.constant 0 : i32
    %c0_i32_0 = arith.constant 0 : i32
    %c0_i32_1 = arith.constant 0 : i32
    %c0_i32_2 = arith.constant 0 : i32
    return %c0_i32, %c0_i32_0, %c0_i32_1 : i32, i32, i32
  }
}

</mosaic_0001>

<llo_original>
// kernel: tpu_custom_call.1
$region0: #{tpu_custom_call.1}
  #allocation0 [shape = 'u32[]', space=smem, size = 0x4, offset = 0x4, fixed_abs, tag = 'smem constant byte address 0x4 - core index']
  #allocation1 [shape = 'u32[72,128]{1,0:T(1,128)}', space=vmem, size = 0x9000, scoped, tag = 'internal scratch']
  #allocation2 [shape = 'f32[2,16,128]{2,1,0:T(8,128)}', space=vmem, size = 0x4000, scoped, tag = 'scratch operand']
  #allocation3 [shape = 'f32[2,16,128]{2,1,0:T(8,128)}', space=vmem, size = 0x4000, scoped, tag = 'scratch operand']
  #allocation4 [shape = 'f32[16,16,128]{2,1,0:T(8,128)}', space=vmem, size = 0x20000, scoped, tag = 'scratch operand']
  #allocation5 [shape = 'f32[16,16,512]{2,1,0:T(8,128)}', space=vmem, size = 0x80000, scoped, tag = 'scratch operand']
  %s0 = inlined_call_operand.hbm [shape: f32[32,16,128], index: 0, kind: input, shape index: {}]
  %s1 = inlined_call_operand.hbm [shape: bf16[2,128,512], index: 1, kind: input, shape index: {}]
  %s2 = inlined_call_operand.hbm [shape: bf16[2,128,512], index: 2, kind: input, shape index: {}]
  %s3 = inlined_call_operand.hbm [shape: f32[2,1,512], index: 3, kind: input, shape index: {}]
  %s4 = inlined_call_operand.hbm [shape: f32[2,16,128], index: 4, kind: input, shape index: {}]
  %s5 = inlined_call_operand.hbm [shape: f32[2,16,128], index: 5, kind: input, shape index: {}]
  %s6 = inlined_call_operand.hbm [shape: bf16[32,16,128], index: 6, kind: output, shape index: {0}]
  %s7 = inlined_call_operand.hbm [shape: f32[2,16,128], index: 7, kind: output, shape index: {1}]
  %s8 = inlined_call_operand.hbm [shape: f32[2,16,128], index: 8, kind: output, shape index: {2}]
  %9 = xla_tuple %s6, %s7, %s8
  %s10 = sld [smem:[#allocation0]]
  $region119: #{tpu_custom_call.1} parent=0
    _
  %s12 = ssub.s32 1, %s10
  %s13 = scalar_select 0, %s12, %s10
  $region1: #{tpu_custom_call.1} parent=0
    #allocation6 [shape = 'u8[262144]{0}', space=vmem, size = 0x40000, scoped, tag = 'input window, operand 0']
    #allocation7 [shape = 's32[2]{0}', space=sflag, size = 0x8, scoped, tag = 'scoped memory for tpu_custom_call.1']
    #allocation8 [shape = 's32[2]{0}', space=sflag, size = 0x8, scoped, tag = 'scoped memory for tpu_custom_call.1']
    #allocation9 [shape = 'u8[262144]{0}', space=vmem, size = 0x40000, scoped, tag = 'input window, operand 1, single buffered']
    #allocation10 [shape = 's32[1]{0}', space=sflag, size = 0x4, scoped, tag = 'scoped memory for tpu_custom_call.1']
    #allocation11 [shape = 'u8[262144]{0}', space=vmem, size = 0x40000, scoped, tag = 'input window, operand 2, single buffered']
    #allocation12 [shape = 'u8[4096]{0}', space=vmem, size = 0x1000, scoped, tag = 'input window, operand 3, single buffered']
    #allocation13 [shape = 's32[1]{0}', space=sflag, size = 0x4, scoped, tag = 'scoped memory for tpu_custom_call.1']
    #allocation14 [shape = 'u8[16384]{0}', space=vmem, size = 0x4000, scoped, tag = 'input window, operand 4, single buffered']
    #allocation15 [shape = 'u8[16384]{0}', space=vmem, size = 0x4000, scoped, tag = 'input window, operand 5, single buffered']
    #allocation16 [shape = 's32[1]{0}', space=sflag, size = 0x4, scoped, tag = 'scoped memory for tpu_custom_call.1']
    #allocation17 [shape = 'u8[131072]{0}', space=vmem, size = 0x20000, scoped, tag = 'output window, operand 0']
    #allocation18 [shape = 'u8[16384]{0}', space=vmem, size = 0x4000, scoped, tag = 'output window, operand 1, single buffered']
    #allocation19 [shape = 's32[1]{0}', space=sflag, size = 0x4, scoped, tag = 'scoped memory for tpu_custom_call.1']
    #allocation20 [shape = 'u8[16384]{0}', space=vmem, size = 0x4000, scoped, tag = 'output window, operand 2, single buffered']
    %14 = vsyncpa [#allocation7], 0
    %s15 = scalar_lea.sflag [#allocation7], 1
    %16 = vsyncpa %s15, 0
    %17 = vsyncpa [#allocation10], 0
    %18 = vsyncpa [#allocation13], 0
    %19 = vsyncpa [#allocation16], 0
    %20 = vsyncpa [#allocation8], 0
    %s21 = scalar_lea.sflag [#allocation8], 1
    %22 = vsyncpa %s21, 0
    %23 = vsyncpa [#allocation19], 0
    loop: start=0, step=1, limit=4
    $region2: #{tpu_custom_call.1} parent=1 // loop_pre_header
      _
    $region3: #{tpu_custom_call.1} parent=1 // loop_header
      %s25 = sphi 0, %s29
      %p26 = scmp.ge.s32.totalorder %s25, 4
      %s35 = sphi 0, %s37
      %s38 = sphi 0, %s35
      %s39 = sphi 0, %s38
      %s55 = sphi 0, %s39
      %s59 = sphi 0, %s59
      %s61 = sphi 0, %s59
      %s62 = sphi 0, %s61
      %s76 = sphi 0, %s62
      %s80 = sphi 0, %s80
      %s82 = sphi 0, %s80
      %s83 = sphi 0, %s82
      %s97 = sphi 0, %s83
      %s101 = sphi 0, %s101
      %s103 = sphi 0, %s101
      %s104 = sphi 0, %s103
      %s118 = sphi 0, %s104
      %s122 = sphi 0, %s122
      %s124 = sphi 0, %s122
      %s125 = sphi 0, %s124
      %s139 = sphi 0, %s125
      %s143 = sphi 0, %s143
      %s145 = sphi 0, %s143
      %s146 = sphi 0, %s145
      %s160 = sphi 0, %s146
      %s166 = sphi 0, %s168
      %s169 = sphi 0, %s166
      %s170 = sphi 0, %s169
      %s186 = sphi 0, %s170
      %s190 = sphi 0, %s190
      %s192 = sphi 0, %s190
      %s193 = sphi 0, %s192
      %s207 = sphi 0, %s193
      %s211 = sphi 0, %s211
      %s213 = sphi 0, %s211
      %s214 = sphi 0, %s213
      %s228 = sphi 0, %s214
    $region4: #{tpu_custom_call.1} parent=1 // loop_header_branch
      %28 = sbr.rel (%p26) target = $region8
    $region5: #{tpu_custom_call.1} parent=1 // loop_body
      %s30 = ssub.s32 %s25, 1
      %s31 = ssub.s32 %s25, 2
      %s32 = sadd.s32 %s25, 1
      %s33 = ssub.s32 %s25, %s32
      %p34 = scmp.eq.s32.totalorder %s33, 0
      %s36 = sadd.s32 %s35, 1
      %s37 = scalar_select %p34, %s35, %s36
      %p40 = pneg %p34
      %p41 = scmp.eq.s32.totalorder %s25, 1
      %p42 = por %p40, %p41
      %p43 = scmp.ne.s32.totalorder %s35, %s38
      %p44 = scmp.eq.s32.totalorder %s25, 0
      %p45 = por %p43, %p44
      %p46 = scmp.ne.s32.totalorder %s35, %s38
      %p47 = scmp.eq.s32.totalorder %s30, 1
      %p48 = por %p46, %p47
      %p49 = scmp.ne.s32.totalorder %s38, %s39
      %p50 = scmp.eq.s32.totalorder %s30, 0
      %p51 = por %p49, %p50
      %p52 = scmp.ne.s32.totalorder %s38, %s39
      %p53 = scmp.eq.s32.totalorder %s31, 1
      %p54 = por %p52, %p53
      %p56 = scmp.ne.s32.totalorder %s39, %s55
      %p57 = scmp.eq.s32.totalorder %s31, 0
      %p58 = por %p56, %p57
      %s60 = sadd.s32 %s59, 1
      %p63 = scmp.eq.s32.totalorder %s25, 1
      %p64 = scmp.ne.s32.totalorder %s59, %s61
      %p65 = scmp.eq.s32.totalorder %s25, 0
      %p66 = por %p64, %p65
      %p67 = scmp.ne.s32.totalorder %s59, %s61
      %p68 = scmp.eq.s32.totalorder %s30, 1
      %p69 = por %p67, %p68
      %p70 = scmp.ne.s32.totalorder %s61, %s62
      %p71 = scmp.eq.s32.totalorder %s30, 0
      %p72 = por %p70, %p71
      %p73 = scmp.ne.s32.totalorder %s61, %s62
      %p74 = scmp.eq.s32.totalorder %s31, 1
      %p75 = por %p73, %p74
      %p77 = scmp.ne.s32.totalorder %s62, %s76
      %p78 = scmp.eq.s32.totalorder %s31, 0
      %p79 = por %p77, %p78
      %s81 = sadd.s32 %s80, 1
      %p84 = scmp.eq.s32.totalorder %s25, 1
      %p85 = scmp.ne.s32.totalorder %s80, %s82
      %p86 = scmp.eq.s32.totalorder %s25, 0
      %p87 = por %p85, %p86
      %p88 = scmp.ne.s32.totalorder %s80, %s82
      %p89 = scmp.eq.s32.totalorder %s30, 1
      %p90 = por %p88, %p89
      %p91 = scmp.ne.s32.totalorder %s82, %s83
      %p92 = scmp.eq.s32.totalorder %s30, 0
      %p93 = por %p91, %p92
      %p94 = scmp.ne.s32.totalorder %s82, %s83
      %p95 = scmp.eq.s32.totalorder %s31, 1
      %p96 = por %p94, %p95
      %p98 = scmp.ne.s32.totalorder %s83, %s97
      %p99 = scmp.eq.s32.totalorder %s31, 0
      %p100 = por %p98, %p99
      %s102 = sadd.s32 %s101, 1
      %p105 = scmp.eq.s32.totalorder %s25, 1
      %p106 = scmp.ne.s32.totalorder %s101, %s103
      %p107 = scmp.eq.s32.totalorder %s25, 0
      %p108 = por %p106, %p107
      %p109 = scmp.ne.s32.totalorder %s101, %s103
      %p110 = scmp.eq.s32.totalorder %s30, 1
      %p111 = por %p109, %p110
      %p112 = scmp.ne.s32.totalorder %s103, %s104
      %p113 = scmp.eq.s32.totalorder %s30, 0
      %p114 = por %p112, %p113
      %p115 = scmp.ne.s32.totalorder %s103, %s104
      %p116 = scmp.eq.s32.totalorder %s31, 1
      %p117 = por %p115, %p116
      %p119 = scmp.ne.s32.totalorder %s104, %s118
      %p120 = scmp.eq.s32.totalorder %s31, 0
      %p121 = por %p119, %p120
      %s123 = sadd.s32 %s122, 1
      %p126 = scmp.eq.s32.totalorder %s25, 1
      %p127 = scmp.ne.s32.totalorder %s122, %s124
      %p128 = scmp.eq.s32.totalorder %s25, 0
      %p129 = por %p127, %p128
      %p130 = scmp.ne.s32.totalorder %s122, %s124
      %p131 = scmp.eq.s32.totalorder %s30, 1
      %p132 = por %p130, %p131
      %p133 = scmp.ne.s32.totalorder %s124, %s125
      %p134 = scmp.eq.s32.totalorder %s30, 0
      %p135 = por %p133, %p134
      %p136 = scmp.ne.s32.totalorder %s124, %s125
      %p137 = scmp.eq.s32.totalorder %s31, 1
      %p138 = por %p136, %p137
      %p140 = scmp.ne.s32.totalorder %s125, %s139
      %p141 = scmp.eq.s32.totalorder %s31, 0
      %p142 = por %p140, %p141
      %s144 = sadd.s32 %s143, 1
      %p147 = scmp.eq.s32.totalorder %s25, 1
      %p148 = scmp.ne.s32.totalorder %s143, %s145
      %p149 = scmp.eq.s32.totalorder %s25, 0
      %p150 = por %p148, %p149
      %p151 = scmp.ne.s32.totalorder %s143, %s145
      %p152 = scmp.eq.s32.totalorder %s30, 1
      %p153 = por %p151, %p152
      %p154 = scmp.ne.s32.totalorder %s145, %s146
      %p155 = scmp.eq.s32.totalorder %s30, 0
      %p156 = por %p154, %p155
      %p157 = scmp.ne.s32.totalorder %s145, %s146
      %p158 = scmp.eq.s32.totalorder %s31, 1
      %p159 = por %p157, %p158
      %p161 = scmp.ne.s32.totalorder %s146, %s160
      %p162 = scmp.eq.s32.totalorder %s31, 0
      %p163 = por %p161, %p162
      %s164 = ssub.s32 %s25, %s32
      %p165 = scmp.eq.s32.totalorder %s164, 0
      %s167 = sadd.s32 %s166, 1
      %s168 = scalar_select %p165, %s166, %s167
      %p171 = pneg %p165
      %p172 = scmp.eq.s32.totalorder %s25, 1
      %p173 = por %p171, %p172
      %p174 = scmp.ne.s32.totalorder %s166, %s169
      %p175 = scmp.eq.s32.totalorder %s25, 0
      %p176 = por %p174, %p175
      %p177 = scmp.ne.s32.totalorder %s166, %s169
      %p178 = scmp.eq.s32.totalorder %s30, 1
      %p179 = por %p177, %p178
      %p180 = scmp.ne.s32.totalorder %s169, %s170
      %p181 = scmp.eq.s32.totalorder %s30, 0
      %p182 = por %p180, %p181
      %p183 = scmp.ne.s32.totalorder %s169, %s170
      %p184 = scmp.eq.s32.totalorder %s31, 1
      %p185 = por %p183, %p184
      %p187 = scmp.ne.s32.totalorder %s170, %s186
      %p188 = scmp.eq.s32.totalorder %s31, 0
      %p189 = por %p187, %p188
      %s191 = sadd.s32 %s190, 1
      %p194 = scmp.eq.s32.totalorder %s25, 1
      %p195 = scmp.ne.s32.totalorder %s190, %s192
      %p196 = scmp.eq.s32.totalorder %s25, 0
      %p197 = por %p195, %p196
      %p198 = scmp.ne.s32.totalorder %s190, %s192
      %p199 = scmp.eq.s32.totalorder %s30, 1
      %p200 = por %p198, %p199
      %p201 = scmp.ne.s32.totalorder %s192, %s193
      %p202 = scmp.eq.s32.totalorder %s30, 0
      %p203 = por %p201, %p202
      %p204 = scmp.ne.s32.totalorder %s192, %s193
      %p205 = scmp.eq.s32.totalorder %s31, 1
      %p206 = por %p204, %p205
      %p208 = scmp.ne.s32.totalorder %s193, %s207
      %p209 = scmp.eq.s32.totalorder %s31, 0
      %p210 = por %p208, %p209
      %s212 = sadd.s32 %s211, 1
      %p215 = scmp.eq.s32.totalorder %s25, 1
      %p216 = scmp.ne.s32.totalorder %s211, %s213
      %p217 = scmp.eq.s32.totalorder %s25, 0
      %p218 = por %p216, %p217
      %p219 = scmp.ne.s32.totalorder %s211, %s213
      %p220 = scmp.eq.s32.totalorder %s30, 1
      %p221 = por %p219, %p220
      %p222 = scmp.ne.s32.totalorder %s213, %s214
      %p223 = scmp.eq.s32.totalorder %s30, 0
      %p224 = por %p222, %p223
      %p225 = scmp.ne.s32.totalorder %s213, %s214
      %p226 = scmp.eq.s32.totalorder %s31, 1
      %p227 = por %p225, %p226
      %p229 = scmp.ne.s32.totalorder %s214, %s228
      %p230 = scmp.eq.s32.totalorder %s31, 0
      %p231 = por %p229, %p230
      %p232 = scmp.le.s32.totalorder 1, %s25
      %p233 = scmp.lt.s32.totalorder %s25, 3
      %p234 = pnand %p232, %p233
      %p235 = pneg %p234
      // Predicated region
      $region9: #{tpu_custom_call.1} parent=5 // pred_check
        _
      $region10: #{tpu_custom_call.1} parent=5 // pred_check_branch
        %237 = sbr.rel (%p234) target = $region12
      $region11: #{tpu_custom_call.1} parent=5 // pred_region
        %s238 = ssub.s32 %s25, 1
        // Predicated region
        $region13: #{tpu_custom_call.1} parent=11 // pred_check
          %p239 = pneg %p72
        $region14: #{tpu_custom_call.1} parent=11 // pred_check_branch
          %241 = sbr.rel (%p239) target = $region16
        $region15: #{tpu_custom_call.1} parent=11 // pred_region
          %243 = vsyncadd [#allocation10], 0
          %s244 = sshll.u32 %s1, 4
          %s245 = int_to_ptr.hbm [resolvable:$true] %s244
          %s246 = sshll.u32 [#allocation9], 4
          %s247 = int_to_ptr.vmem [resolvable:$true] %s246
          %252 = dma.hbm_to_vmem [thread:$0]  %s245, 8192, %s247, [#allocation10], 256, 256, 16
        $region16: #{tpu_custom_call.1} parent=11 // pred_fallthru
          _
        // Predicated region
        $region17: #{tpu_custom_call.1} parent=11 // pred_check
          %p253 = pneg %p93
        $region18: #{tpu_custom_call.1} parent=11 // pred_check_branch
          %255 = sbr.rel (%p253) target = $region20
        $region19: #{tpu_custom_call.1} parent=11 // pred_region
          %257 = vsyncadd [#allocation10], 0
          %s258 = sshll.u32 %s2, 4
          %s259 = int_to_ptr.hbm [resolvable:$true] %s258
          %s260 = sshll.u32 [#allocation11], 4
          %s261 = int_to_ptr.vmem [resolvable:$true] %s260
          %266 = dma.hbm_to_vmem [thread:$0]  %s259, 8192, %s261, [#allocation10], 256, 256, 16
        $region20: #{tpu_custom_call.1} parent=11 // pred_fallthru
          _
        // Predicated region
        $region21: #{tpu_custom_call.1} parent=11 // pred_check
          %p267 = pneg %p114
        $region22: #{tpu_custom_call.1} parent=11 // pred_check_branch
          %269 = sbr.rel (%p267) target = $region24
        $region23: #{tpu_custom_call.1} parent=11 // pred_region
          %271 = vsyncadd [#allocation13], 0
          %s272 = sshll.u32 %s3, 4
          %s273 = int_to_ptr.hbm [resolvable:$true] %s272
          %s274 = sshll.u32 [#allocation12], 4
          %s275 = int_to_ptr.vmem [resolvable:$true] %s274
          %280 = dma.hbm_to_vmem [thread:$0]  %s273, 128, %s275, [#allocation13], 64, 64, 4
        $region24: #{tpu_custom_call.1} parent=11 // pred_fallthru
          _
        // Predicated region
        $region25: #{tpu_custom_call.1} parent=11 // pred_check
          %p281 = pneg %p135
        $region26: #{tpu_custom_call.1} parent=11 // pred_check_branch
          %283 = sbr.rel (%p281) target = $region28
        $region27: #{tpu_custom_call.1} parent=11 // pred_region
          %285 = vsyncadd [#allocation13], 0
          %s286 = sshll.u32 %s4, 4
          %s287 = int_to_ptr.hbm [resolvable:$true] %s286
          %s288 = sshll.u32 [#allocation14], 4
          %s289 = int_to_ptr.vmem [resolvable:$true] %s288
          %294 = dma.hbm_to_vmem [thread:$0]  %s287, 512, %s289, [#allocation13], 128, 128, 8
        $region28: #{tpu_custom_call.1} parent=11 // pred_fallthru
          _
        // Predicated region
        $region29: #{tpu_custom_call.1} parent=11 // pred_check
          %p295 = pneg %p156
        $region30: #{tpu_custom_call.1} parent=11 // pred_check_branch
          %297 = sbr.rel (%p295) target = $region32
        $region31: #{tpu_custom_call.1} parent=11 // pred_region
          %299 = vsyncadd [#allocation16], 0
          %s300 = sshll.u32 %s5, 4
          %s301 = int_to_ptr.hbm [resolvable:$true] %s300
          %s302 = sshll.u32 [#allocation15], 4
          %s303 = int_to_ptr.vmem [resolvable:$true] %s302
          %308 = dma.hbm_to_vmem [thread:$0]  %s301, 512, %s303, [#allocation16], 128, 128, 8
        $region32: #{tpu_custom_call.1} parent=11 // pred_fallthru
          _
      $region12: #{tpu_custom_call.1} parent=5 // pred_fallthru
        _
      %p309 = scmp.lt.s32.totalorder %s25, 2
      // Predicated region
      $region33: #{tpu_custom_call.1} parent=5 // pred_check
        %p310 = pneg %p309
      $region34: #{tpu_custom_call.1} parent=5 // pred_check_branch
        %312 = sbr.rel (%p310) target = $region36
      $region35: #{tpu_custom_call.1} parent=5 // pred_region
        // Predicated region
        $region37: #{tpu_custom_call.1} parent=35 // pred_check
          %p313 = pneg %p45
        $region38: #{tpu_custom_call.1} parent=35 // pred_check_branch
          %315 = sbr.rel (%p313) target = $region40
        $region39: #{tpu_custom_call.1} parent=35 // pred_region
          %s316 = sand.u32 %s35, 1
          %s317 = scalar_lea.sflag [#allocation7], %s316
          %s318 = sand.u32 %s35, 1
          %s319 = smul.addr %s318, 256
          %s320 = scalar_lea.vmem [#allocation6], %s319
          %s321 = smul.u32 16, %s25
          %323 = vsyncadd %s317, 0
          %s324 = smul.addr %s321, 2
          %s325 = smul.addr %s324, 8
          %s326 = scalar_lea.hbm %s0, %s325
          %s327 = sshll.u32 %s326, 4
          %s328 = int_to_ptr.hbm [resolvable:$true] %s327
          %s329 = sshll.u32 %s320, 4
          %s330 = int_to_ptr.vmem [resolvable:$true] %s329
          %335 = dma.hbm_to_vmem [thread:$0]  %s328, 4096, %s330, %s317, 128, 128, 8
        $region40: #{tpu_custom_call.1} parent=35 // pred_fallthru
          _
      $region36: #{tpu_custom_call.1} parent=5 // pred_fallthru
        _
      %p336 = scmp.le.s32.totalorder 1, %s25
      %p337 = scmp.lt.s32.totalorder %s25, 3
      %p338 = pnand %p336, %p337
      %p339 = pneg %p338
      // Predicated region
      $region41: #{tpu_custom_call.1} parent=5 // pred_check
        _
      $region42: #{tpu_custom_call.1} parent=5 // pred_check_branch
        %341 = sbr.rel (%p338) target = $region44
      $region43: #{tpu_custom_call.1} parent=5 // pred_region
        %s342 = ssub.s32 %s25, 1
        %s343 = sand.u32 %s38, 1
        %s344 = scalar_lea.sflag [#allocation7], %s343
        %s345 = sand.u32 %s38, 1
        %s346 = smul.addr %s345, 256
        %s347 = scalar_lea.vmem [#allocation6], %s346
        // Predicated region
        $region45: #{tpu_custom_call.1} parent=43 // pred_check
          %p348 = pneg %p51
        $region46: #{tpu_custom_call.1} parent=43 // pred_check_branch
          %350 = sbr.rel (%p348) target = $region48
        $region47: #{tpu_custom_call.1} parent=43 // pred_region
          %352 = dma.done %s344, 4096
        $region48: #{tpu_custom_call.1} parent=43 // pred_fallthru
          _
        // Predicated region
        $region49: #{tpu_custom_call.1} parent=43 // pred_check
          %p353 = pneg %p72
        $region50: #{tpu_custom_call.1} parent=43 // pred_check_branch
          %355 = sbr.rel (%p353) target = $region52
        $region51: #{tpu_custom_call.1} parent=43 // pred_region
          %357 = dma.done [#allocation10], 8192
        $region52: #{tpu_custom_call.1} parent=43 // pred_fallthru
          _
        // Predicated region
        $region53: #{tpu_custom_call.1} parent=43 // pred_check
          %p358 = pneg %p93
        $region54: #{tpu_custom_call.1} parent=43 // pred_check_branch
          %360 = sbr.rel (%p358) target = $region56
        $region55: #{tpu_custom_call.1} parent=43 // pred_region
          %362 = dma.done [#allocation10], 8192
        $region56: #{tpu_custom_call.1} parent=43 // pred_fallthru
          _
        // Predicated region
        $region57: #{tpu_custom_call.1} parent=43 // pred_check
          %p363 = pneg %p114
        $region58: #{tpu_custom_call.1} parent=43 // pred_check_branch
          %365 = sbr.rel (%p363) target = $region60
        $region59: #{tpu_custom_call.1} parent=43 // pred_region
          %367 = dma.done [#allocation13], 128
        $region60: #{tpu_custom_call.1} parent=43 // pred_fallthru
          _
        // Predicated region
        $region61: #{tpu_custom_call.1} parent=43 // pred_check
          %p368 = pneg %p135
        $region62: #{tpu_custom_call.1} parent=43 // pred_check_branch
          %370 = sbr.rel (%p368) target = $region64
        $region63: #{tpu_custom_call.1} parent=43 // pred_region
          %372 = dma.done [#allocation13], 512
        $region64: #{tpu_custom_call.1} parent=43 // pred_fallthru
          _
        // Predicated region
        $region65: #{tpu_custom_call.1} parent=43 // pred_check
          %p373 = pneg %p156
        $region66: #{tpu_custom_call.1} parent=43 // pred_check_branch
          %375 = sbr.rel (%p373) target = $region68
        $region67: #{tpu_custom_call.1} parent=43 // pred_region
          %377 = dma.done [#allocation16], 512
        $region68: #{tpu_custom_call.1} parent=43 // pred_fallthru
          _
        %s378 = sand.u32 %s38, 1
        %s379 = scalar_lea.sflag [#allocation7], %s378
        %s380 = sand.u32 %s38, 1
        %s381 = smul.addr %s380, 256
        %s382 = scalar_lea.vmem [#allocation6], %s381
        %p383 = pneg %p51
        %p384 = pneg %p48
        %p385 = pneg %p72
        %p386 = pneg %p69
        %p387 = pneg %p93
        %p388 = pneg %p90
        %p389 = pneg %p114
        %p390 = pneg %p111
        %p391 = pneg %p135
        %p392 = pneg %p132
        %p393 = pneg %p156
        %p394 = pneg %p153
        %p395 = pneg %p182
        %p396 = pneg %p179
        %s397 = sand.u32 %s169, 1
        %s398 = scalar_lea.sflag [#allocation8], %s397
        %s399 = sand.u32 %s169, 1
        %s400 = smul.addr %s399, 128
        %s401 = scalar_lea.vmem [#allocation17], %s400
        %p402 = pneg %p203
        %p403 = pneg %p200
        %p404 = pneg %p224
        %p405 = pneg %p221
        %s406 = smul.u32 16, %s30
        %s407 = smul.u32 16, %s30
        %p408 = scmp.eq.s32.totalorder %s30, 0
        // Predicated region
        $region69: #{tpu_custom_call.1} parent=43 // pred_check
          %p409 = pneg %p408
        $region70: #{tpu_custom_call.1} parent=43 // pred_check_branch
          %411 = sbr.rel (%p409) target = $region72
        $region71: #{tpu_custom_call.1} parent=43 // pred_region
          %v412 = vld [vmem:[#allocation14] sm:$0xff]
          %v413 = vld [vmem:[#allocation14 + $0x8] sm:$0xff]
          %v414 = vld [vmem:[#allocation14 + $0x10] sm:$0xff]
          %v415 = vld [vmem:[#allocation14 + $0x18] sm:$0xff]
          %416 = vst [vmem:[#allocation2] sm:$0xff] %v412
          %417 = vst [vmem:[#allocation2 + $0x8] sm:$0xff] %v413
          %418 = vst [vmem:[#allocation2 + $0x10] sm:$0xff] %v414
          %419 = vst [vmem:[#allocation2 + $0x18] sm:$0xff] %v415
          %v420 = vld [vmem:[#allocation15] sm:$0xff]
          %v421 = vld [vmem:[#allocation15 + $0x8] sm:$0xff]
          %v422 = vld [vmem:[#allocation15 + $0x10] sm:$0xff]
          %v423 = vld [vmem:[#allocation15 + $0x18] sm:$0xff]
          %424 = vst [vmem:[#allocation3] sm:$0xff] %v420
          %425 = vst [vmem:[#allocation3 + $0x8] sm:$0xff] %v421
          %426 = vst [vmem:[#allocation3 + $0x10] sm:$0xff] %v422
          %427 = vst [vmem:[#allocation3 + $0x18] sm:$0xff] %v423
        $region72: #{tpu_custom_call.1} parent=43 // pred_fallthru
          _
        %v428 = vld [vmem:[%s347] sm:$0xff]
        %v429 = vld [vmem:[%s347 + $0x8] sm:$0xff]
        %v430 = vld [vmem:[%s347 + $0x10] sm:$0xff]
        %v431 = vld [vmem:[%s347 + $0x18] sm:$0xff]
        %v432 = vld [vmem:[%s347 + $0x20] sm:$0xff]
        %v433 = vld [vmem:[%s347 + $0x28] sm:$0xff]
        %v434 = vld [vmem:[%s347 + $0x30] sm:$0xff]
        %v435 = vld [vmem:[%s347 + $0x38] sm:$0xff]
        %v436 = vld [vmem:[%s347 + $0x40] sm:$0xff]
        %v437 = vld [vmem:[%s347 + $0x48] sm:$0xff]
        %v438 = vld [vmem:[%s347 + $0x50] sm:$0xff]
        %v439 = vld [vmem:[%s347 + $0x58] sm:$0xff]
        %v440 = vld [vmem:[%s347 + $0x60] sm:$0xff]
        %v441 = vld [vmem:[%s347 + $0x68] sm:$0xff]
        %v442 = vld [vmem:[%s347 + $0x70] sm:$0xff]
        %v443 = vld [vmem:[%s347 + $0x78] sm:$0xff]
        %v444 = vld [vmem:[%s347 + $0x80] sm:$0xff]
        %v445 = vld [vmem:[%s347 + $0x88] sm:$0xff]
        %v446 = vld [vmem:[%s347 + $0x90] sm:$0xff]
        %v447 = vld [vmem:[%s347 + $0x98] sm:$0xff]
        %v448 = vld [vmem:[%s347 + $0xa0] sm:$0xff]
        %v449 = vld [vmem:[%s347 + $0xa8] sm:$0xff]
        %v450 = vld [vmem:[%s347 + $0xb0] sm:$0xff]
        %v451 = vld [vmem:[%s347 + $0xb8] sm:$0xff]
        %v452 = vld [vmem:[%s347 + $0xc0] sm:$0xff]
        %v453 = vld [vmem:[%s347 + $0xc8] sm:$0xff]
        %v454 = vld [vmem:[%s347 + $0xd0] sm:$0xff]
        %v455 = vld [vmem:[%s347 + $0xd8] sm:$0xff]
        %v456 = vld [vmem:[%s347 + $0xe0] sm:$0xff]
        %v457 = vld [vmem:[%s347 + $0xe8] sm:$0xff]
        %v458 = vld [vmem:[%s347 + $0xf0] sm:$0xff]
        %v459 = vld [vmem:[%s347 + $0xf8] sm:$0xff]
        %v460 = vpack.c.bf16 %v429, %v428
        %v461 = vpack.c.bf16 %v431, %v430
        %v462 = vpack.c.bf16 %v433, %v432
        %v463 = vpack.c.bf16 %v435, %v434
        %v464 = vpack.c.bf16 %v437, %v436
        %v465 = vpack.c.bf16 %v439, %v438
        %v466 = vpack.c.bf16 %v441, %v440
        %v467 = vpack.c.bf16 %v443, %v442
        %v468 = vpack.c.bf16 %v445, %v444
        %v469 = vpack.c.bf16 %v447, %v446
        %v470 = vpack.c.bf16 %v449, %v448
        %v471 = vpack.c.bf16 %v451, %v450
        %v472 = vpack.c.bf16 %v453, %v452
        %v473 = vpack.c.bf16 %v455, %v454
        %v474 = vpack.c.bf16 %v457, %v456
        %v475 = vpack.c.bf16 %v459, %v458
        %v476 = vld [vmem:[#allocation9] sm:$0xff]
        %v477 = vld [vmem:[#allocation9 + $0x8] sm:$0xff]
        %v478 = vld [vmem:[#allocation9 + $0x10] sm:$0xff]
        %v479 = vld [vmem:[#allocation9 + $0x18] sm:$0xff]
        %v480 = vld [vmem:[#allocation9 + $0x20] sm:$0xff]
        %v481 = vld [vmem:[#allocation9 + $0x28] sm:$0xff]
        %v482 = vld [vmem:[#allocation9 + $0x30] sm:$0xff]
        %v483 = vld [vmem:[#allocation9 + $0x38] sm:$0xff]
        %v484 = vld [vmem:[#allocation9 + $0x40] sm:$0xff]
        %v485 = vld [vmem:[#allocation9 + $0x48] sm:$0xff]
        %v486 = vld [vmem:[#allocation9 + $0x50] sm:$0xff]
        %v487 = vld [vmem:[#allocation9 + $0x58] sm:$0xff]
        %v488 = vld [vmem:[#allocation9 + $0x60] sm:$0xff]
        %v489 = vld [vmem:[#allocation9 + $0x68] sm:$0xff]
        %v490 = vld [vmem:[#allocation9 + $0x70] sm:$0xff]
        %v491 = vld [vmem:[#allocation9 + $0x78] sm:$0xff]
        %v492 = vld [vmem:[#allocation9 + $0x80] sm:$0xff]
        %v493 = vld [vmem:[#allocation9 + $0x88] sm:$0xff]
        %v494 = vld [vmem:[#allocation9 + $0x90] sm:$0xff]
        %v495 = vld [vmem:[#allocation9 + $0x98] sm:$0xff]
        %v496 = vld [vmem:[#allocation9 + $0xa0] sm:$0xff]
        %v497 = vld [vmem:[#allocation9 + $0xa8] sm:$0xff]
        %v498 = vld [vmem:[#allocation9 + $0xb0] sm:$0xff]
        %v499 = vld [vmem:[#allocation9 + $0xb8] sm:$0xff]
        %v500 = vld [vmem:[#allocation9 + $0xc0] sm:$0xff]
        %v501 = vld [vmem:[#allocation9 + $0xc8] sm:$0xff]
        %v502 = vld [vmem:[#allocation9 + $0xd0] sm:$0xff]
        %v503 = vld [vmem:[#allocation9 + $0xd8] sm:$0xff]
        %v504 = vld [vmem:[#allocation9 + $0xe0] sm:$0xff]
        %v505 = vld [vmem:[#allocation9 + $0xe8] sm:$0xff]
        %v506 = vld [vmem:[#allocation9 + $0xf0] sm:$0xff]
        %v507 = vld [vmem:[#allocation9 + $0xf8] sm:$0xff]
        %v508 = vld [vmem:[#allocation12] sm:$0xf]
        %v510 = vperm.slane %v508, 0
        %v511 = vperm.slane %v508, 1
        %v512 = vperm.slane %v508, 2
        %v513 = vperm.slane %v508, 3
        %v550 = vunpack.c.l.b16 %v476
        %v551 = vunpack.c.h.b16 %v476
        %v552 = vunpack.c.l.b16 %v477
        %v553 = vunpack.c.h.b16 %v477
        %v554 = vunpack.c.l.b16 %v478
        %v555 = vunpack.c.h.b16 %v478
        %v556 = vunpack.c.l.b16 %v479
        %v557 = vunpack.c.h.b16 %v479
        %v558 = vunpack.c.l.b16 %v480
        %v559 = vunpack.c.h.b16 %v480
        %v560 = vunpack.c.l.b16 %v481
        %v561 = vunpack.c.h.b16 %v481
        %v562 = vunpack.c.l.b16 %v482
        %v563 = vunpack.c.h.b16 %v482
        %v564 = vunpack.c.l.b16 %v483
        %v565 = vunpack.c.h.b16 %v483
        %v566 = vunpack.c.l.b16 %v484
        %v567 = vunpack.c.h.b16 %v484
        %v568 = vunpack.c.l.b16 %v485
        %v569 = vunpack.c.h.b16 %v485
        %v570 = vunpack.c.l.b16 %v486
        %v571 = vunpack.c.h.b16 %v486
        %v572 = vunpack.c.l.b16 %v487
        %v573 = vunpack.c.h.b16 %v487
        %v574 = vunpack.c.l.b16 %v488
        %v575 = vunpack.c.h.b16 %v488
        %v576 = vunpack.c.l.b16 %v489
        %v577 = vunpack.c.h.b16 %v489
        %v578 = vunpack.c.l.b16 %v490
        %v579 = vunpack.c.h.b16 %v490
        %v580 = vunpack.c.l.b16 %v491
        %v581 = vunpack.c.h.b16 %v491
        %v582 = vunpack.c.l.b16 %v492
        %v583 = vunpack.c.h.b16 %v492
        %v584 = vunpack.c.l.b16 %v493
        %v585 = vunpack.c.h.b16 %v493
        %v586 = vunpack.c.l.b16 %v494
        %v587 = vunpack.c.h.b16 %v494
        %v588 = vunpack.c.l.b16 %v495
        %v589 = vunpack.c.h.b16 %v495
        %v590 = vunpack.c.l.b16 %v496
        %v591 = vunpack.c.h.b16 %v496
        %v592 = vunpack.c.l.b16 %v497
        %v593 = vunpack.c.h.b16 %v497
        %v594 = vunpack.c.l.b16 %v498
        %v595 = vunpack.c.h.b16 %v498
        %v596 = vunpack.c.l.b16 %v499
        %v597 = vunpack.c.h.b16 %v499
        %v598 = vunpack.c.l.b16 %v500
        %v599 = vunpack.c.h.b16 %v500
        %v600 = vunpack.c.l.b16 %v501
        %v601 = vunpack.c.h.b16 %v501
        %v602 = vunpack.c.l.b16 %v502
        %v603 = vunpack.c.h.b16 %v502
        %v604 = vunpack.c.l.b16 %v503
        %v605 = vunpack.c.h.b16 %v503
        %v606 = vunpack.c.l.b16 %v504
        %v607 = vunpack.c.h.b16 %v504
        %v608 = vunpack.c.l.b16 %v505
        %v609 = vunpack.c.h.b16 %v505
        %v610 = vunpack.c.l.b16 %v506
        %v611 = vunpack.c.h.b16 %v506
        %v612 = vunpack.c.l.b16 %v507
        %v613 = vunpack.c.h.b16 %v507
        %v614 = vpack.c.b16 %v554, %v550
        %v615 = vpack.c.b16 %v555, %v551
        %v616 = vpack.c.b16 %v556, %v552
        %v617 = vpack.c.b16 %v557, %v553
        %v618 = vpack.c.b16 %v562, %v558
        %v619 = vpack.c.b16 %v563, %v559
        %v620 = vpack.c.b16 %v564, %v560
        %v621 = vpack.c.b16 %v565, %v561
        %v622 = vpack.c.b16 %v570, %v566
        %v623 = vpack.c.b16 %v571, %v567
        %v624 = vpack.c.b16 %v572, %v568
        %v625 = vpack.c.b16 %v573, %v569
        %v626 = vpack.c.b16 %v578, %v574
        %v627 = vpack.c.b16 %v579, %v575
        %v628 = vpack.c.b16 %v580, %v576
        %v629 = vpack.c.b16 %v581, %v577
        %v630 = vpack.c.b16 %v586, %v582
        %v631 = vpack.c.b16 %v587, %v583
        %v632 = vpack.c.b16 %v588, %v584
        %v633 = vpack.c.b16 %v589, %v585
        %v634 = vpack.c.b16 %v594, %v590
        %v635 = vpack.c.b16 %v595, %v591
        %v636 = vpack.c.b16 %v596, %v592
        %v637 = vpack.c.b16 %v597, %v593
        %v638 = vpack.c.b16 %v602, %v598
        %v639 = vpack.c.b16 %v603, %v599
        %v640 = vpack.c.b16 %v604, %v600
        %v641 = vpack.c.b16 %v605, %v601
        %v642 = vpack.c.b16 %v610, %v606
        %v643 = vpack.c.b16 %v611, %v607
        %v644 = vpack.c.b16 %v612, %v608
        %v645 = vpack.c.b16 %v613, %v609
        %678 = vmatpush.bf16.msra.mxu0 %v642
        %679 = vmatpush.bf16.msra.mxu0 %v638
        %680 = vmatpush.bf16.msra.mxu0 %v634
        %681 = vmatpush.bf16.msra.mxu0 %v630
        %682 = vmatpush.bf16.msra.mxu0 %v626
        %683 = vmatpush.bf16.msra.mxu0 %v622
        %684 = vmatpush.bf16.msra.mxu0 %v618
        %685 = vmatpush.bf16.msra.mxu0 %v614
        %686 = vmatmul.bf16.gmra.mxu0 %v460
        %v687 = vpop.f32.mrf.mxu0
        %v688 = vadd.f32 %v510, %v687
        %v689 = vpop.f32.mrf.mxu0
        %v690 = vadd.f32 %v510, %v689
        %691 = vmatmul.bf16.gmra.mxu0 %v461
        %v692 = vpop.f32.mrf.mxu0
        %v693 = vadd.f32 %v510, %v692
        %v694 = vpop.f32.mrf.mxu0
        %v695 = vadd.f32 %v510, %v694
        %696 = vmatmul.bf16.gmra.mxu0 %v462
        %v697 = vpop.f32.mrf.mxu0
        %v698 = vadd.f32 %v510, %v697
        %v699 = vpop.f32.mrf.mxu0
        %v700 = vadd.f32 %v510, %v699
        %701 = vmatmul.bf16.gmra.mxu0 %v463
        %v702 = vpop.f32.mrf.mxu0
        %v703 = vadd.f32 %v510, %v702
        %v704 = vpop.f32.mrf.mxu0
        %v705 = vadd.f32 %v510, %v704
        %706 = vmatmul.bf16.gmra.mxu0 %v464
        %v707 = vpop.f32.mrf.mxu0
        %v708 = vadd.f32 %v510, %v707
        %v709 = vpop.f32.mrf.mxu0
        %v710 = vadd.f32 %v510, %v709
        %711 = vmatmul.bf16.gmra.mxu0 %v465
        %v712 = vpop.f32.mrf.mxu0
        %v713 = vadd.f32 %v510, %v712
        %v714 = vpop.f32.mrf.mxu0
        %v715 = vadd.f32 %v510, %v714
        %716 = vmatmul.bf16.gmra.mxu0 %v466
        %v717 = vpop.f32.mrf.mxu0
        %v718 = vadd.f32 %v510, %v717
        %v719 = vpop.f32.mrf.mxu0
        %v720 = vadd.f32 %v510, %v719
        %721 = vmatmul.bf16.gmra.mxu0 %v467
        %v722 = vpop.f32.mrf.mxu0
        %v723 = vadd.f32 %v510, %v722
        %v724 = vpop.f32.mrf.mxu0
        %v725 = vadd.f32 %v510, %v724
        %726 = vmatmul.bf16.gmra.mxu0 %v468
        %v727 = vpop.f32.mrf.mxu0
        %v728 = vadd.f32 %v510, %v727
        %v729 = vpop.f32.mrf.mxu0
        %v730 = vadd.f32 %v510, %v729
        %731 = vmatmul.bf16.gmra.mxu0 %v469
        %v732 = vpop.f32.mrf.mxu0
        %v733 = vadd.f32 %v510, %v732
        %v734 = vpop.f32.mrf.mxu0
        %v735 = vadd.f32 %v510, %v734
        %736 = vmatmul.bf16.gmra.mxu0 %v470
        %v737 = vpop.f32.mrf.mxu0
        %v738 = vadd.f32 %v510, %v737
        %v739 = vpop.f32.mrf.mxu0
        %v740 = vadd.f32 %v510, %v739
        %741 = vmatmul.bf16.gmra.mxu0 %v471
        %v742 = vpop.f32.mrf.mxu0
        %v743 = vadd.f32 %v510, %v742
        %v744 = vpop.f32.mrf.mxu0
        %v745 = vadd.f32 %v510, %v744
        %746 = vmatmul.bf16.gmra.mxu0 %v472
        %v747 = vpop.f32.mrf.mxu0
        %v748 = vadd.f32 %v510, %v747
        %v749 = vpop.f32.mrf.mxu0
        %v750 = vadd.f32 %v510, %v749
        %751 = vmatmul.bf16.gmra.mxu0 %v473
        %v752 = vpop.f32.mrf.mxu0
        %v753 = vadd.f32 %v510, %v752
        %v754 = vpop.f32.mrf.mxu0
        %v755 = vadd.f32 %v510, %v754
        %756 = vmatmul.bf16.gmra.mxu0 %v474
        %v757 = vpop.f32.mrf.mxu0
        %v758 = vadd.f32 %v510, %v757
        %v759 = vpop.f32.mrf.mxu0
        %v760 = vadd.f32 %v510, %v759
        %761 = vmatmul.bf16.gmra.mxu0 %v475
        %v762 = vpop.f32.mrf.mxu0
        %v763 = vadd.f32 %v510, %v762
        %v764 = vpop.f32.mrf.mxu0
        %v765 = vadd.f32 %v510, %v764
        %766 = vdwg.mxu0
        %767 = vmatpush.bf16.msra.mxu0 %v643
        %768 = vmatpush.bf16.msra.mxu0 %v639
        %769 = vmatpush.bf16.msra.mxu0 %v635
        %770 = vmatpush.bf16.msra.mxu0 %v631
        %771 = vmatpush.bf16.msra.mxu0 %v627
        %772 = vmatpush.bf16.msra.mxu0 %v623
        %773 = vmatpush.bf16.msra.mxu0 %v619
        %774 = vmatpush.bf16.msra.mxu0 %v615
        %775 = vmatmul.bf16.gmra.mxu0 %v460
        %v776 = vpop.f32.mrf.mxu0
        %v777 = vadd.f32 %v511, %v776
        %v778 = vpop.f32.mrf.mxu0
        %v779 = vadd.f32 %v511, %v778
        %780 = vmatmul.bf16.gmra.mxu0 %v461
        %v781 = vpop.f32.mrf.mxu0
        %v782 = vadd.f32 %v511, %v781
        %v783 = vpop.f32.mrf.mxu0
        %v784 = vadd.f32 %v511, %v783
        %785 = vmatmul.bf16.gmra.mxu0 %v462
        %v786 = vpop.f32.mrf.mxu0
        %v787 = vadd.f32 %v511, %v786
        %v788 = vpop.f32.mrf.mxu0
        %v789 = vadd.f32 %v511, %v788
        %790 = vmatmul.bf16.gmra.mxu0 %v463
        %v791 = vpop.f32.mrf.mxu0
        %v792 = vadd.f32 %v511, %v791
        %v793 = vpop.f32.mrf.mxu0
        %v794 = vadd.f32 %v511, %v793
        %795 = vmatmul.bf16.gmra.mxu0 %v464
        %v796 = vpop.f32.mrf.mxu0
        %v797 = vadd.f32 %v511, %v796
        %v798 = vpop.f32.mrf.mxu0
        %v799 = vadd.f32 %v511, %v798
        %800 = vmatmul.bf16.gmra.mxu0 %v465
        %v801 = vpop.f32.mrf.mxu0
        %v802 = vadd.f32 %v511, %v801
        %v803 = vpop.f32.mrf.mxu0
        %v804 = vadd.f32 %v511, %v803
        %805 = vmatmul.bf16.gmra.mxu0 %v466
        %v806 = vpop.f32.mrf.mxu0
        %v807 = vadd.f32 %v511, %v806
        %v808 = vpop.f32.mrf.mxu0
        %v809 = vadd.f32 %v511, %v808
        %810 = vmatmul.bf16.gmra.mxu0 %v467
        %v811 = vpop.f32.mrf.mxu0
        %v812 = vadd.f32 %v511, %v811
        %v813 = vpop.f32.mrf.mxu0
        %v814 = vadd.f32 %v511, %v813
        %815 = vmatmul.bf16.gmra.mxu0 %v468
        %v816 = vpop.f32.mrf.mxu0
        %v817 = vadd.f32 %v511, %v816
        %v818 = vpop.f32.mrf.mxu0
        %v819 = vadd.f32 %v511, %v818
        %820 = vmatmul.bf16.gmra.mxu0 %v469
        %v821 = vpop.f32.mrf.mxu0
        %v822 = vadd.f32 %v511, %v821
        %v823 = vpop.f32.mrf.mxu0
        %v824 = vadd.f32 %v511, %v823
        %825 = vmatmul.bf16.gmra.mxu0 %v470
        %v826 = vpop.f32.mrf.mxu0
        %v827 = vadd.f32 %v511, %v826
        %v828 = vpop.f32.mrf.mxu0
        %v829 = vadd.f32 %v511, %v828
        %830 = vmatmul.bf16.gmra.mxu0 %v471
        %v831 = vpop.f32.mrf.mxu0
        %v832 = vadd.f32 %v511, %v831
        %v833 = vpop.f32.mrf.mxu0
        %v834 = vadd.f32 %v511, %v833
        %835 = vmatmul.bf16.gmra.mxu0 %v472
        %v836 = vpop.f32.mrf.mxu0
        %v837 = vadd.f32 %v511, %v836
        %v838 = vpop.f32.mrf.mxu0
        %v839 = vadd.f32 %v511, %v838
        %840 = vmatmul.bf16.gmra.mxu0 %v473
        %v841 = vpop.f32.mrf.mxu0
        %v842 = vadd.f32 %v511, %v841
        %v843 = vpop.f32.mrf.mxu0
        %v844 = vadd.f32 %v511, %v843
        %845 = vmatmul.bf16.gmra.mxu0 %v474
        %v846 = vpop.f32.mrf.mxu0
        %v847 = vadd.f32 %v511, %v846
        %v848 = vpop.f32.mrf.mxu0
        %v849 = vadd.f32 %v511, %v848
        %850 = vmatmul.bf16.gmra.mxu0 %v475
        %v851 = vpop.f32.mrf.mxu0
        %v852 = vadd.f32 %v511, %v851
        %v853 = vpop.f32.mrf.mxu0
        %v854 = vadd.f32 %v511, %v853
        %855 = vdwg.mxu0
        %856 = vmatpush.bf16.msra.mxu0 %v644
        %857 = vmatpush.bf16.msra.mxu0 %v640
        %858 = vmatpush.bf16.msra.mxu0 %v636
        %859 = vmatpush.bf16.msra.mxu0 %v632
        %860 = vmatpush.bf16.msra.mxu0 %v628
        %861 = vmatpush.bf16.msra.mxu0 %v624
        %862 = vmatpush.bf16.msra.mxu0 %v620
        %863 = vmatpush.bf16.msra.mxu0 %v616
        %864 = vmatmul.bf16.gmra.mxu0 %v460
        %v865 = vpop.f32.mrf.mxu0
        %v866 = vadd.f32 %v512, %v865
        %v867 = vpop.f32.mrf.mxu0
        %v868 = vadd.f32 %v512, %v867
        %869 = vmatmul.bf16.gmra.mxu0 %v461
        %v870 = vpop.f32.mrf.mxu0
        %v871 = vadd.f32 %v512, %v870
        %v872 = vpop.f32.mrf.mxu0
        %v873 = vadd.f32 %v512, %v872
        %874 = vmatmul.bf16.gmra.mxu0 %v462
        %v875 = vpop.f32.mrf.mxu0
        %v876 = vadd.f32 %v512, %v875
        %v877 = vpop.f32.mrf.mxu0
        %v878 = vadd.f32 %v512, %v877
        %879 = vmatmul.bf16.gmra.mxu0 %v463
        %v880 = vpop.f32.mrf.mxu0
        %v881 = vadd.f32 %v512, %v880
        %v882 = vpop.f32.mrf.mxu0
        %v883 = vadd.f32 %v512, %v882
        %884 = vmatmul.bf16.gmra.mxu0 %v464
        %v885 = vpop.f32.mrf.mxu0
        %v886 = vadd.f32 %v512, %v885
        %v887 = vpop.f32.mrf.mxu0
        %v888 = vadd.f32 %v512, %v887
        %889 = vmatmul.bf16.gmra.mxu0 %v465
        %v890 = vpop.f32.mrf.mxu0
        %v891 = vadd.f32 %v512, %v890
        %v892 = vpop.f32.mrf.mxu0
        %v893 = vadd.f32 %v512, %v892
        %894 = vmatmul.bf16.gmra.mxu0 %v466
        %v895 = vpop.f32.mrf.mxu0
        %v896 = vadd.f32 %v512, %v895
        %v897 = vpop.f32.mrf.mxu0
        %v898 = vadd.f32 %v512, %v897
        %899 = vmatmul.bf16.gmra.mxu0 %v467
        %v900 = vpop.f32.mrf.mxu0
        %v901 = vadd.f32 %v512, %v900
        %v902 = vpop.f32.mrf.mxu0
        %v903 = vadd.f32 %v512, %v902
        %904 = vmatmul.bf16.gmra.mxu0 %v468
        %v905 = vpop.f32.mrf.mxu0
        %v906 = vadd.f32 %v512, %v905
        %v907 = vpop.f32.mrf.mxu0
        %v908 = vadd.f32 %v512, %v907
        %909 = vmatmul.bf16.gmra.mxu0 %v469
        %v910 = vpop.f32.mrf.mxu0
        %v911 = vadd.f32 %v512, %v910
        %v912 = vpop.f32.mrf.mxu0
        %v913 = vadd.f32 %v512, %v912
        %914 = vmatmul.bf16.gmra.mxu0 %v470
        %v915 = vpop.f32.mrf.mxu0
        %v916 = vadd.f32 %v512, %v915
        %v917 = vpop.f32.mrf.mxu0
        %v918 = vadd.f32 %v512, %v917
        %919 = vmatmul.bf16.gmra.mxu0 %v471
        %v920 = vpop.f32.mrf.mxu0
        %v921 = vadd.f32 %v512, %v920
        %v922 = vpop.f32.mrf.mxu0
        %v923 = vadd.f32 %v512, %v922
        %924 = vmatmul.bf16.gmra.mxu0 %v472
        %v925 = vpop.f32.mrf.mxu0
        %v926 = vadd.f32 %v512, %v925
        %v927 = vpop.f32.mrf.mxu0
        %v928 = vadd.f32 %v512, %v927
        %929 = vmatmul.bf16.gmra.mxu0 %v473
        %v930 = vpop.f32.mrf.mxu0
        %v931 = vadd.f32 %v512, %v930
        %v932 = vpop.f32.mrf.mxu0
        %v933 = vadd.f32 %v512, %v932
        %934 = vmatmul.bf16.gmra.mxu0 %v474
        %v935 = vpop.f32.mrf.mxu0
        %v936 = vadd.f32 %v512, %v935
        %v937 = vpop.f32.mrf.mxu0
        %v938 = vadd.f32 %v512, %v937
        %939 = vmatmul.bf16.gmra.mxu0 %v475
        %v940 = vpop.f32.mrf.mxu0
        %v941 = vadd.f32 %v512, %v940
        %v942 = vpop.f32.mrf.mxu0
        %v943 = vadd.f32 %v512, %v942
        %944 = vdwg.mxu0
        %945 = vmatpush.bf16.msra.mxu0 %v645
        %946 = vmatpush.bf16.msra.mxu0 %v641
        %947 = vmatpush.bf16.msra.mxu0 %v637
        %948 = vmatpush.bf16.msra.mxu0 %v633
        %949 = vmatpush.bf16.msra.mxu0 %v629
        %950 = vmatpush.bf16.msra.mxu0 %v625
        %951 = vmatpush.bf16.msra.mxu0 %v621
        %952 = vmatpush.bf16.msra.mxu0 %v617
        %953 = vmatmul.bf16.gmra.mxu0 %v460
        %v954 = vpop.f32.mrf.mxu0
        %v955 = vadd.f32 %v513, %v954
        %v956 = vpop.f32.mrf.mxu0
        %v957 = vadd.f32 %v513, %v956
        %958 = vmatmul.bf16.gmra.mxu0 %v461
        %v959 = vpop.f32.mrf.mxu0
        %v960 = vadd.f32 %v513, %v959
        %v961 = vpop.f32.mrf.mxu0
        %v962 = vadd.f32 %v513, %v961
        %963 = vmatmul.bf16.gmra.mxu0 %v462
        %v964 = vpop.f32.mrf.mxu0
        %v965 = vadd.f32 %v513, %v964
        %v966 = vpop.f32.mrf.mxu0
        %v967 = vadd.f32 %v513, %v966
        %968 = vmatmul.bf16.gmra.mxu0 %v463
        %v969 = vpop.f32.mrf.mxu0
        %v970 = vadd.f32 %v513, %v969
        %v971 = vpop.f32.mrf.mxu0
        %v972 = vadd.f32 %v513, %v971
        %973 = vmatmul.bf16.gmra.mxu0 %v464
        %v974 = vpop.f32.mrf.mxu0
        %v975 = vadd.f32 %v513, %v974
        %v976 = vpop.f32.mrf.mxu0
        %v977 = vadd.f32 %v513, %v976
        %978 = vmatmul.bf16.gmra.mxu0 %v465
        %v979 = vpop.f32.mrf.mxu0
        %v980 = vadd.f32 %v513, %v979
        %v981 = vpop.f32.mrf.mxu0
        %v982 = vadd.f32 %v513, %v981
        %983 = vmatmul.bf16.gmra.mxu0 %v466
        %v984 = vpop.f32.mrf.mxu0
        %v985 = vadd.f32 %v513, %v984
        %v986 = vpop.f32.mrf.mxu0
        %v987 = vadd.f32 %v513, %v986
        %988 = vmatmul.bf16.gmra.mxu0 %v467
        %v989 = vpop.f32.mrf.mxu0
        %v990 = vadd.f32 %v513, %v989
        %v991 = vpop.f32.mrf.mxu0
        %v992 = vadd.f32 %v513, %v991
        %993 = vmatmul.bf16.gmra.mxu0 %v468
        %v994 = vpop.f32.mrf.mxu0
        %v995 = vadd.f32 %v513, %v994
        %v996 = vpop.f32.mrf.mxu0
        %v997 = vadd.f32 %v513, %v996
        %998 = vmatmul.bf16.gmra.mxu0 %v469
        %v999 = vpop.f32.mrf.mxu0
        %v1000 = vadd.f32 %v513, %v999
        %v1001 = vpop.f32.mrf.mxu0
        %v1002 = vadd.f32 %v513, %v1001
        %1003 = vmatmul.bf16.gmra.mxu0 %v470
        %v1004 = vpop.f32.mrf.mxu0
        %v1005 = vadd.f32 %v513, %v1004
        %v1006 = vpop.f32.mrf.mxu0
        %v1007 = vadd.f32 %v513, %v1006
        %1008 = vmatmul.bf16.gmra.mxu0 %v471
        %v1009 = vpop.f32.mrf.mxu0
        %v1010 = vadd.f32 %v513, %v1009
        %v1011 = vpop.f32.mrf.mxu0
        %v1012 = vadd.f32 %v513, %v1011
        %1013 = vmatmul.bf16.gmra.mxu0 %v472
        %v1014 = vpop.f32.mrf.mxu0
        %v1015 = vadd.f32 %v513, %v1014
        %v1016 = vpop.f32.mrf.mxu0
        %v1017 = vadd.f32 %v513, %v1016
        %1018 = vmatmul.bf16.gmra.mxu0 %v473
        %v1019 = vpop.f32.mrf.mxu0
        %v1020 = vadd.f32 %v513, %v1019
        %v1021 = vpop.f32.mrf.mxu0
        %v1022 = vadd.f32 %v513, %v1021
        %1023 = vmatmul.bf16.gmra.mxu0 %v474
        %v1024 = vpop.f32.mrf.mxu0
        %v1025 = vadd.f32 %v513, %v1024
        %v1026 = vpop.f32.mrf.mxu0
        %v1027 = vadd.f32 %v513, %v1026
        %1028 = vmatmul.bf16.gmra.mxu0 %v475
        %v1029 = vpop.f32.mrf.mxu0
        %v1030 = vadd.f32 %v513, %v1029
        %v1031 = vpop.f32.mrf.mxu0
        %v1032 = vadd.f32 %v513, %v1031
        %1033 = vdwg.mxu0
        %1034 = vst [vmem:[#allocation5] sm:$0xff] %v688
        %1035 = vst [vmem:[#allocation5 + $0x8] sm:$0xff] %v777
        %1036 = vst [vmem:[#allocation5 + $0x10] sm:$0xff] %v866
        %1037 = vst [vmem:[#allocation5 + $0x18] sm:$0xff] %v955
        %1038 = vst [vmem:[#allocation5 + $0x20] sm:$0xff] %v690
        %1039 = vst [vmem:[#allocation5 + $0x28] sm:$0xff] %v779
        %1040 = vst [vmem:[#allocation5 + $0x30] sm:$0xff] %v868
        %1041 = vst [vmem:[#allocation5 + $0x38] sm:$0xff] %v957
        %1042 = vst [vmem:[#allocation5 + $0x40] sm:$0xff] %v693
        %1043 = vst [vmem:[#allocation5 + $0x48] sm:$0xff] %v782
        %1044 = vst [vmem:[#allocation5 + $0x50] sm:$0xff] %v871
        %1045 = vst [vmem:[#allocation5 + $0x58] sm:$0xff] %v960
        %1046 = vst [vmem:[#allocation5 + $0x60] sm:$0xff] %v695
        %1047 = vst [vmem:[#allocation5 + $0x68] sm:$0xff] %v784
        %1048 = vst [vmem:[#allocation5 + $0x70] sm:$0xff] %v873
        %1049 = vst [vmem:[#allocation5 + $0x78] sm:$0xff] %v962
        %1050 = vst [vmem:[#allocation5 + $0x80] sm:$0xff] %v698
        %1051 = vst [vmem:[#allocation5 + $0x88] sm:$0xff] %v787
        %1052 = vst [vmem:[#allocation5 + $0x90] sm:$0xff] %v876
        %1053 = vst [vmem:[#allocation5 + $0x98] sm:$0xff] %v965
        %1054 = vst [vmem:[#allocation5 + $0xa0] sm:$0xff] %v700
        %1055 = vst [vmem:[#allocation5 + $0xa8] sm:$0xff] %v789
        %1056 = vst [vmem:[#allocation5 + $0xb0] sm:$0xff] %v878
        %1057 = vst [vmem:[#allocation5 + $0xb8] sm:$0xff] %v967
        %1058 = vst [vmem:[#allocation5 + $0xc0] sm:$0xff] %v703
        %1059 = vst [vmem:[#allocation5 + $0xc8] sm:$0xff] %v792
        %1060 = vst [vmem:[#allocation5 + $0xd0] sm:$0xff] %v881
        %1061 = vst [vmem:[#allocation5 + $0xd8] sm:$0xff] %v970
        %1062 = vst [vmem:[#allocation5 + $0xe0] sm:$0xff] %v705
        %1063 = vst [vmem:[#allocation5 + $0xe8] sm:$0xff] %v794
        %1064 = vst [vmem:[#allocation5 + $0xf0] sm:$0xff] %v883
        %1065 = vst [vmem:[#allocation5 + $0xf8] sm:$0xff] %v972
        %1066 = vst [vmem:[#allocation5 + $0x100] sm:$0xff] %v708
        %1067 = vst [vmem:[#allocation5 + $0x108] sm:$0xff] %v797
        %1068 = vst [vmem:[#allocation5 + $0x110] sm:$0xff] %v886
        %1069 = vst [vmem:[#allocation5 + $0x118] sm:$0xff] %v975
        %1070 = vst [vmem:[#allocation5 + $0x120] sm:$0xff] %v710
        %1071 = vst [vmem:[#allocation5 + $0x128] sm:$0xff] %v799
        %1072 = vst [vmem:[#allocation5 + $0x130] sm:$0xff] %v888
        %1073 = vst [vmem:[#allocation5 + $0x138] sm:$0xff] %v977
        %1074 = vst [vmem:[#allocation5 + $0x140] sm:$0xff] %v713
        %1075 = vst [vmem:[#allocation5 + $0x148] sm:$0xff] %v802
        %1076 = vst [vmem:[#allocation5 + $0x150] sm:$0xff] %v891
        %1077 = vst [vmem:[#allocation5 + $0x158] sm:$0xff] %v980
        %1078 = vst [vmem:[#allocation5 + $0x160] sm:$0xff] %v715
        %1079 = vst [vmem:[#allocation5 + $0x168] sm:$0xff] %v804
        %1080 = vst [vmem:[#allocation5 + $0x170] sm:$0xff] %v893
        %1081 = vst [vmem:[#allocation5 + $0x178] sm:$0xff] %v982
        %1082 = vst [vmem:[#allocation5 + $0x180] sm:$0xff] %v718
        %1083 = vst [vmem:[#allocation5 + $0x188] sm:$0xff] %v807
        %1084 = vst [vmem:[#allocation5 + $0x190] sm:$0xff] %v896
        %1085 = vst [vmem:[#allocation5 + $0x198] sm:$0xff] %v985
        %1086 = vst [vmem:[#allocation5 + $0x1a0] sm:$0xff] %v720
        %1087 = vst [vmem:[#allocation5 + $0x1a8] sm:$0xff] %v809
        %1088 = vst [vmem:[#allocation5 + $0x1b0] sm:$0xff] %v898
        %1089 = vst [vmem:[#allocation5 + $0x1b8] sm:$0xff] %v987
        %1090 = vst [vmem:[#allocation5 + $0x1c0] sm:$0xff] %v723
        %1091 = vst [vmem:[#allocation5 + $0x1c8] sm:$0xff] %v812
        %1092 = vst [vmem:[#allocation5 + $0x1d0] sm:$0xff] %v901
        %1093 = vst [vmem:[#allocation5 + $0x1d8] sm:$0xff] %v990
        %1094 = vst [vmem:[#allocation5 + $0x1e0] sm:$0xff] %v725
        %1095 = vst [vmem:[#allocation5 + $0x1e8] sm:$0xff] %v814
        %1096 = vst [vmem:[#allocation5 + $0x1f0] sm:$0xff] %v903
        %1097 = vst [vmem:[#allocation5 + $0x1f8] sm:$0xff] %v992
        %1098 = vst [vmem:[#allocation5 + $0x200] sm:$0xff] %v728
        %1099 = vst [vmem:[#allocation5 + $0x208] sm:$0xff] %v817
        %1100 = vst [vmem:[#allocation5 + $0x210] sm:$0xff] %v906
        %1101 = vst [vmem:[#allocation5 + $0x218] sm:$0xff] %v995
        %1102 = vst [vmem:[#allocation5 + $0x220] sm:$0xff] %v730
        %1103 = vst [vmem:[#allocation5 + $0x228] sm:$0xff] %v819
        %1104 = vst [vmem:[#allocation5 + $0x230] sm:$0xff] %v908
        %1105 = vst [vmem:[#allocation5 + $0x238] sm:$0xff] %v997
        %1106 = vst [vmem:[#allocation5 + $0x240] sm:$0xff] %v733
        %1107 = vst [vmem:[#allocation5 + $0x248] sm:$0xff] %v822
        %1108 = vst [vmem:[#allocation5 + $0x250] sm:$0xff] %v911
        %1109 = vst [vmem:[#allocation5 + $0x258] sm:$0xff] %v1000
        %1110 = vst [vmem:[#allocation5 + $0x260] sm:$0xff] %v735
        %1111 = vst [vmem:[#allocation5 + $0x268] sm:$0xff] %v824
        %1112 = vst [vmem:[#allocation5 + $0x270] sm:$0xff] %v913
        %1113 = vst [vmem:[#allocation5 + $0x278] sm:$0xff] %v1002
        %1114 = vst [vmem:[#allocation5 + $0x280] sm:$0xff] %v738
        %1115 = vst [vmem:[#allocation5 + $0x288] sm:$0xff] %v827
        %1116 = vst [vmem:[#allocation5 + $0x290] sm:$0xff] %v916
        %1117 = vst [vmem:[#allocation5 + $0x298] sm:$0xff] %v1005
        %1118 = vst [vmem:[#allocation5 + $0x2a0] sm:$0xff] %v740
        %1119 = vst [vmem:[#allocation5 + $0x2a8] sm:$0xff] %v829
        %1120 = vst [vmem:[#allocation5 + $0x2b0] sm:$0xff] %v918
        %1121 = vst [vmem:[#allocation5 + $0x2b8] sm:$0xff] %v1007
        %1122 = vst [vmem:[#allocation5 + $0x2c0] sm:$0xff] %v743
        %1123 = vst [vmem:[#allocation5 + $0x2c8] sm:$0xff] %v832
        %1124 = vst [vmem:[#allocation5 + $0x2d0] sm:$0xff] %v921
        %1125 = vst [vmem:[#allocation5 + $0x2d8] sm:$0xff] %v1010
        %1126 = vst [vmem:[#allocation5 + $0x2e0] sm:$0xff] %v745
        %1127 = vst [vmem:[#allocation5 + $0x2e8] sm:$0xff] %v834
        %1128 = vst [vmem:[#allocation5 + $0x2f0] sm:$0xff] %v923
        %1129 = vst [vmem:[#allocation5 + $0x2f8] sm:$0xff] %v1012
        %1130 = vst [vmem:[#allocation5 + $0x300] sm:$0xff] %v748
        %1131 = vst [vmem:[#allocation5 + $0x308] sm:$0xff] %v837
        %1132 = vst [vmem:[#allocation5 + $0x310] sm:$0xff] %v926
        %1133 = vst [vmem:[#allocation5 + $0x318] sm:$0xff] %v1015
        %1134 = vst [vmem:[#allocation5 + $0x320] sm:$0xff] %v750
        %1135 = vst [vmem:[#allocation5 + $0x328] sm:$0xff] %v839
        %1136 = vst [vmem:[#allocation5 + $0x330] sm:$0xff] %v928
        %1137 = vst [vmem:[#allocation5 + $0x338] sm:$0xff] %v1017
        %1138 = vst [vmem:[#allocation5 + $0x340] sm:$0xff] %v753
        %1139 = vst [vmem:[#allocation5 + $0x348] sm:$0xff] %v842
        %1140 = vst [vmem:[#allocation5 + $0x350] sm:$0xff] %v931
        %1141 = vst [vmem:[#allocation5 + $0x358] sm:$0xff] %v1020
        %1142 = vst [vmem:[#allocation5 + $0x360] sm:$0xff] %v755
        %1143 = vst [vmem:[#allocation5 + $0x368] sm:$0xff] %v844
        %1144 = vst [vmem:[#allocation5 + $0x370] sm:$0xff] %v933
        %1145 = vst [vmem:[#allocation5 + $0x378] sm:$0xff] %v1022
        %1146 = vst [vmem:[#allocation5 + $0x380] sm:$0xff] %v758
        %1147 = vst [vmem:[#allocation5 + $0x388] sm:$0xff] %v847
        %1148 = vst [vmem:[#allocation5 + $0x390] sm:$0xff] %v936
        %1149 = vst [vmem:[#allocation5 + $0x398] sm:$0xff] %v1025
        %1150 = vst [vmem:[#allocation5 + $0x3a0] sm:$0xff] %v760
        %1151 = vst [vmem:[#allocation5 + $0x3a8] sm:$0xff] %v849
        %1152 = vst [vmem:[#allocation5 + $0x3b0] sm:$0xff] %v938
        %1153 = vst [vmem:[#allocation5 + $0x3b8] sm:$0xff] %v1027
        %1154 = vst [vmem:[#allocation5 + $0x3c0] sm:$0xff] %v763
        %1155 = vst [vmem:[#allocation5 + $0x3c8] sm:$0xff] %v852
        %1156 = vst [vmem:[#allocation5 + $0x3d0] sm:$0xff] %v941
        %1157 = vst [vmem:[#allocation5 + $0x3d8] sm:$0xff] %v1030
        %1158 = vst [vmem:[#allocation5 + $0x3e0] sm:$0xff] %v765
        %1159 = vst [vmem:[#allocation5 + $0x3e8] sm:$0xff] %v854
        %1160 = vst [vmem:[#allocation5 + $0x3f0] sm:$0xff] %v943
        %1161 = vst [vmem:[#allocation5 + $0x3f8] sm:$0xff] %v1032
        %v1162 = vld [vmem:[#allocation11] sm:$0xff]
        %v1163 = vld [vmem:[#allocation11 + $0x8] sm:$0xff]
        %v1164 = vld [vmem:[#allocation11 + $0x10] sm:$0xff]
        %v1165 = vld [vmem:[#allocation11 + $0x18] sm:$0xff]
        %v1166 = vld [vmem:[#allocation11 + $0x20] sm:$0xff]
        %v1167 = vld [vmem:[#allocation11 + $0x28] sm:$0xff]
        %v1168 = vld [vmem:[#allocation11 + $0x30] sm:$0xff]
        %v1169 = vld [vmem:[#allocation11 + $0x38] sm:$0xff]
        %v1170 = vld [vmem:[#allocation11 + $0x40] sm:$0xff]
        %v1171 = vld [vmem:[#allocation11 + $0x48] sm:$0xff]
        %v1172 = vld [vmem:[#allocation11 + $0x50] sm:$0xff]
        %v1173 = vld [vmem:[#allocation11 + $0x58] sm:$0xff]
        %v1174 = vld [vmem:[#allocation11 + $0x60] sm:$0xff]
        %v1175 = vld [vmem:[#allocation11 + $0x68] sm:$0xff]
        %v1176 = vld [vmem:[#allocation11 + $0x70] sm:$0xff]
        %v1177 = vld [vmem:[#allocation11 + $0x78] sm:$0xff]
        %v1178 = vld [vmem:[#allocation11 + $0x80] sm:$0xff]
        %v1179 = vld [vmem:[#allocation11 + $0x88] sm:$0xff]
        %v1180 = vld [vmem:[#allocation11 + $0x90] sm:$0xff]
        %v1181 = vld [vmem:[#allocation11 + $0x98] sm:$0xff]
        %v1182 = vld [vmem:[#allocation11 + $0xa0] sm:$0xff]
        %v1183 = vld [vmem:[#allocation11 + $0xa8] sm:$0xff]
        %v1184 = vld [vmem:[#allocation11 + $0xb0] sm:$0xff]
        %v1185 = vld [vmem:[#allocation11 + $0xb8] sm:$0xff]
        %v1186 = vld [vmem:[#allocation11 + $0xc0] sm:$0xff]
        %v1187 = vld [vmem:[#allocation11 + $0xc8] sm:$0xff]
        %v1188 = vld [vmem:[#allocation11 + $0xd0] sm:$0xff]
        %v1189 = vld [vmem:[#allocation11 + $0xd8] sm:$0xff]
        %v1190 = vld [vmem:[#allocation11 + $0xe0] sm:$0xff]
        %v1191 = vld [vmem:[#allocation11 + $0xe8] sm:$0xff]
        %v1192 = vld [vmem:[#allocation11 + $0xf0] sm:$0xff]
        %v1193 = vld [vmem:[#allocation11 + $0xf8] sm:$0xff]
        loop: start=0, step=1, limit=16
        $region73: #{tpu_custom_call.1} parent=43 // loop_pre_header
          _
        $region74: #{tpu_custom_call.1} parent=43 // loop_header
          %s1195 = sphi 0, %s1199
          %p1196 = scmp.ge.s32.totalorder %s1195, 16
        $region75: #{tpu_custom_call.1} parent=43 // loop_header_branch
          %1198 = sbr.rel (%p1196) target = $region79
        $region76: #{tpu_custom_call.1} parent=43 // loop_body
          %v1200 = vld [vmem:[#allocation2] sm:$0xff]
          %v1201 = vld [vmem:[#allocation2 + $0x8] sm:$0xff]
          %v1202 = vld [vmem:[#allocation3] sm:$0xff]
          %v1203 = vld [vmem:[#allocation3 + $0x8] sm:$0xff]
          %s1204 = smul.u32 %s1195, 8
          %s1205 = smul.addr %s1204, 8
          %s1206 = scalar_lea.vmem [#allocation5], %s1205
          %v1207 = vld [vmem:[%s1206] sm:$0xff]
          %v1208 = vld [vmem:[%s1206 + $0x8] sm:$0xff]
          %v1209 = vld [vmem:[%s1206 + $0x10] sm:$0xff]
          %v1210 = vld [vmem:[%s1206 + $0x18] sm:$0xff]
          %v1211 = vld [vmem:[%s1206 + $0x20] sm:$0xff]
          %v1212 = vld [vmem:[%s1206 + $0x28] sm:$0xff]
          %v1213 = vld [vmem:[%s1206 + $0x30] sm:$0xff]
          %v1214 = vld [vmem:[%s1206 + $0x38] sm:$0xff]
          %v1215 = vpack.c.bf16 %v1201, %v1200
          %v1248 = vunpack.c.l.b16 %v1162
          %v1249 = vunpack.c.h.b16 %v1162
          %v1250 = vunpack.c.l.b16 %v1163
          %v1251 = vunpack.c.h.b16 %v1163
          %v1252 = vunpack.c.l.b16 %v1164
          %v1253 = vunpack.c.h.b16 %v1164
          %v1254 = vunpack.c.l.b16 %v1165
          %v1255 = vunpack.c.h.b16 %v1165
          %v1256 = vunpack.c.l.b16 %v1166
          %v1257 = vunpack.c.h.b16 %v1166
          %v1258 = vunpack.c.l.b16 %v1167
          %v1259 = vunpack.c.h.b16 %v1167
          %v1260 = vunpack.c.l.b16 %v1168
          %v1261 = vunpack.c.h.b16 %v1168
          %v1262 = vunpack.c.l.b16 %v1169
          %v1263 = vunpack.c.h.b16 %v1169
          %v1264 = vunpack.c.l.b16 %v1170
          %v1265 = vunpack.c.h.b16 %v1170
          %v1266 = vunpack.c.l.b16 %v1171
          %v1267 = vunpack.c.h.b16 %v1171
          %v1268 = vunpack.c.l.b16 %v1172
          %v1269 = vunpack.c.h.b16 %v1172
          %v1270 = vunpack.c.l.b16 %v1173
          %v1271 = vunpack.c.h.b16 %v1173
          %v1272 = vunpack.c.l.b16 %v1174
          %v1273 = vunpack.c.h.b16 %v1174
          %v1274 = vunpack.c.l.b16 %v1175
          %v1275 = vunpack.c.h.b16 %v1175
          %v1276 = vunpack.c.l.b16 %v1176
          %v1277 = vunpack.c.h.b16 %v1176
          %v1278 = vunpack.c.l.b16 %v1177
          %v1279 = vunpack.c.h.b16 %v1177
          %v1280 = vunpack.c.l.b16 %v1178
          %v1281 = vunpack.c.h.b16 %v1178
          %v1282 = vunpack.c.l.b16 %v1179
          %v1283 = vunpack.c.h.b16 %v1179
          %v1284 = vunpack.c.l.b16 %v1180
          %v1285 = vunpack.c.h.b16 %v1180
          %v1286 = vunpack.c.l.b16 %v1181
          %v1287 = vunpack.c.h.b16 %v1181
          %v1288 = vunpack.c.l.b16 %v1182
          %v1289 = vunpack.c.h.b16 %v1182
          %v1290 = vunpack.c.l.b16 %v1183
          %v1291 = vunpack.c.h.b16 %v1183
          %v1292 = vunpack.c.l.b16 %v1184
          %v1293 = vunpack.c.h.b16 %v1184
          %v1294 = vunpack.c.l.b16 %v1185
          %v1295 = vunpack.c.h.b16 %v1185
          %v1296 = vunpack.c.l.b16 %v1186
          %v1297 = vunpack.c.h.b16 %v1186
          %v1298 = vunpack.c.l.b16 %v1187
          %v1299 = vunpack.c.h.b16 %v1187
          %v1300 = vunpack.c.l.b16 %v1188
          %v1301 = vunpack.c.h.b16 %v1188
          %v1302 = vunpack.c.l.b16 %v1189
          %v1303 = vunpack.c.h.b16 %v1189
          %v1304 = vunpack.c.l.b16 %v1190
          %v1305 = vunpack.c.h.b16 %v1190
          %v1306 = vunpack.c.l.b16 %v1191
          %v1307 = vunpack.c.h.b16 %v1191
          %v1308 = vunpack.c.l.b16 %v1192
          %v1309 = vunpack.c.h.b16 %v1192
          %v1310 = vunpack.c.l.b16 %v1193
          %v1311 = vunpack.c.h.b16 %v1193
          %v1312 = vpack.c.b16 %v1252, %v1248
          %v1313 = vpack.c.b16 %v1253, %v1249
          %v1314 = vpack.c.b16 %v1254, %v1250
          %v1315 = vpack.c.b16 %v1255, %v1251
          %v1316 = vpack.c.b16 %v1260, %v1256
          %v1317 = vpack.c.b16 %v1261, %v1257
          %v1318 = vpack.c.b16 %v1262, %v1258
          %v1319 = vpack.c.b16 %v1263, %v1259
          %v1320 = vpack.c.b16 %v1268, %v1264
          %v1321 = vpack.c.b16 %v1269, %v1265
          %v1322 = vpack.c.b16 %v1270, %v1266
          %v1323 = vpack.c.b16 %v1271, %v1267
          %v1324 = vpack.c.b16 %v1276, %v1272
          %v1325 = vpack.c.b16 %v1277, %v1273
          %v1326 = vpack.c.b16 %v1278, %v1274
          %v1327 = vpack.c.b16 %v1279, %v1275
          %v1328 = vpack.c.b16 %v1284, %v1280
          %v1329 = vpack.c.b16 %v1285, %v1281
          %v1330 = vpack.c.b16 %v1286, %v1282
          %v1331 = vpack.c.b16 %v1287, %v1283
          %v1332 = vpack.c.b16 %v1292, %v1288
          %v1333 = vpack.c.b16 %v1293, %v1289
          %v1334 = vpack.c.b16 %v1294, %v1290
          %v1335 = vpack.c.b16 %v1295, %v1291
          %v1336 = vpack.c.b16 %v1300, %v1296
          %v1337 = vpack.c.b16 %v1301, %v1297
          %v1338 = vpack.c.b16 %v1302, %v1298
          %v1339 = vpack.c.b16 %v1303, %v1299
          %v1340 = vpack.c.b16 %v1308, %v1304
          %v1341 = vpack.c.b16 %v1309, %v1305
          %v1342 = vpack.c.b16 %v1310, %v1306
          %v1343 = vpack.c.b16 %v1311, %v1307
          %1376 = vmatpush.bf16.msra.mxu0 %v1340
          %1377 = vmatpush.bf16.msra.mxu0 %v1336
          %1378 = vmatpush.bf16.msra.mxu0 %v1332
          %1379 = vmatpush.bf16.msra.mxu0 %v1328
          %1380 = vmatpush.bf16.msra.mxu0 %v1324
          %1381 = vmatpush.bf16.msra.mxu0 %v1320
          %1382 = vmatpush.bf16.msra.mxu0 %v1316
          %1383 = vmatpush.bf16.msra.mxu0 %v1312
          %1384 = vmatmul.bf16.gmra.mxu0 %v1215
          %v1385 = vpop.f32.mrf.mxu0
          %v1386 = vadd.f32 0.0, %v1385
          %v1387 = vpop.f32.mrf.mxu0
          %v1388 = vadd.f32 0.0, %v1387
          %1389 = vdwg.mxu0
          %1390 = vmatpush.bf16.msra.mxu0 %v1341
          %1391 = vmatpush.bf16.msra.mxu0 %v1337
          %1392 = vmatpush.bf16.msra.mxu0 %v1333
          %1393 = vmatpush.bf16.msra.mxu0 %v1329
          %1394 = vmatpush.bf16.msra.mxu0 %v1325
          %1395 = vmatpush.bf16.msra.mxu0 %v1321
          %1396 = vmatpush.bf16.msra.mxu0 %v1317
          %1397 = vmatpush.bf16.msra.mxu0 %v1313
          %1398 = vmatmul.bf16.gmra.mxu0 %v1215
          %v1399 = vpop.f32.mrf.mxu0
          %v1400 = vadd.f32 0.0, %v1399
          %v1401 = vpop.f32.mrf.mxu0
          %v1402 = vadd.f32 0.0, %v1401
          %1403 = vdwg.mxu0
          %1404 = vmatpush.bf16.msra.mxu0 %v1342
          %1405 = vmatpush.bf16.msra.mxu0 %v1338
          %1406 = vmatpush.bf16.msra.mxu0 %v1334
          %1407 = vmatpush.bf16.msra.mxu0 %v1330
          %1408 = vmatpush.bf16.msra.mxu0 %v1326
          %1409 = vmatpush.bf16.msra.mxu0 %v1322
          %1410 = vmatpush.bf16.msra.mxu0 %v1318
          %1411 = vmatpush.bf16.msra.mxu0 %v1314
          %1412 = vmatmul.bf16.gmra.mxu0 %v1215
          %v1413 = vpop.f32.mrf.mxu0
          %v1414 = vadd.f32 0.0, %v1413
          %v1415 = vpop.f32.mrf.mxu0
          %v1416 = vadd.f32 0.0, %v1415
          %1417 = vdwg.mxu0
          %1418 = vmatpush.bf16.msra.mxu0 %v1343
          %1419 = vmatpush.bf16.msra.mxu0 %v1339
          %1420 = vmatpush.bf16.msra.mxu0 %v1335
          %1421 = vmatpush.bf16.msra.mxu0 %v1331
          %1422 = vmatpush.bf16.msra.mxu0 %v1327
          %1423 = vmatpush.bf16.msra.mxu0 %v1323
          %1424 = vmatpush.bf16.msra.mxu0 %v1319
          %1425 = vmatpush.bf16.msra.mxu0 %v1315
          %1426 = vmatmul.bf16.gmra.mxu0 %v1215
          %v1427 = vpop.f32.mrf.mxu0
          %v1428 = vadd.f32 0.0, %v1427
          %v1429 = vpop.f32.mrf.mxu0
          %v1430 = vadd.f32 0.0, %v1429
          %1431 = vdwg.mxu0
          %v1432 = vadd.f32 %v1207, %v1386
          %v1433 = vadd.f32 %v1208, %v1400
          %v1434 = vadd.f32 %v1209, %v1414
          %v1435 = vadd.f32 %v1210, %v1428
          %v1436 = vadd.f32 %v1211, %v1388
          %v1437 = vadd.f32 %v1212, %v1402
          %v1438 = vadd.f32 %v1213, %v1416
          %v1439 = vadd.f32 %v1214, %v1430
          %v1440 = vxor.u32 %v1432, 2147483648
          %v1441 = vxor.u32 %v1436, 2147483648
          %v1442 = vmul.f32 %v1440, 1.442695
          %v1443 = vpow.pop %v1442
          %v1444 = vmul.f32 %v1441, 1.442695
          %v1445 = vpow.pop %v1444
          %v1446 = vadd.f32 %v1443, 1.0
          %v1447 = vadd.f32 %v1445, 1.0
          %v1448 = vrcp.pop %v1446
          %v1449 = vmul.f32 %v1446, %v1448
          %v1450 = vsub.f32 1.0, %v1449
          %v1451 = vmul.f32 %v1448, %v1450
          %v1452 = vadd.f32 %v1448, %v1451
          %vm1453 = vweird.f32 %v1446
          %vm1454 = vweird.f32 %v1448
          %vm1455 = vmor %vm1453, %vm1454
          %v1456 = vsel %vm1455, %v1448, %v1452
          %v1457 = vand.u32 2147483647, %v1446
          %vm1458 = vcmp.eq.f32.partialorder %v1457, 8.507059e+37
          %v1459 = vand.u32 %v1446, 2147483648
          %v1460 = vor.u32 1.1754944e-38, %v1459
          %v1461 = vsel %vm1458, %v1460, %v1456
          %v1462 = vmul.f32 1.0, %v1461
          %v1463 = vrcp.pop %v1447
          %v1464 = vmul.f32 %v1447, %v1463
          %v1465 = vsub.f32 1.0, %v1464
          %v1466 = vmul.f32 %v1463, %v1465
          %v1467 = vadd.f32 %v1463, %v1466
          %vm1468 = vweird.f32 %v1447
          %vm1469 = vweird.f32 %v1463
          %vm1470 = vmor %vm1468, %vm1469
          %v1471 = vsel %vm1470, %v1463, %v1467
          %v1472 = vand.u32 2147483647, %v1447
          %vm1473 = vcmp.eq.f32.partialorder %v1472, 8.507059e+37
          %v1474 = vand.u32 %v1447, 2147483648
          %v1475 = vor.u32 1.1754944e-38, %v1474
          %v1476 = vsel %vm1473, %v1475, %v1471
          %v1477 = vmul.f32 1.0, %v1476
          %v1478 = vxor.u32 %v1433, 2147483648
          %v1479 = vxor.u32 %v1437, 2147483648
          %v1480 = vmul.f32 %v1478, 1.442695
          %v1481 = vpow.pop %v1480
          %v1482 = vmul.f32 %v1479, 1.442695
          %v1483 = vpow.pop %v1482
          %v1484 = vadd.f32 %v1481, 1.0
          %v1485 = vadd.f32 %v1483, 1.0
          %v1486 = vrcp.pop %v1484
          %v1487 = vmul.f32 %v1484, %v1486
          %v1488 = vsub.f32 1.0, %v1487
          %v1489 = vmul.f32 %v1486, %v1488
          %v1490 = vadd.f32 %v1486, %v1489
          %vm1491 = vweird.f32 %v1484
          %vm1492 = vweird.f32 %v1486
          %vm1493 = vmor %vm1491, %vm1492
          %v1494 = vsel %vm1493, %v1486, %v1490
          %v1495 = vand.u32 2147483647, %v1484
          %vm1496 = vcmp.eq.f32.partialorder %v1495, 8.507059e+37
          %v1497 = vand.u32 %v1484, 2147483648
          %v1498 = vor.u32 1.1754944e-38, %v1497
          %v1499 = vsel %vm1496, %v1498, %v1494
          %v1500 = vmul.f32 1.0, %v1499
          %v1501 = vrcp.pop %v1485
          %v1502 = vmul.f32 %v1485, %v1501
          %v1503 = vsub.f32 1.0, %v1502
          %v1504 = vmul.f32 %v1501, %v1503
          %v1505 = vadd.f32 %v1501, %v1504
          %vm1506 = vweird.f32 %v1485
          %vm1507 = vweird.f32 %v1501
          %vm1508 = vmor %vm1506, %vm1507
          %v1509 = vsel %vm1508, %v1501, %v1505
          %v1510 = vand.u32 2147483647, %v1485
          %vm1511 = vcmp.eq.f32.partialorder %v1510, 8.507059e+37
          %v1512 = vand.u32 %v1485, 2147483648
          %v1513 = vor.u32 1.1754944e-38, %v1512
          %v1514 = vsel %vm1511, %v1513, %v1509
          %v1515 = vmul.f32 1.0, %v1514
          %v1516 = vtanh.pop %v1434
          %v1517 = vtanh.pop %v1438
          %v1518 = vxor.u32 %v1435, 2147483648
          %v1519 = vxor.u32 %v1439, 2147483648
          %v1520 = vmul.f32 %v1518, 1.442695
          %v1521 = vpow.pop %v1520
          %v1522 = vmul.f32 %v1519, 1.442695
          %v1523 = vpow.pop %v1522
          %v1524 = vadd.f32 %v1521, 1.0
          %v1525 = vadd.f32 %v1523, 1.0
          %v1526 = vrcp.pop %v1524
          %v1527 = vmul.f32 %v1524, %v1526
          %v1528 = vsub.f32 1.0, %v1527
          %v1529 = vmul.f32 %v1526, %v1528
          %v1530 = vadd.f32 %v1526, %v1529
          %vm1531 = vweird.f32 %v1524
          %vm1532 = vweird.f32 %v1526
          %vm1533 = vmor %vm1531, %vm1532
          %v1534 = vsel %vm1533, %v1526, %v1530
          %v1535 = vand.u32 2147483647, %v1524
          %vm1536 = vcmp.eq.f32.partialorder %v1535, 8.507059e+37
          %v1537 = vand.u32 %v1524, 2147483648
          %v1538 = vor.u32 1.1754944e-38, %v1537
          %v1539 = vsel %vm1536, %v1538, %v1534
          %v1540 = vmul.f32 1.0, %v1539
          %v1541 = vrcp.pop %v1525
          %v1542 = vmul.f32 %v1525, %v1541
          %v1543 = vsub.f32 1.0, %v1542
          %v1544 = vmul.f32 %v1541, %v1543
          %v1545 = vadd.f32 %v1541, %v1544
          %vm1546 = vweird.f32 %v1525
          %vm1547 = vweird.f32 %v1541
          %vm1548 = vmor %vm1546, %vm1547
          %v1549 = vsel %vm1548, %v1541, %v1545
          %v1550 = vand.u32 2147483647, %v1525
          %vm1551 = vcmp.eq.f32.partialorder %v1550, 8.507059e+37
          %v1552 = vand.u32 %v1525, 2147483648
          %v1553 = vor.u32 1.1754944e-38, %v1552
          %v1554 = vsel %vm1551, %v1553, %v1549
          %v1555 = vmul.f32 1.0, %v1554
          %v1556 = vmul.f32 %v1500, %v1202
          %v1557 = vmul.f32 %v1515, %v1203
          %v1558 = vmul.f32 %v1462, %v1516
          %v1559 = vmul.f32 %v1477, %v1517
          %v1560 = vadd.f32 %v1556, %v1558
          %v1561 = vadd.f32 %v1557, %v1559
          %v1562 = vtanh.pop %v1560
          %v1563 = vtanh.pop %v1561
          %v1564 = vmul.f32 %v1540, %v1562
          %v1565 = vmul.f32 %v1555, %v1563
          %1566 = vst [vmem:[#allocation3] sm:$0xff] %v1560
          %1567 = vst [vmem:[#allocation3 + $0x8] sm:$0xff] %v1561
          %1568 = vst [vmem:[#allocation2] sm:$0xff] %v1564
          %1569 = vst [vmem:[#allocation2 + $0x8] sm:$0xff] %v1565
          %s1570 = smul.u32 %s1195, 16
          %s1571 = scalar_lea.vmem [#allocation4], %s1570
          %1572 = vst [vmem:[%s1571] sm:$0xff] %v1564
          %1573 = vst [vmem:[%s1571 + $0x8] sm:$0xff] %v1565
        $region77: #{tpu_custom_call.1} parent=43 // loop_footer
          %s1199 = sadd.s32 1, %s1195
        $region78: #{tpu_custom_call.1} parent=43 // loop_footer_branch
          %1194 = sbr.rel target = $region74
        $region79: #{tpu_custom_call.1} parent=43 // loop_exit
          _
        %v1574 = vld [vmem:[#allocation4] sm:$0xff]
        %v1575 = vld [vmem:[#allocation4 + $0x8] sm:$0xff]
        %v1576 = vld [vmem:[#allocation4 + $0x10] sm:$0xff]
        %v1577 = vld [vmem:[#allocation4 + $0x18] sm:$0xff]
        %v1578 = vld [vmem:[#allocation4 + $0x20] sm:$0xff]
        %v1579 = vld [vmem:[#allocation4 + $0x28] sm:$0xff]
        %v1580 = vld [vmem:[#allocation4 + $0x30] sm:$0xff]
        %v1581 = vld [vmem:[#allocation4 + $0x38] sm:$0xff]
        %v1582 = vld [vmem:[#allocation4 + $0x40] sm:$0xff]
        %v1583 = vld [vmem:[#allocation4 + $0x48] sm:$0xff]
        %v1584 = vld [vmem:[#allocation4 + $0x50] sm:$0xff]
        %v1585 = vld [vmem:[#allocation4 + $0x58] sm:$0xff]
        %v1586 = vld [vmem:[#allocation4 + $0x60] sm:$0xff]
        %v1587 = vld [vmem:[#allocation4 + $0x68] sm:$0xff]
        %v1588 = vld [vmem:[#allocation4 + $0x70] sm:$0xff]
        %v1589 = vld [vmem:[#allocation4 + $0x78] sm:$0xff]
        %v1590 = vld [vmem:[#allocation4 + $0x80] sm:$0xff]
        %v1591 = vld [vmem:[#allocation4 + $0x88] sm:$0xff]
        %v1592 = vld [vmem:[#allocation4 + $0x90] sm:$0xff]
        %v1593 = vld [vmem:[#allocation4 + $0x98] sm:$0xff]
        %v1594 = vld [vmem:[#allocation4 + $0xa0] sm:$0xff]
        %v1595 = vld [vmem:[#allocation4 + $0xa8] sm:$0xff]
        %v1596 = vld [vmem:[#allocation4 + $0xb0] sm:$0xff]
        %v1597 = vld [vmem:[#allocation4 + $0xb8] sm:$0xff]
        %v1598 = vld [vmem:[#allocation4 + $0xc0] sm:$0xff]
        %v1599 = vld [vmem:[#allocation4 + $0xc8] sm:$0xff]
        %v1600 = vld [vmem:[#allocation4 + $0xd0] sm:$0xff]
        %v1601 = vld [vmem:[#allocation4 + $0xd8] sm:$0xff]
        %v1602 = vld [vmem:[#allocation4 + $0xe0] sm:$0xff]
        %v1603 = vld [vmem:[#allocation4 + $0xe8] sm:$0xff]
        %v1604 = vld [vmem:[#allocation4 + $0xf0] sm:$0xff]
        %v1605 = vld [vmem:[#allocation4 + $0xf8] sm:$0xff]
        %v1606 = vpack.c.bf16 %v1575, %v1574
        %v1607 = vpack.c.bf16 %v1577, %v1576
        %v1608 = vpack.c.bf16 %v1579, %v1578
        %v1609 = vpack.c.bf16 %v1581, %v1580
        %v1610 = vpack.c.bf16 %v1583, %v1582
        %v1611 = vpack.c.bf16 %v1585, %v1584
        %v1612 = vpack.c.bf16 %v1587, %v1586
        %v1613 = vpack.c.bf16 %v1589, %v1588
        %v1614 = vpack.c.bf16 %v1591, %v1590
        %v1615 = vpack.c.bf16 %v1593, %v1592
        %v1616 = vpack.c.bf16 %v1595, %v1594
        %v1617 = vpack.c.bf16 %v1597, %v1596
        %v1618 = vpack.c.bf16 %v1599, %v1598
        %v1619 = vpack.c.bf16 %v1601, %v1600
        %v1620 = vpack.c.bf16 %v1603, %v1602
        %v1621 = vpack.c.bf16 %v1605, %v1604
        %s1622 = scalar_lea.vmem [#allocation9], 256
        %v1623 = vld [vmem:[%s1622] sm:$0xff]
        %v1624 = vld [vmem:[%s1622 + $0x8] sm:$0xff]
        %v1625 = vld [vmem:[%s1622 + $0x10] sm:$0xff]
        %v1626 = vld [vmem:[%s1622 + $0x18] sm:$0xff]
        %v1627 = vld [vmem:[%s1622 + $0x20] sm:$0xff]
        %v1628 = vld [vmem:[%s1622 + $0x28] sm:$0xff]
        %v1629 = vld [vmem:[%s1622 + $0x30] sm:$0xff]
        %v1630 = vld [vmem:[%s1622 + $0x38] sm:$0xff]
        %v1631 = vld [vmem:[%s1622 + $0x40] sm:$0xff]
        %v1632 = vld [vmem:[%s1622 + $0x48] sm:$0xff]
        %v1633 = vld [vmem:[%s1622 + $0x50] sm:$0xff]
        %v1634 = vld [vmem:[%s1622 + $0x58] sm:$0xff]
        %v1635 = vld [vmem:[%s1622 + $0x60] sm:$0xff]
        %v1636 = vld [vmem:[%s1622 + $0x68] sm:$0xff]
        %v1637 = vld [vmem:[%s1622 + $0x70] sm:$0xff]
        %v1638 = vld [vmem:[%s1622 + $0x78] sm:$0xff]
        %v1639 = vld [vmem:[%s1622 + $0x80] sm:$0xff]
        %v1640 = vld [vmem:[%s1622 + $0x88] sm:$0xff]
        %v1641 = vld [vmem:[%s1622 + $0x90] sm:$0xff]
        %v1642 = vld [vmem:[%s1622 + $0x98] sm:$0xff]
        %v1643 = vld [vmem:[%s1622 + $0xa0] sm:$0xff]
        %v1644 = vld [vmem:[%s1622 + $0xa8] sm:$0xff]
        %v1645 = vld [vmem:[%s1622 + $0xb0] sm:$0xff]
        %v1646 = vld [vmem:[%s1622 + $0xb8] sm:$0xff]
        %v1647 = vld [vmem:[%s1622 + $0xc0] sm:$0xff]
        %v1648 = vld [vmem:[%s1622 + $0xc8] sm:$0xff]
        %v1649 = vld [vmem:[%s1622 + $0xd0] sm:$0xff]
        %v1650 = vld [vmem:[%s1622 + $0xd8] sm:$0xff]
        %v1651 = vld [vmem:[%s1622 + $0xe0] sm:$0xff]
        %v1652 = vld [vmem:[%s1622 + $0xe8] sm:$0xff]
        %v1653 = vld [vmem:[%s1622 + $0xf0] sm:$0xff]
        %v1654 = vld [vmem:[%s1622 + $0xf8] sm:$0xff]
        %s1655 = scalar_lea.vmem [#allocation12], 4
        %v1656 = vld [vmem:[%s1655] sm:$0xf]
        %v1658 = vperm.slane %v1656, 0
        %v1659 = vperm.slane %v1656, 1
        %v1660 = vperm.slane %v1656, 2
        %v1661 = vperm.slane %v1656, 3
        %v1698 = vunpack.c.l.b16 %v1623
        %v1699 = vunpack.c.h.b16 %v1623
        %v1700 = vunpack.c.l.b16 %v1624
        %v1701 = vunpack.c.h.b16 %v1624
        %v1702 = vunpack.c.l.b16 %v1625
        %v1703 = vunpack.c.h.b16 %v1625
        %v1704 = vunpack.c.l.b16 %v1626
        %v1705 = vunpack.c.h.b16 %v1626
        %v1706 = vunpack.c.l.b16 %v1627
        %v1707 = vunpack.c.h.b16 %v1627
        %v1708 = vunpack.c.l.b16 %v1628
        %v1709 = vunpack.c.h.b16 %v1628
        %v1710 = vunpack.c.l.b16 %v1629
        %v1711 = vunpack.c.h.b16 %v1629
        %v1712 = vunpack.c.l.b16 %v1630
        %v1713 = vunpack.c.h.b16 %v1630
        %v1714 = vunpack.c.l.b16 %v1631
        %v1715 = vunpack.c.h.b16 %v1631
        %v1716 = vunpack.c.l.b16 %v1632
        %v1717 = vunpack.c.h.b16 %v1632
        %v1718 = vunpack.c.l.b16 %v1633
        %v1719 = vunpack.c.h.b16 %v1633
        %v1720 = vunpack.c.l.b16 %v1634
        %v1721 = vunpack.c.h.b16 %v1634
        %v1722 = vunpack.c.l.b16 %v1635
        %v1723 = vunpack.c.h.b16 %v1635
        %v1724 = vunpack.c.l.b16 %v1636
        %v1725 = vunpack.c.h.b16 %v1636
        %v1726 = vunpack.c.l.b16 %v1637
        %v1727 = vunpack.c.h.b16 %v1637
        %v1728 = vunpack.c.l.b16 %v1638
        %v1729 = vunpack.c.h.b16 %v1638
        %v1730 = vunpack.c.l.b16 %v1639
        %v1731 = vunpack.c.h.b16 %v1639
        %v1732 = vunpack.c.l.b16 %v1640
        %v1733 = vunpack.c.h.b16 %v1640
        %v1734 = vunpack.c.l.b16 %v1641
        %v1735 = vunpack.c.h.b16 %v1641
        %v1736 = vunpack.c.l.b16 %v1642
        %v1737 = vunpack.c.h.b16 %v1642
        %v1738 = vunpack.c.l.b16 %v1643
        %v1739 = vunpack.c.h.b16 %v1643
        %v1740 = vunpack.c.l.b16 %v1644
        %v1741 = vunpack.c.h.b16 %v1644
        %v1742 = vunpack.c.l.b16 %v1645
        %v1743 = vunpack.c.h.b16 %v1645
        %v1744 = vunpack.c.l.b16 %v1646
        %v1745 = vunpack.c.h.b16 %v1646
        %v1746 = vunpack.c.l.b16 %v1647
        %v1747 = vunpack.c.h.b16 %v1647
        %v1748 = vunpack.c.l.b16 %v1648
        %v1749 = vunpack.c.h.b16 %v1648
        %v1750 = vunpack.c.l.b16 %v1649
        %v1751 = vunpack.c.h.b16 %v1649
        %v1752 = vunpack.c.l.b16 %v1650
        %v1753 = vunpack.c.h.b16 %v1650
        %v1754 = vunpack.c.l.b16 %v1651
        %v1755 = vunpack.c.h.b16 %v1651
        %v1756 = vunpack.c.l.b16 %v1652
        %v1757 = vunpack.c.h.b16 %v1652
        %v1758 = vunpack.c.l.b16 %v1653
        %v1759 = vunpack.c.h.b16 %v1653
        %v1760 = vunpack.c.l.b16 %v1654
        %v1761 = vunpack.c.h.b16 %v1654
        %v1762 = vpack.c.b16 %v1702, %v1698
        %v1763 = vpack.c.b16 %v1703, %v1699
        %v1764 = vpack.c.b16 %v1704, %v1700
        %v1765 = vpack.c.b16 %v1705, %v1701
        %v1766 = vpack.c.b16 %v1710, %v1706
        %v1767 = vpack.c.b16 %v1711, %v1707
        %v1768 = vpack.c.b16 %v1712, %v1708
        %v1769 = vpack.c.b16 %v1713, %v1709
        %v1770 = vpack.c.b16 %v1718, %v1714
        %v1771 = vpack.c.b16 %v1719, %v1715
        %v1772 = vpack.c.b16 %v1720, %v1716
        %v1773 = vpack.c.b16 %v1721, %v1717
        %v1774 = vpack.c.b16 %v1726, %v1722
        %v1775 = vpack.c.b16 %v1727, %v1723
        %v1776 = vpack.c.b16 %v1728, %v1724
        %v1777 = vpack.c.b16 %v1729, %v1725
        %v1778 = vpack.c.b16 %v1734, %v1730
        %v1779 = vpack.c.b16 %v1735, %v1731
        %v1780 = vpack.c.b16 %v1736, %v1732
        %v1781 = vpack.c.b16 %v1737, %v1733
        %v1782 = vpack.c.b16 %v1742, %v1738
        %v1783 = vpack.c.b16 %v1743, %v1739
        %v1784 = vpack.c.b16 %v1744, %v1740
        %v1785 = vpack.c.b16 %v1745, %v1741
        %v1786 = vpack.c.b16 %v1750, %v1746
        %v1787 = vpack.c.b16 %v1751, %v1747
        %v1788 = vpack.c.b16 %v1752, %v1748
        %v1789 = vpack.c.b16 %v1753, %v1749
        %v1790 = vpack.c.b16 %v1758, %v1754
        %v1791 = vpack.c.b16 %v1759, %v1755
        %v1792 = vpack.c.b16 %v1760, %v1756
        %v1793 = vpack.c.b16 %v1761, %v1757
        %1826 = vmatpush.bf16.msra.mxu0 %v1790
        %1827 = vmatpush.bf16.msra.mxu0 %v1786
        %1828 = vmatpush.bf16.msra.mxu0 %v1782
        %1829 = vmatpush.bf16.msra.mxu0 %v1778
        %1830 = vmatpush.bf16.msra.mxu0 %v1774
        %1831 = vmatpush.bf16.msra.mxu0 %v1770
        %1832 = vmatpush.bf16.msra.mxu0 %v1766
        %1833 = vmatpush.bf16.msra.mxu0 %v1762
        %1834 = vmatmul.bf16.gmra.mxu0 %v1606
        %v1835 = vpop.f32.mrf.mxu0
        %v1836 = vadd.f32 %v1658, %v1835
        %v1837 = vpop.f32.mrf.mxu0
        %v1838 = vadd.f32 %v1658, %v1837
        %1839 = vmatmul.bf16.gmra.mxu0 %v1607
        %v1840 = vpop.f32.mrf.mxu0
        %v1841 = vadd.f32 %v1658, %v1840
        %v1842 = vpop.f32.mrf.mxu0
        %v1843 = vadd.f32 %v1658, %v1842
        %1844 = vmatmul.bf16.gmra.mxu0 %v1608
        %v1845 = vpop.f32.mrf.mxu0
        %v1846 = vadd.f32 %v1658, %v1845
        %v1847 = vpop.f32.mrf.mxu0
        %v1848 = vadd.f32 %v1658, %v1847
        %1849 = vmatmul.bf16.gmra.mxu0 %v1609
        %v1850 = vpop.f32.mrf.mxu0
        %v1851 = vadd.f32 %v1658, %v1850
        %v1852 = vpop.f32.mrf.mxu0
        %v1853 = vadd.f32 %v1658, %v1852
        %1854 = vmatmul.bf16.gmra.mxu0 %v1610
        %v1855 = vpop.f32.mrf.mxu0
        %v1856 = vadd.f32 %v1658, %v1855
        %v1857 = vpop.f32.mrf.mxu0
        %v1858 = vadd.f32 %v1658, %v1857
        %1859 = vmatmul.bf16.gmra.mxu0 %v1611
        %v1860 = vpop.f32.mrf.mxu0
        %v1861 = vadd.f32 %v1658, %v1860
        %v1862 = vpop.f32.mrf.mxu0
        %v1863 = vadd.f32 %v1658, %v1862
        %1864 = vmatmul.bf16.gmra.mxu0 %v1612
        %v1865 = vpop.f32.mrf.mxu0
        %v1866 = vadd.f32 %v1658, %v1865
        %v1867 = vpop.f32.mrf.mxu0
        %v1868 = vadd.f32 %v1658, %v1867
        %1869 = vmatmul.bf16.gmra.mxu0 %v1613
        %v1870 = vpop.f32.mrf.mxu0
        %v1871 = vadd.f32 %v1658, %v1870
        %v1872 = vpop.f32.mrf.mxu0
        %v1873 = vadd.f32 %v1658, %v1872
        %1874 = vmatmul.bf16.gmra.mxu0 %v1614
        %v1875 = vpop.f32.mrf.mxu0
        %v1876 = vadd.f32 %v1658, %v1875
        %v1877 = vpop.f32.mrf.mxu0
        %v1878 = vadd.f32 %v1658, %v1877
        %1879 = vmatmul.bf16.gmra.mxu0 %v1615
        %v1880 = vpop.f32.mrf.mxu0
        %v1881 = vadd.f32 %v1658, %v1880
        %v1882 = vpop.f32.mrf.mxu0
        %v1883 = vadd.f32 %v1658, %v1882
        %1884 = vmatmul.bf16.gmra.mxu0 %v1616
        %v1885 = vpop.f32.mrf.mxu0
        %v1886 = vadd.f32 %v1658, %v1885
        %v1887 = vpop.f32.mrf.mxu0
        %v1888 = vadd.f32 %v1658, %v1887
        %1889 = vmatmul.bf16.gmra.mxu0 %v1617
        %v1890 = vpop.f32.mrf.mxu0
        %v1891 = vadd.f32 %v1658, %v1890
        %v1892 = vpop.f32.mrf.mxu0
        %v1893 = vadd.f32 %v1658, %v1892
        %1894 = vmatmul.bf16.gmra.mxu0 %v1618
        %v1895 = vpop.f32.mrf.mxu0
        %v1896 = vadd.f32 %v1658, %v1895
        %v1897 = vpop.f32.mrf.mxu0
        %v1898 = vadd.f32 %v1658, %v1897
        %1899 = vmatmul.bf16.gmra.mxu0 %v1619
        %v1900 = vpop.f32.mrf.mxu0
        %v1901 = vadd.f32 %v1658, %v1900
        %v1902 = vpop.f32.mrf.mxu0
        %v1903 = vadd.f32 %v1658, %v1902
        %1904 = vmatmul.bf16.gmra.mxu0 %v1620
        %v1905 = vpop.f32.mrf.mxu0
        %v1906 = vadd.f32 %v1658, %v1905
        %v1907 = vpop.f32.mrf.mxu0
        %v1908 = vadd.f32 %v1658, %v1907
        %1909 = vmatmul.bf16.gmra.mxu0 %v1621
        %v1910 = vpop.f32.mrf.mxu0
        %v1911 = vadd.f32 %v1658, %v1910
        %v1912 = vpop.f32.mrf.mxu0
        %v1913 = vadd.f32 %v1658, %v1912
        %1914 = vdwg.mxu0
        %1915 = vmatpush.bf16.msra.mxu0 %v1791
        %1916 = vmatpush.bf16.msra.mxu0 %v1787
        %1917 = vmatpush.bf16.msra.mxu0 %v1783
        %1918 = vmatpush.bf16.msra.mxu0 %v1779
        %1919 = vmatpush.bf16.msra.mxu0 %v1775
        %1920 = vmatpush.bf16.msra.mxu0 %v1771
        %1921 = vmatpush.bf16.msra.mxu0 %v1767
        %1922 = vmatpush.bf16.msra.mxu0 %v1763
        %1923 = vmatmul.bf16.gmra.mxu0 %v1606
        %v1924 = vpop.f32.mrf.mxu0
        %v1925 = vadd.f32 %v1659, %v1924
        %v1926 = vpop.f32.mrf.mxu0
        %v1927 = vadd.f32 %v1659, %v1926
        %1928 = vmatmul.bf16.gmra.mxu0 %v1607
        %v1929 = vpop.f32.mrf.mxu0
        %v1930 = vadd.f32 %v1659, %v1929
        %v1931 = vpop.f32.mrf.mxu0
        %v1932 = vadd.f32 %v1659, %v1931
        %1933 = vmatmul.bf16.gmra.mxu0 %v1608
        %v1934 = vpop.f32.mrf.mxu0
        %v1935 = vadd.f32 %v1659, %v1934
        %v1936 = vpop.f32.mrf.mxu0
        %v1937 = vadd.f32 %v1659, %v1936
        %1938 = vmatmul.bf16.gmra.mxu0 %v1609
        %v1939 = vpop.f32.mrf.mxu0
        %v1940 = vadd.f32 %v1659, %v1939
        %v1941 = vpop.f32.mrf.mxu0
        %v1942 = vadd.f32 %v1659, %v1941
        %1943 = vmatmul.bf16.gmra.mxu0 %v1610
        %v1944 = vpop.f32.mrf.mxu0
        %v1945 = vadd.f32 %v1659, %v1944
        %v1946 = vpop.f32.mrf.mxu0
        %v1947 = vadd.f32 %v1659, %v1946
        %1948 = vmatmul.bf16.gmra.mxu0 %v1611
        %v1949 = vpop.f32.mrf.mxu0
        %v1950 = vadd.f32 %v1659, %v1949
        %v1951 = vpop.f32.mrf.mxu0
        %v1952 = vadd.f32 %v1659, %v1951
        %1953 = vmatmul.bf16.gmra.mxu0 %v1612
        %v1954 = vpop.f32.mrf.mxu0
        %v1955 = vadd.f32 %v1659, %v1954
        %v1956 = vpop.f32.mrf.mxu0
        %v1957 = vadd.f32 %v1659, %v1956
        %1958 = vmatmul.bf16.gmra.mxu0 %v1613
        %v1959 = vpop.f32.mrf.mxu0
        %v1960 = vadd.f32 %v1659, %v1959
        %v1961 = vpop.f32.mrf.mxu0
        %v1962 = vadd.f32 %v1659, %v1961
        %1963 = vmatmul.bf16.gmra.mxu0 %v1614
        %v1964 = vpop.f32.mrf.mxu0
        %v1965 = vadd.f32 %v1659, %v1964
        %v1966 = vpop.f32.mrf.mxu0
        %v1967 = vadd.f32 %v1659, %v1966
        %1968 = vmatmul.bf16.gmra.mxu0 %v1615
        %v1969 = vpop.f32.mrf.mxu0
        %v1970 = vadd.f32 %v1659, %v1969
        %v1971 = vpop.f32.mrf.mxu0
        %v1972 = vadd.f32 %v1659, %v1971
        %1973 = vmatmul.bf16.gmra.mxu0 %v1616
        %v1974 = vpop.f32.mrf.mxu0
        %v1975 = vadd.f32 %v1659, %v1974
        %v1976 = vpop.f32.mrf.mxu0
        %v1977 = vadd.f32 %v1659, %v1976
        %1978 = vmatmul.bf16.gmra.mxu0 %v1617
        %v1979 = vpop.f32.mrf.mxu0
        %v1980 = vadd.f32 %v1659, %v1979
        %v1981 = vpop.f32.mrf.mxu0
        %v1982 = vadd.f32 %v1659, %v1981
        %1983 = vmatmul.bf16.gmra.mxu0 %v1618
        %v1984 = vpop.f32.mrf.mxu0
        %v1985 = vadd.f32 %v1659, %v1984
        %v1986 = vpop.f32.mrf.mxu0
        %v1987 = vadd.f32 %v1659, %v1986
        %1988 = vmatmul.bf16.gmra.mxu0 %v1619
        %v1989 = vpop.f32.mrf.mxu0
        %v1990 = vadd.f32 %v1659, %v1989
        %v1991 = vpop.f32.mrf.mxu0
        %v1992 = vadd.f32 %v1659, %v1991
        %1993 = vmatmul.bf16.gmra.mxu0 %v1620
        %v1994 = vpop.f32.mrf.mxu0
        %v1995 = vadd.f32 %v1659, %v1994
        %v1996 = vpop.f32.mrf.mxu0
        %v1997 = vadd.f32 %v1659, %v1996
        %1998 = vmatmul.bf16.gmra.mxu0 %v1621
        %v1999 = vpop.f32.mrf.mxu0
        %v2000 = vadd.f32 %v1659, %v1999
        %v2001 = vpop.f32.mrf.mxu0
        %v2002 = vadd.f32 %v1659, %v2001
        %2003 = vdwg.mxu0
        %2004 = vmatpush.bf16.msra.mxu0 %v1792
        %2005 = vmatpush.bf16.msra.mxu0 %v1788
        %2006 = vmatpush.bf16.msra.mxu0 %v1784
        %2007 = vmatpush.bf16.msra.mxu0 %v1780
        %2008 = vmatpush.bf16.msra.mxu0 %v1776
        %2009 = vmatpush.bf16.msra.mxu0 %v1772
        %2010 = vmatpush.bf16.msra.mxu0 %v1768
        %2011 = vmatpush.bf16.msra.mxu0 %v1764
        %2012 = vmatmul.bf16.gmra.mxu0 %v1606
        %v2013 = vpop.f32.mrf.mxu0
        %v2014 = vadd.f32 %v1660, %v2013
        %v2015 = vpop.f32.mrf.mxu0
        %v2016 = vadd.f32 %v1660, %v2015
        %2017 = vmatmul.bf16.gmra.mxu0 %v1607
        %v2018 = vpop.f32.mrf.mxu0
        %v2019 = vadd.f32 %v1660, %v2018
        %v2020 = vpop.f32.mrf.mxu0
        %v2021 = vadd.f32 %v1660, %v2020
        %2022 = vmatmul.bf16.gmra.mxu0 %v1608
        %v2023 = vpop.f32.mrf.mxu0
        %v2024 = vadd.f32 %v1660, %v2023
        %v2025 = vpop.f32.mrf.mxu0
        %v2026 = vadd.f32 %v1660, %v2025
        %2027 = vmatmul.bf16.gmra.mxu0 %v1609
        %v2028 = vpop.f32.mrf.mxu0
        %v2029 = vadd.f32 %v1660, %v2028
        %v2030 = vpop.f32.mrf.mxu0
        %v2031 = vadd.f32 %v1660, %v2030
        %2032 = vmatmul.bf16.gmra.mxu0 %v1610
        %v2033 = vpop.f32.mrf.mxu0
        %v2034 = vadd.f32 %v1660, %v2033
        %v2035 = vpop.f32.mrf.mxu0
        %v2036 = vadd.f32 %v1660, %v2035
        %2037 = vmatmul.bf16.gmra.mxu0 %v1611
        %v2038 = vpop.f32.mrf.mxu0
        %v2039 = vadd.f32 %v1660, %v2038
        %v2040 = vpop.f32.mrf.mxu0
        %v2041 = vadd.f32 %v1660, %v2040
        %2042 = vmatmul.bf16.gmra.mxu0 %v1612
        %v2043 = vpop.f32.mrf.mxu0
        %v2044 = vadd.f32 %v1660, %v2043
        %v2045 = vpop.f32.mrf.mxu0
        %v2046 = vadd.f32 %v1660, %v2045
        %2047 = vmatmul.bf16.gmra.mxu0 %v1613
        %v2048 = vpop.f32.mrf.mxu0
        %v2049 = vadd.f32 %v1660, %v2048
        %v2050 = vpop.f32.mrf.mxu0
        %v2051 = vadd.f32 %v1660, %v2050
        %2052 = vmatmul.bf16.gmra.mxu0 %v1614
        %v2053 = vpop.f32.mrf.mxu0
        %v2054 = vadd.f32 %v1660, %v2053
        %v2055 = vpop.f32.mrf.mxu0
        %v2056 = vadd.f32 %v1660, %v2055
        %2057 = vmatmul.bf16.gmra.mxu0 %v1615
        %v2058 = vpop.f32.mrf.mxu0
        %v2059 = vadd.f32 %v1660, %v2058
        %v2060 = vpop.f32.mrf.mxu0
        %v2061 = vadd.f32 %v1660, %v2060
        %2062 = vmatmul.bf16.gmra.mxu0 %v1616
        %v2063 = vpop.f32.mrf.mxu0
        %v2064 = vadd.f32 %v1660, %v2063
        %v2065 = vpop.f32.mrf.mxu0
        %v2066 = vadd.f32 %v1660, %v2065
        %2067 = vmatmul.bf16.gmra.mxu0 %v1617
        %v2068 = vpop.f32.mrf.mxu0
        %v2069 = vadd.f32 %v1660, %v2068
        %v2070 = vpop.f32.mrf.mxu0
        %v2071 = vadd.f32 %v1660, %v2070
        %2072 = vmatmul.bf16.gmra.mxu0 %v1618
        %v2073 = vpop.f32.mrf.mxu0
        %v2074 = vadd.f32 %v1660, %v2073
        %v2075 = vpop.f32.mrf.mxu0
        %v2076 = vadd.f32 %v1660, %v2075
        %2077 = vmatmul.bf16.gmra.mxu0 %v1619
        %v2078 = vpop.f32.mrf.mxu0
        %v2079 = vadd.f32 %v1660, %v2078
        %v2080 = vpop.f32.mrf.mxu0
        %v2081 = vadd.f32 %v1660, %v2080
        %2082 = vmatmul.bf16.gmra.mxu0 %v1620
        %v2083 = vpop.f32.mrf.mxu0
        %v2084 = vadd.f32 %v1660, %v2083
        %v2085 = vpop.f32.mrf.mxu0
        %v2086 = vadd.f32 %v1660, %v2085
        %2087 = vmatmul.bf16.gmra.mxu0 %v1621
        %v2088 = vpop.f32.mrf.mxu0
        %v2089 = vadd.f32 %v1660, %v2088
        %v2090 = vpop.f32.mrf.mxu0
        %v2091 = vadd.f32 %v1660, %v2090
        %2092 = vdwg.mxu0
        %2093 = vmatpush.bf16.msra.mxu0 %v1793
        %2094 = vmatpush.bf16.msra.mxu0 %v1789
        %2095 = vmatpush.bf16.msra.mxu0 %v1785
        %2096 = vmatpush.bf16.msra.mxu0 %v1781
        %2097 = vmatpush.bf16.msra.mxu0 %v1777
        %2098 = vmatpush.bf16.msra.mxu0 %v1773
        %2099 = vmatpush.bf16.msra.mxu0 %v1769
        %2100 = vmatpush.bf16.msra.mxu0 %v1765
        %2101 = vmatmul.bf16.gmra.mxu0 %v1606
        %v2102 = vpop.f32.mrf.mxu0
        %v2103 = vadd.f32 %v1661, %v2102
        %v2104 = vpop.f32.mrf.mxu0
        %v2105 = vadd.f32 %v1661, %v2104
        %2106 = vmatmul.bf16.gmra.mxu0 %v1607
        %v2107 = vpop.f32.mrf.mxu0
        %v2108 = vadd.f32 %v1661, %v2107
        %v2109 = vpop.f32.mrf.mxu0
        %v2110 = vadd.f32 %v1661, %v2109
        %2111 = vmatmul.bf16.gmra.mxu0 %v1608
        %v2112 = vpop.f32.mrf.mxu0
        %v2113 = vadd.f32 %v1661, %v2112
        %v2114 = vpop.f32.mrf.mxu0
        %v2115 = vadd.f32 %v1661, %v2114
        %2116 = vmatmul.bf16.gmra.mxu0 %v1609
        %v2117 = vpop.f32.mrf.mxu0
        %v2118 = vadd.f32 %v1661, %v2117
        %v2119 = vpop.f32.mrf.mxu0
        %v2120 = vadd.f32 %v1661, %v2119
        %2121 = vmatmul.bf16.gmra.mxu0 %v1610
        %v2122 = vpop.f32.mrf.mxu0
        %v2123 = vadd.f32 %v1661, %v2122
        %v2124 = vpop.f32.mrf.mxu0
        %v2125 = vadd.f32 %v1661, %v2124
        %2126 = vmatmul.bf16.gmra.mxu0 %v1611
        %v2127 = vpop.f32.mrf.mxu0
        %v2128 = vadd.f32 %v1661, %v2127
        %v2129 = vpop.f32.mrf.mxu0
        %v2130 = vadd.f32 %v1661, %v2129
        %2131 = vmatmul.bf16.gmra.mxu0 %v1612
        %v2132 = vpop.f32.mrf.mxu0
        %v2133 = vadd.f32 %v1661, %v2132
        %v2134 = vpop.f32.mrf.mxu0
        %v2135 = vadd.f32 %v1661, %v2134
        %2136 = vmatmul.bf16.gmra.mxu0 %v1613
        %v2137 = vpop.f32.mrf.mxu0
        %v2138 = vadd.f32 %v1661, %v2137
        %v2139 = vpop.f32.mrf.mxu0
        %v2140 = vadd.f32 %v1661, %v2139
        %2141 = vmatmul.bf16.gmra.mxu0 %v1614
        %v2142 = vpop.f32.mrf.mxu0
        %v2143 = vadd.f32 %v1661, %v2142
        %v2144 = vpop.f32.mrf.mxu0
        %v2145 = vadd.f32 %v1661, %v2144
        %2146 = vmatmul.bf16.gmra.mxu0 %v1615
        %v2147 = vpop.f32.mrf.mxu0
        %v2148 = vadd.f32 %v1661, %v2147
        %v2149 = vpop.f32.mrf.mxu0
        %v2150 = vadd.f32 %v1661, %v2149
        %2151 = vmatmul.bf16.gmra.mxu0 %v1616
        %v2152 = vpop.f32.mrf.mxu0
        %v2153 = vadd.f32 %v1661, %v2152
        %v2154 = vpop.f32.mrf.mxu0
        %v2155 = vadd.f32 %v1661, %v2154
        %2156 = vmatmul.bf16.gmra.mxu0 %v1617
        %v2157 = vpop.f32.mrf.mxu0
        %v2158 = vadd.f32 %v1661, %v2157
        %v2159 = vpop.f32.mrf.mxu0
        %v2160 = vadd.f32 %v1661, %v2159
        %2161 = vmatmul.bf16.gmra.mxu0 %v1618
        %v2162 = vpop.f32.mrf.mxu0
        %v2163 = vadd.f32 %v1661, %v2162
        %v2164 = vpop.f32.mrf.mxu0
        %v2165 = vadd.f32 %v1661, %v2164
        %2166 = vmatmul.bf16.gmra.mxu0 %v1619
        %v2167 = vpop.f32.mrf.mxu0
        %v2168 = vadd.f32 %v1661, %v2167
        %v2169 = vpop.f32.mrf.mxu0
        %v2170 = vadd.f32 %v1661, %v2169
        %2171 = vmatmul.bf16.gmra.mxu0 %v1620
        %v2172 = vpop.f32.mrf.mxu0
        %v2173 = vadd.f32 %v1661, %v2172
        %v2174 = vpop.f32.mrf.mxu0
        %v2175 = vadd.f32 %v1661, %v2174
        %2176 = vmatmul.bf16.gmra.mxu0 %v1621
        %v2177 = vpop.f32.mrf.mxu0
        %v2178 = vadd.f32 %v1661, %v2177
        %v2179 = vpop.f32.mrf.mxu0
        %v2180 = vadd.f32 %v1661, %v2179
        %2181 = vdwg.mxu0
        %2182 = vst [vmem:[#allocation5] sm:$0xff] %v1836
        %2183 = vst [vmem:[#allocation5 + $0x8] sm:$0xff] %v1925
        %2184 = vst [vmem:[#allocation5 + $0x10] sm:$0xff] %v2014
        %2185 = vst [vmem:[#allocation5 + $0x18] sm:$0xff] %v2103
        %2186 = vst [vmem:[#allocation5 + $0x20] sm:$0xff] %v1838
        %2187 = vst [vmem:[#allocation5 + $0x28] sm:$0xff] %v1927
        %2188 = vst [vmem:[#allocation5 + $0x30] sm:$0xff] %v2016
        %2189 = vst [vmem:[#allocation5 + $0x38] sm:$0xff] %v2105
        %2190 = vst [vmem:[#allocation5 + $0x40] sm:$0xff] %v1841
        %2191 = vst [vmem:[#allocation5 + $0x48] sm:$0xff] %v1930
        %2192 = vst [vmem:[#allocation5 + $0x50] sm:$0xff] %v2019
        %2193 = vst [vmem:[#allocation5 + $0x58] sm:$0xff] %v2108
        %2194 = vst [vmem:[#allocation5 + $0x60] sm:$0xff] %v1843
        %2195 = vst [vmem:[#allocation5 + $0x68] sm:$0xff] %v1932
        %2196 = vst [vmem:[#allocation5 + $0x70] sm:$0xff] %v2021
        %2197 = vst [vmem:[#allocation5 + $0x78] sm:$0xff] %v2110
        %2198 = vst [vmem:[#allocation5 + $0x80] sm:$0xff] %v1846
        %2199 = vst [vmem:[#allocation5 + $0x88] sm:$0xff] %v1935
        %2200 = vst [vmem:[#allocation5 + $0x90] sm:$0xff] %v2024
        %2201 = vst [vmem:[#allocation5 + $0x98] sm:$0xff] %v2113
        %2202 = vst [vmem:[#allocation5 + $0xa0] sm:$0xff] %v1848
        %2203 = vst [vmem:[#allocation5 + $0xa8] sm:$0xff] %v1937
        %2204 = vst [vmem:[#allocation5 + $0xb0] sm:$0xff] %v2026
        %2205 = vst [vmem:[#allocation5 + $0xb8] sm:$0xff] %v2115
        %2206 = vst [vmem:[#allocation5 + $0xc0] sm:$0xff] %v1851
        %2207 = vst [vmem:[#allocation5 + $0xc8] sm:$0xff] %v1940
        %2208 = vst [vmem:[#allocation5 + $0xd0] sm:$0xff] %v2029
        %2209 = vst [vmem:[#allocation5 + $0xd8] sm:$0xff] %v2118
        %2210 = vst [vmem:[#allocation5 + $0xe0] sm:$0xff] %v1853
        %2211 = vst [vmem:[#allocation5 + $0xe8] sm:$0xff] %v1942
        %2212 = vst [vmem:[#allocation5 + $0xf0] sm:$0xff] %v2031
        %2213 = vst [vmem:[#allocation5 + $0xf8] sm:$0xff] %v2120
        %2214 = vst [vmem:[#allocation5 + $0x100] sm:$0xff] %v1856
        %2215 = vst [vmem:[#allocation5 + $0x108] sm:$0xff] %v1945
        %2216 = vst [vmem:[#allocation5 + $0x110] sm:$0xff] %v2034
        %2217 = vst [vmem:[#allocation5 + $0x118] sm:$0xff] %v2123
        %2218 = vst [vmem:[#allocation5 + $0x120] sm:$0xff] %v1858
        %2219 = vst [vmem:[#allocation5 + $0x128] sm:$0xff] %v1947
        %2220 = vst [vmem:[#allocation5 + $0x130] sm:$0xff] %v2036
        %2221 = vst [vmem:[#allocation5 + $0x138] sm:$0xff] %v2125
        %2222 = vst [vmem:[#allocation5 + $0x140] sm:$0xff] %v1861
        %2223 = vst [vmem:[#allocation5 + $0x148] sm:$0xff] %v1950
        %2224 = vst [vmem:[#allocation5 + $0x150] sm:$0xff] %v2039
        %2225 = vst [vmem:[#allocation5 + $0x158] sm:$0xff] %v2128
        %2226 = vst [vmem:[#allocation5 + $0x160] sm:$0xff] %v1863
        %2227 = vst [vmem:[#allocation5 + $0x168] sm:$0xff] %v1952
        %2228 = vst [vmem:[#allocation5 + $0x170] sm:$0xff] %v2041
        %2229 = vst [vmem:[#allocation5 + $0x178] sm:$0xff] %v2130
        %2230 = vst [vmem:[#allocation5 + $0x180] sm:$0xff] %v1866
        %2231 = vst [vmem:[#allocation5 + $0x188] sm:$0xff] %v1955
        %2232 = vst [vmem:[#allocation5 + $0x190] sm:$0xff] %v2044
        %2233 = vst [vmem:[#allocation5 + $0x198] sm:$0xff] %v2133
        %2234 = vst [vmem:[#allocation5 + $0x1a0] sm:$0xff] %v1868
        %2235 = vst [vmem:[#allocation5 + $0x1a8] sm:$0xff] %v1957
        %2236 = vst [vmem:[#allocation5 + $0x1b0] sm:$0xff] %v2046
        %2237 = vst [vmem:[#allocation5 + $0x1b8] sm:$0xff] %v2135
        %2238 = vst [vmem:[#allocation5 + $0x1c0] sm:$0xff] %v1871
        %2239 = vst [vmem:[#allocation5 + $0x1c8] sm:$0xff] %v1960
        %2240 = vst [vmem:[#allocation5 + $0x1d0] sm:$0xff] %v2049
        %2241 = vst [vmem:[#allocation5 + $0x1d8] sm:$0xff] %v2138
        %2242 = vst [vmem:[#allocation5 + $0x1e0] sm:$0xff] %v1873
        %2243 = vst [vmem:[#allocation5 + $0x1e8] sm:$0xff] %v1962
        %2244 = vst [vmem:[#allocation5 + $0x1f0] sm:$0xff] %v2051
        %2245 = vst [vmem:[#allocation5 + $0x1f8] sm:$0xff] %v2140
        %2246 = vst [vmem:[#allocation5 + $0x200] sm:$0xff] %v1876
        %2247 = vst [vmem:[#allocation5 + $0x208] sm:$0xff] %v1965
        %2248 = vst [vmem:[#allocation5 + $0x210] sm:$0xff] %v2054
        %2249 = vst [vmem:[#allocation5 + $0x218] sm:$0xff] %v2143
        %2250 = vst [vmem:[#allocation5 + $0x220] sm:$0xff] %v1878
        %2251 = vst [vmem:[#allocation5 + $0x228] sm:$0xff] %v1967
        %2252 = vst [vmem:[#allocation5 + $0x230] sm:$0xff] %v2056
        %2253 = vst [vmem:[#allocation5 + $0x238] sm:$0xff] %v2145
        %2254 = vst [vmem:[#allocation5 + $0x240] sm:$0xff] %v1881
        %2255 = vst [vmem:[#allocation5 + $0x248] sm:$0xff] %v1970
        %2256 = vst [vmem:[#allocation5 + $0x250] sm:$0xff] %v2059
        %2257 = vst [vmem:[#allocation5 + $0x258] sm:$0xff] %v2148
        %2258 = vst [vmem:[#allocation5 + $0x260] sm:$0xff] %v1883
        %2259 = vst [vmem:[#allocation5 + $0x268] sm:$0xff] %v1972
        %2260 = vst [vmem:[#allocation5 + $0x270] sm:$0xff] %v2061
        %2261 = vst [vmem:[#allocation5 + $0x278] sm:$0xff] %v2150
        %2262 = vst [vmem:[#allocation5 + $0x280] sm:$0xff] %v1886
        %2263 = vst [vmem:[#allocation5 + $0x288] sm:$0xff] %v1975
        %2264 = vst [vmem:[#allocation5 + $0x290] sm:$0xff] %v2064
        %2265 = vst [vmem:[#allocation5 + $0x298] sm:$0xff] %v2153
        %2266 = vst [vmem:[#allocation5 + $0x2a0] sm:$0xff] %v1888
        %2267 = vst [vmem:[#allocation5 + $0x2a8] sm:$0xff] %v1977
        %2268 = vst [vmem:[#allocation5 + $0x2b0] sm:$0xff] %v2066
        %2269 = vst [vmem:[#allocation5 + $0x2b8] sm:$0xff] %v2155
        %2270 = vst [vmem:[#allocation5 + $0x2c0] sm:$0xff] %v1891
        %2271 = vst [vmem:[#allocation5 + $0x2c8] sm:$0xff] %v1980
        %2272 = vst [vmem:[#allocation5 + $0x2d0] sm:$0xff] %v2069
        %2273 = vst [vmem:[#allocation5 + $0x2d8] sm:$0xff] %v2158
        %2274 = vst [vmem:[#allocation5 + $0x2e0] sm:$0xff] %v1893
        %2275 = vst [vmem:[#allocation5 + $0x2e8] sm:$0xff] %v1982
        %2276 = vst [vmem:[#allocation5 + $0x2f0] sm:$0xff] %v2071
        %2277 = vst [vmem:[#allocation5 + $0x2f8] sm:$0xff] %v2160
        %2278 = vst [vmem:[#allocation5 + $0x300] sm:$0xff] %v1896
        %2279 = vst [vmem:[#allocation5 + $0x308] sm:$0xff] %v1985
        %2280 = vst [vmem:[#allocation5 + $0x310] sm:$0xff] %v2074
        %2281 = vst [vmem:[#allocation5 + $0x318] sm:$0xff] %v2163
        %2282 = vst [vmem:[#allocation5 + $0x320] sm:$0xff] %v1898
        %2283 = vst [vmem:[#allocation5 + $0x328] sm:$0xff] %v1987
        %2284 = vst [vmem:[#allocation5 + $0x330] sm:$0xff] %v2076
        %2285 = vst [vmem:[#allocation5 + $0x338] sm:$0xff] %v2165
        %2286 = vst [vmem:[#allocation5 + $0x340] sm:$0xff] %v1901
        %2287 = vst [vmem:[#allocation5 + $0x348] sm:$0xff] %v1990
        %2288 = vst [vmem:[#allocation5 + $0x350] sm:$0xff] %v2079
        %2289 = vst [vmem:[#allocation5 + $0x358] sm:$0xff] %v2168
        %2290 = vst [vmem:[#allocation5 + $0x360] sm:$0xff] %v1903
        %2291 = vst [vmem:[#allocation5 + $0x368] sm:$0xff] %v1992
        %2292 = vst [vmem:[#allocation5 + $0x370] sm:$0xff] %v2081
        %2293 = vst [vmem:[#allocation5 + $0x378] sm:$0xff] %v2170
        %2294 = vst [vmem:[#allocation5 + $0x380] sm:$0xff] %v1906
        %2295 = vst [vmem:[#allocation5 + $0x388] sm:$0xff] %v1995
        %2296 = vst [vmem:[#allocation5 + $0x390] sm:$0xff] %v2084
        %2297 = vst [vmem:[#allocation5 + $0x398] sm:$0xff] %v2173
        %2298 = vst [vmem:[#allocation5 + $0x3a0] sm:$0xff] %v1908
        %2299 = vst [vmem:[#allocation5 + $0x3a8] sm:$0xff] %v1997
        %2300 = vst [vmem:[#allocation5 + $0x3b0] sm:$0xff] %v2086
        %2301 = vst [vmem:[#allocation5 + $0x3b8] sm:$0xff] %v2175
        %2302 = vst [vmem:[#allocation5 + $0x3c0] sm:$0xff] %v1911
        %2303 = vst [vmem:[#allocation5 + $0x3c8] sm:$0xff] %v2000
        %2304 = vst [vmem:[#allocation5 + $0x3d0] sm:$0xff] %v2089
        %2305 = vst [vmem:[#allocation5 + $0x3d8] sm:$0xff] %v2178
        %2306 = vst [vmem:[#allocation5 + $0x3e0] sm:$0xff] %v1913
        %2307 = vst [vmem:[#allocation5 + $0x3e8] sm:$0xff] %v2002
        %2308 = vst [vmem:[#allocation5 + $0x3f0] sm:$0xff] %v2091
        %2309 = vst [vmem:[#allocation5 + $0x3f8] sm:$0xff] %v2180
        %s2310 = scalar_lea.vmem [#allocation11], 256
        %v2311 = vld [vmem:[%s2310] sm:$0xff]
        %v2312 = vld [vmem:[%s2310 + $0x8] sm:$0xff]
        %v2313 = vld [vmem:[%s2310 + $0x10] sm:$0xff]
        %v2314 = vld [vmem:[%s2310 + $0x18] sm:$0xff]
        %v2315 = vld [vmem:[%s2310 + $0x20] sm:$0xff]
        %v2316 = vld [vmem:[%s2310 + $0x28] sm:$0xff]
        %v2317 = vld [vmem:[%s2310 + $0x30] sm:$0xff]
        %v2318 = vld [vmem:[%s2310 + $0x38] sm:$0xff]
        %v2319 = vld [vmem:[%s2310 + $0x40] sm:$0xff]
        %v2320 = vld [vmem:[%s2310 + $0x48] sm:$0xff]
        %v2321 = vld [vmem:[%s2310 + $0x50] sm:$0xff]
        %v2322 = vld [vmem:[%s2310 + $0x58] sm:$0xff]
        %v2323 = vld [vmem:[%s2310 + $0x60] sm:$0xff]
        %v2324 = vld [vmem:[%s2310 + $0x68] sm:$0xff]
        %v2325 = vld [vmem:[%s2310 + $0x70] sm:$0xff]
        %v2326 = vld [vmem:[%s2310 + $0x78] sm:$0xff]
        %v2327 = vld [vmem:[%s2310 + $0x80] sm:$0xff]
        %v2328 = vld [vmem:[%s2310 + $0x88] sm:$0xff]
        %v2329 = vld [vmem:[%s2310 + $0x90] sm:$0xff]
        %v2330 = vld [vmem:[%s2310 + $0x98] sm:$0xff]
        %v2331 = vld [vmem:[%s2310 + $0xa0] sm:$0xff]
        %v2332 = vld [vmem:[%s2310 + $0xa8] sm:$0xff]
        %v2333 = vld [vmem:[%s2310 + $0xb0] sm:$0xff]
        %v2334 = vld [vmem:[%s2310 + $0xb8] sm:$0xff]
        %v2335 = vld [vmem:[%s2310 + $0xc0] sm:$0xff]
        %v2336 = vld [vmem:[%s2310 + $0xc8] sm:$0xff]
        %v2337 = vld [vmem:[%s2310 + $0xd0] sm:$0xff]
        %v2338 = vld [vmem:[%s2310 + $0xd8] sm:$0xff]
        %v2339 = vld [vmem:[%s2310 + $0xe0] sm:$0xff]
        %v2340 = vld [vmem:[%s2310 + $0xe8] sm:$0xff]
        %v2341 = vld [vmem:[%s2310 + $0xf0] sm:$0xff]
        %v2342 = vld [vmem:[%s2310 + $0xf8] sm:$0xff]
        loop: start=0, step=1, limit=16
        $region80: #{tpu_custom_call.1} parent=43 // loop_pre_header
          _
        $region81: #{tpu_custom_call.1} parent=43 // loop_header
          %s2344 = sphi 0, %s2348
          %p2345 = scmp.ge.s32.totalorder %s2344, 16
        $region82: #{tpu_custom_call.1} parent=43 // loop_header_branch
          %2347 = sbr.rel (%p2345) target = $region86
        $region83: #{tpu_custom_call.1} parent=43 // loop_body
          %s2349 = scalar_lea.vmem [#allocation2], 16
          %v2350 = vld [vmem:[%s2349] sm:$0xff]
          %v2351 = vld [vmem:[%s2349 + $0x8] sm:$0xff]
          %s2352 = scalar_lea.vmem [#allocation3], 16
          %v2353 = vld [vmem:[%s2352] sm:$0xff]
          %v2354 = vld [vmem:[%s2352 + $0x8] sm:$0xff]
          %s2355 = smul.u32 %s2344, 8
          %s2356 = smul.addr %s2355, 8
          %s2357 = scalar_lea.vmem [#allocation5], %s2356
          %v2358 = vld [vmem:[%s2357] sm:$0xff]
          %v2359 = vld [vmem:[%s2357 + $0x8] sm:$0xff]
          %v2360 = vld [vmem:[%s2357 + $0x10] sm:$0xff]
          %v2361 = vld [vmem:[%s2357 + $0x18] sm:$0xff]
          %v2362 = vld [vmem:[%s2357 + $0x20] sm:$0xff]
          %v2363 = vld [vmem:[%s2357 + $0x28] sm:$0xff]
          %v2364 = vld [vmem:[%s2357 + $0x30] sm:$0xff]
          %v2365 = vld [vmem:[%s2357 + $0x38] sm:$0xff]
          %v2366 = vpack.c.bf16 %v2351, %v2350
          %v2399 = vunpack.c.l.b16 %v2311
          %v2400 = vunpack.c.h.b16 %v2311
          %v2401 = vunpack.c.l.b16 %v2312
          %v2402 = vunpack.c.h.b16 %v2312
          %v2403 = vunpack.c.l.b16 %v2313
          %v2404 = vunpack.c.h.b16 %v2313
          %v2405 = vunpack.c.l.b16 %v2314
          %v2406 = vunpack.c.h.b16 %v2314
          %v2407 = vunpack.c.l.b16 %v2315
          %v2408 = vunpack.c.h.b16 %v2315
          %v2409 = vunpack.c.l.b16 %v2316
          %v2410 = vunpack.c.h.b16 %v2316
          %v2411 = vunpack.c.l.b16 %v2317
          %v2412 = vunpack.c.h.b16 %v2317
          %v2413 = vunpack.c.l.b16 %v2318
          %v2414 = vunpack.c.h.b16 %v2318
          %v2415 = vunpack.c.l.b16 %v2319
          %v2416 = vunpack.c.h.b16 %v2319
          %v2417 = vunpack.c.l.b16 %v2320
          %v2418 = vunpack.c.h.b16 %v2320
          %v2419 = vunpack.c.l.b16 %v2321
          %v2420 = vunpack.c.h.b16 %v2321
          %v2421 = vunpack.c.l.b16 %v2322
          %v2422 = vunpack.c.h.b16 %v2322
          %v2423 = vunpack.c.l.b16 %v2323
          %v2424 = vunpack.c.h.b16 %v2323
          %v2425 = vunpack.c.l.b16 %v2324
          %v2426 = vunpack.c.h.b16 %v2324
          %v2427 = vunpack.c.l.b16 %v2325
          %v2428 = vunpack.c.h.b16 %v2325
          %v2429 = vunpack.c.l.b16 %v2326
          %v2430 = vunpack.c.h.b16 %v2326
          %v2431 = vunpack.c.l.b16 %v2327
          %v2432 = vunpack.c.h.b16 %v2327
          %v2433 = vunpack.c.l.b16 %v2328
          %v2434 = vunpack.c.h.b16 %v2328
          %v2435 = vunpack.c.l.b16 %v2329
          %v2436 = vunpack.c.h.b16 %v2329
          %v2437 = vunpack.c.l.b16 %v2330
          %v2438 = vunpack.c.h.b16 %v2330
          %v2439 = vunpack.c.l.b16 %v2331
          %v2440 = vunpack.c.h.b16 %v2331
          %v2441 = vunpack.c.l.b16 %v2332
          %v2442 = vunpack.c.h.b16 %v2332
          %v2443 = vunpack.c.l.b16 %v2333
          %v2444 = vunpack.c.h.b16 %v2333
          %v2445 = vunpack.c.l.b16 %v2334
          %v2446 = vunpack.c.h.b16 %v2334
          %v2447 = vunpack.c.l.b16 %v2335
          %v2448 = vunpack.c.h.b16 %v2335
          %v2449 = vunpack.c.l.b16 %v2336
          %v2450 = vunpack.c.h.b16 %v2336
          %v2451 = vunpack.c.l.b16 %v2337
          %v2452 = vunpack.c.h.b16 %v2337
          %v2453 = vunpack.c.l.b16 %v2338
          %v2454 = vunpack.c.h.b16 %v2338
          %v2455 = vunpack.c.l.b16 %v2339
          %v2456 = vunpack.c.h.b16 %v2339
          %v2457 = vunpack.c.l.b16 %v2340
          %v2458 = vunpack.c.h.b16 %v2340
          %v2459 = vunpack.c.l.b16 %v2341
          %v2460 = vunpack.c.h.b16 %v2341
          %v2461 = vunpack.c.l.b16 %v2342
          %v2462 = vunpack.c.h.b16 %v2342
          %v2463 = vpack.c.b16 %v2403, %v2399
          %v2464 = vpack.c.b16 %v2404, %v2400
          %v2465 = vpack.c.b16 %v2405, %v2401
          %v2466 = vpack.c.b16 %v2406, %v2402
          %v2467 = vpack.c.b16 %v2411, %v2407
          %v2468 = vpack.c.b16 %v2412, %v2408
          %v2469 = vpack.c.b16 %v2413, %v2409
          %v2470 = vpack.c.b16 %v2414, %v2410
          %v2471 = vpack.c.b16 %v2419, %v2415
          %v2472 = vpack.c.b16 %v2420, %v2416
          %v2473 = vpack.c.b16 %v2421, %v2417
          %v2474 = vpack.c.b16 %v2422, %v2418
          %v2475 = vpack.c.b16 %v2427, %v2423
          %v2476 = vpack.c.b16 %v2428, %v2424
          %v2477 = vpack.c.b16 %v2429, %v2425
          %v2478 = vpack.c.b16 %v2430, %v2426
          %v2479 = vpack.c.b16 %v2435, %v2431
          %v2480 = vpack.c.b16 %v2436, %v2432
          %v2481 = vpack.c.b16 %v2437, %v2433
          %v2482 = vpack.c.b16 %v2438, %v2434
          %v2483 = vpack.c.b16 %v2443, %v2439
          %v2484 = vpack.c.b16 %v2444, %v2440
          %v2485 = vpack.c.b16 %v2445, %v2441
          %v2486 = vpack.c.b16 %v2446, %v2442
          %v2487 = vpack.c.b16 %v2451, %v2447
          %v2488 = vpack.c.b16 %v2452, %v2448
          %v2489 = vpack.c.b16 %v2453, %v2449
          %v2490 = vpack.c.b16 %v2454, %v2450
          %v2491 = vpack.c.b16 %v2459, %v2455
          %v2492 = vpack.c.b16 %v2460, %v2456
          %v2493 = vpack.c.b16 %v2461, %v2457
          %v2494 = vpack.c.b16 %v2462, %v2458
          %2527 = vmatpush.bf16.msra.mxu0 %v2491
          %2528 = vmatpush.bf16.msra.mxu0 %v2487
          %2529 = vmatpush.bf16.msra.mxu0 %v2483
          %2530 = vmatpush.bf16.msra.mxu0 %v2479
          %2531 = vmatpush.bf16.msra.mxu0 %v2475
          %2532 = vmatpush.bf16.msra.mxu0 %v2471
          %2533 = vmatpush.bf16.msra.mxu0 %v2467
          %2534 = vmatpush.bf16.msra.mxu0 %v2463
          %2535 = vmatmul.bf16.gmra.mxu0 %v2366
          %v2536 = vpop.f32.mrf.mxu0
          %v2537 = vadd.f32 0.0, %v2536
          %v2538 = vpop.f32.mrf.mxu0
          %v2539 = vadd.f32 0.0, %v2538
          %2540 = vdwg.mxu0
          %2541 = vmatpush.bf16.msra.mxu0 %v2492
          %2542 = vmatpush.bf16.msra.mxu0 %v2488
          %2543 = vmatpush.bf16.msra.mxu0 %v2484
          %2544 = vmatpush.bf16.msra.mxu0 %v2480
          %2545 = vmatpush.bf16.msra.mxu0 %v2476
          %2546 = vmatpush.bf16.msra.mxu0 %v2472
          %2547 = vmatpush.bf16.msra.mxu0 %v2468
          %2548 = vmatpush.bf16.msra.mxu0 %v2464
          %2549 = vmatmul.bf16.gmra.mxu0 %v2366
          %v2550 = vpop.f32.mrf.mxu0
          %v2551 = vadd.f32 0.0, %v2550
          %v2552 = vpop.f32.mrf.mxu0
          %v2553 = vadd.f32 0.0, %v2552
          %2554 = vdwg.mxu0
          %2555 = vmatpush.bf16.msra.mxu0 %v2493
          %2556 = vmatpush.bf16.msra.mxu0 %v2489
          %2557 = vmatpush.bf16.msra.mxu0 %v2485
          %2558 = vmatpush.bf16.msra.mxu0 %v2481
          %2559 = vmatpush.bf16.msra.mxu0 %v2477
          %2560 = vmatpush.bf16.msra.mxu0 %v2473
          %2561 = vmatpush.bf16.msra.mxu0 %v2469
          %2562 = vmatpush.bf16.msra.mxu0 %v2465
          %2563 = vmatmul.bf16.gmra.mxu0 %v2366
          %v2564 = vpop.f32.mrf.mxu0
          %v2565 = vadd.f32 0.0, %v2564
          %v2566 = vpop.f32.mrf.mxu0
          %v2567 = vadd.f32 0.0, %v2566
          %2568 = vdwg.mxu0
          %2569 = vmatpush.bf16.msra.mxu0 %v2494
          %2570 = vmatpush.bf16.msra.mxu0 %v2490
          %2571 = vmatpush.bf16.msra.mxu0 %v2486
          %2572 = vmatpush.bf16.msra.mxu0 %v2482
          %2573 = vmatpush.bf16.msra.mxu0 %v2478
          %2574 = vmatpush.bf16.msra.mxu0 %v2474
          %2575 = vmatpush.bf16.msra.mxu0 %v2470
          %2576 = vmatpush.bf16.msra.mxu0 %v2466
          %2577 = vmatmul.bf16.gmra.mxu0 %v2366
          %v2578 = vpop.f32.mrf.mxu0
          %v2579 = vadd.f32 0.0, %v2578
          %v2580 = vpop.f32.mrf.mxu0
          %v2581 = vadd.f32 0.0, %v2580
          %2582 = vdwg.mxu0
          %v2583 = vadd.f32 %v2358, %v2537
          %v2584 = vadd.f32 %v2359, %v2551
          %v2585 = vadd.f32 %v2360, %v2565
          %v2586 = vadd.f32 %v2361, %v2579
          %v2587 = vadd.f32 %v2362, %v2539
          %v2588 = vadd.f32 %v2363, %v2553
          %v2589 = vadd.f32 %v2364, %v2567
          %v2590 = vadd.f32 %v2365, %v2581
          %v2591 = vxor.u32 %v2583, 2147483648
          %v2592 = vxor.u32 %v2587, 2147483648
          %v2593 = vmul.f32 %v2591, 1.442695
          %v2594 = vpow.pop %v2593
          %v2595 = vmul.f32 %v2592, 1.442695
          %v2596 = vpow.pop %v2595
          %v2597 = vadd.f32 %v2594, 1.0
          %v2598 = vadd.f32 %v2596, 1.0
          %v2599 = vrcp.pop %v2597
          %v2600 = vmul.f32 %v2597, %v2599
          %v2601 = vsub.f32 1.0, %v2600
          %v2602 = vmul.f32 %v2599, %v2601
          %v2603 = vadd.f32 %v2599, %v2602
          %vm2604 = vweird.f32 %v2597
          %vm2605 = vweird.f32 %v2599
          %vm2606 = vmor %vm2604, %vm2605
          %v2607 = vsel %vm2606, %v2599, %v2603
          %v2608 = vand.u32 2147483647, %v2597
          %vm2609 = vcmp.eq.f32.partialorder %v2608, 8.507059e+37
          %v2610 = vand.u32 %v2597, 2147483648
          %v2611 = vor.u32 1.1754944e-38, %v2610
          %v2612 = vsel %vm2609, %v2611, %v2607
          %v2613 = vmul.f32 1.0, %v2612
          %v2614 = vrcp.pop %v2598
          %v2615 = vmul.f32 %v2598, %v2614
          %v2616 = vsub.f32 1.0, %v2615
          %v2617 = vmul.f32 %v2614, %v2616
          %v2618 = vadd.f32 %v2614, %v2617
          %vm2619 = vweird.f32 %v2598
          %vm2620 = vweird.f32 %v2614
          %vm2621 = vmor %vm2619, %vm2620
          %v2622 = vsel %vm2621, %v2614, %v2618
          %v2623 = vand.u32 2147483647, %v2598
          %vm2624 = vcmp.eq.f32.partialorder %v2623, 8.507059e+37
          %v2625 = vand.u32 %v2598, 2147483648
          %v2626 = vor.u32 1.1754944e-38, %v2625
          %v2627 = vsel %vm2624, %v2626, %v2622
          %v2628 = vmul.f32 1.0, %v2627
          %v2629 = vxor.u32 %v2584, 2147483648
          %v2630 = vxor.u32 %v2588, 2147483648
          %v2631 = vmul.f32 %v2629, 1.442695
          %v2632 = vpow.pop %v2631
          %v2633 = vmul.f32 %v2630, 1.442695
          %v2634 = vpow.pop %v2633
          %v2635 = vadd.f32 %v2632, 1.0
          %v2636 = vadd.f32 %v2634, 1.0
          %v2637 = vrcp.pop %v2635
          %v2638 = vmul.f32 %v2635, %v2637
          %v2639 = vsub.f32 1.0, %v2638
          %v2640 = vmul.f32 %v2637, %v2639
          %v2641 = vadd.f32 %v2637, %v2640
          %vm2642 = vweird.f32 %v2635
          %vm2643 = vweird.f32 %v2637
          %vm2644 = vmor %vm2642, %vm2643
          %v2645 = vsel %vm2644, %v2637, %v2641
          %v2646 = vand.u32 2147483647, %v2635
          %vm2647 = vcmp.eq.f32.partialorder %v2646, 8.507059e+37
          %v2648 = vand.u32 %v2635, 2147483648
          %v2649 = vor.u32 1.1754944e-38, %v2648
          %v2650 = vsel %vm2647, %v2649, %v2645
          %v2651 = vmul.f32 1.0, %v2650
          %v2652 = vrcp.pop %v2636
          %v2653 = vmul.f32 %v2636, %v2652
          %v2654 = vsub.f32 1.0, %v2653
          %v2655 = vmul.f32 %v2652, %v2654
          %v2656 = vadd.f32 %v2652, %v2655
          %vm2657 = vweird.f32 %v2636
          %vm2658 = vweird.f32 %v2652
          %vm2659 = vmor %vm2657, %vm2658
          %v2660 = vsel %vm2659, %v2652, %v2656
          %v2661 = vand.u32 2147483647, %v2636
          %vm2662 = vcmp.eq.f32.partialorder %v2661, 8.507059e+37
          %v2663 = vand.u32 %v2636, 2147483648
          %v2664 = vor.u32 1.1754944e-38, %v2663
          %v2665 = vsel %vm2662, %v2664, %v2660
          %v2666 = vmul.f32 1.0, %v2665
          %v2667 = vtanh.pop %v2585
          %v2668 = vtanh.pop %v2589
          %v2669 = vxor.u32 %v2586, 2147483648
          %v2670 = vxor.u32 %v2590, 2147483648
          %v2671 = vmul.f32 %v2669, 1.442695
          %v2672 = vpow.pop %v2671
          %v2673 = vmul.f32 %v2670, 1.442695
          %v2674 = vpow.pop %v2673
          %v2675 = vadd.f32 %v2672, 1.0
          %v2676 = vadd.f32 %v2674, 1.0
          %v2677 = vrcp.pop %v2675
          %v2678 = vmul.f32 %v2675, %v2677
          %v2679 = vsub.f32 1.0, %v2678
          %v2680 = vmul.f32 %v2677, %v2679
          %v2681 = vadd.f32 %v2677, %v2680
          %vm2682 = vweird.f32 %v2675
          %vm2683 = vweird.f32 %v2677
          %vm2684 = vmor %vm2682, %vm2683
          %v2685 = vsel %vm2684, %v2677, %v2681
          %v2686 = vand.u32 2147483647, %v2675
          %vm2687 = vcmp.eq.f32.partialorder %v2686, 8.507059e+37
          %v2688 = vand.u32 %v2675, 2147483648
          %v2689 = vor.u32 1.1754944e-38, %v2688
          %v2690 = vsel %vm2687, %v2689, %v2685
          %v2691 = vmul.f32 1.0, %v2690
          %v2692 = vrcp.pop %v2676
          %v2693 = vmul.f32 %v2676, %v2692
          %v2694 = vsub.f32 1.0, %v2693
          %v2695 = vmul.f32 %v2692, %v2694
          %v2696 = vadd.f32 %v2692, %v2695
          %vm2697 = vweird.f32 %v2676
          %vm2698 = vweird.f32 %v2692
          %vm2699 = vmor %vm2697, %vm2698
          %v2700 = vsel %vm2699, %v2692, %v2696
          %v2701 = vand.u32 2147483647, %v2676
          %vm2702 = vcmp.eq.f32.partialorder %v2701, 8.507059e+37
          %v2703 = vand.u32 %v2676, 2147483648
          %v2704 = vor.u32 1.1754944e-38, %v2703
          %v2705 = vsel %vm2702, %v2704, %v2700
          %v2706 = vmul.f32 1.0, %v2705
          %v2707 = vmul.f32 %v2651, %v2353
          %v2708 = vmul.f32 %v2666, %v2354
          %v2709 = vmul.f32 %v2613, %v2667
          %v2710 = vmul.f32 %v2628, %v2668
          %v2711 = vadd.f32 %v2707, %v2709
          %v2712 = vadd.f32 %v2708, %v2710
          %v2713 = vtanh.pop %v2711
          %v2714 = vtanh.pop %v2712
          %v2715 = vmul.f32 %v2691, %v2713
          %v2716 = vmul.f32 %v2706, %v2714
          %2717 = vst [vmem:[%s2352] sm:$0xff] %v2711
          %2718 = vst [vmem:[%s2352 + $0x8] sm:$0xff] %v2712
          %2719 = vst [vmem:[%s2349] sm:$0xff] %v2715
          %2720 = vst [vmem:[%s2349 + $0x8] sm:$0xff] %v2716
          %v2721 = vpack.c.bf16 %v2715, %v2715
          %v2722 = vpack.c.bf16 %v2716, %v2716
          %s2723 = smul.u32 %s2344, 2
          %s2724 = smul.addr %s2723, 4
          %s2725 = scalar_lea.vmem %s401, %s2724 [#allocation17]
          %2726 = vst [vmem:[%s2725] sm:$0xf] %v2721
          %2727 = vst [vmem:[%s2725 + $0x4] sm:$0xf] %v2722
        $region84: #{tpu_custom_call.1} parent=43 // loop_footer
          %s2348 = sadd.s32 1, %s2344
        $region85: #{tpu_custom_call.1} parent=43 // loop_footer_branch
          %2343 = sbr.rel target = $region81
        $region86: #{tpu_custom_call.1} parent=43 // loop_exit
          _
        %p2728 = scmp.eq.s32.totalorder %s30, 1
        // Predicated region
        $region87: #{tpu_custom_call.1} parent=43 // pred_check
          %p2729 = pneg %p2728
        $region88: #{tpu_custom_call.1} parent=43 // pred_check_branch
          %2731 = sbr.rel (%p2729) target = $region90
        $region89: #{tpu_custom_call.1} parent=43 // pred_region
          %v2732 = vld [vmem:[#allocation2] sm:$0xff]
          %v2733 = vld [vmem:[#allocation2 + $0x8] sm:$0xff]
          %v2734 = vld [vmem:[#allocation2 + $0x10] sm:$0xff]
          %v2735 = vld [vmem:[#allocation2 + $0x18] sm:$0xff]
          %2736 = vst [vmem:[#allocation18] sm:$0xff] %v2732
          %2737 = vst [vmem:[#allocation18 + $0x8] sm:$0xff] %v2733
          %2738 = vst [vmem:[#allocation18 + $0x10] sm:$0xff] %v2734
          %2739 = vst [vmem:[#allocation18 + $0x18] sm:$0xff] %v2735
          %v2740 = vld [vmem:[#allocation3] sm:$0xff]
          %v2741 = vld [vmem:[#allocation3 + $0x8] sm:$0xff]
          %v2742 = vld [vmem:[#allocation3 + $0x10] sm:$0xff]
          %v2743 = vld [vmem:[#allocation3 + $0x18] sm:$0xff]
          %2744 = vst [vmem:[#allocation20] sm:$0xff] %v2740
          %2745 = vst [vmem:[#allocation20 + $0x8] sm:$0xff] %v2741
          %2746 = vst [vmem:[#allocation20 + $0x10] sm:$0xff] %v2742
          %2747 = vst [vmem:[#allocation20 + $0x18] sm:$0xff] %v2743
        $region90: #{tpu_custom_call.1} parent=43 // pred_fallthru
          _
        %s2748 = sand.u32 %s169, 1
        %s2749 = scalar_lea.sflag [#allocation8], %s2748
        %s2750 = sand.u32 %s169, 1
        %s2751 = smul.addr %s2750, 128
        %s2752 = scalar_lea.vmem [#allocation17], %s2751
        // Predicated region
        $region91: #{tpu_custom_call.1} parent=43 // pred_check
          %p2753 = pneg %p179
        $region92: #{tpu_custom_call.1} parent=43 // pred_check_branch
          %2755 = sbr.rel (%p2753) target = $region94
        $region93: #{tpu_custom_call.1} parent=43 // pred_region
          %s2756 = smul.u32 16, %s30
          %2758 = vsyncadd %s2749, 0
          %s2759 = smul.addr %s2756, 2
          %s2760 = smul.addr %s2759, 4
          %s2761 = scalar_lea.hbm %s6, %s2760
          %s2762 = sshll.u32 %s2752, 4
          %s2763 = int_to_ptr.vmem [resolvable:$true] %s2762
          %s2764 = sshll.u32 %s2761, 4
          %s2765 = int_to_ptr.hbm [resolvable:$true] %s2764
          %2770 = dma.vmem_to_hbm [thread:$0]  %s2763, 2048, %s2765, %s2749, 64, 64, 4
        $region94: #{tpu_custom_call.1} parent=43 // pred_fallthru
          _
        // Predicated region
        $region95: #{tpu_custom_call.1} parent=43 // pred_check
          %p2771 = pneg %p200
        $region96: #{tpu_custom_call.1} parent=43 // pred_check_branch
          %2773 = sbr.rel (%p2771) target = $region98
        $region97: #{tpu_custom_call.1} parent=43 // pred_region
          %2775 = vsyncadd [#allocation19], 0
          %s2776 = sshll.u32 [#allocation18], 4
          %s2777 = int_to_ptr.vmem [resolvable:$true] %s2776
          %s2778 = sshll.u32 %s7, 4
          %s2779 = int_to_ptr.hbm [resolvable:$true] %s2778
          %2784 = dma.vmem_to_hbm [thread:$0]  %s2777, 512, %s2779, [#allocation19], 128, 128, 8
        $region98: #{tpu_custom_call.1} parent=43 // pred_fallthru
          _
        // Predicated region
        $region99: #{tpu_custom_call.1} parent=43 // pred_check
          %p2785 = pneg %p221
        $region100: #{tpu_custom_call.1} parent=43 // pred_check_branch
          %2787 = sbr.rel (%p2785) target = $region102
        $region101: #{tpu_custom_call.1} parent=43 // pred_region
          %2789 = vsyncadd [#allocation19], 0
          %s2790 = sshll.u32 [#allocation20], 4
          %s2791 = int_to_ptr.vmem [resolvable:$true] %s2790
          %s2792 = sshll.u32 %s8, 4
          %s2793 = int_to_ptr.hbm [resolvable:$true] %s2792
          %2798 = dma.vmem_to_hbm [thread:$0]  %s2791, 512, %s2793, [#allocation19], 128, 128, 8
        $region102: #{tpu_custom_call.1} parent=43 // pred_fallthru
          _
        // Predicated region
        $region103: #{tpu_custom_call.1} parent=43 // pred_check
          %p2799 = pneg %p200
        $region104: #{tpu_custom_call.1} parent=43 // pred_check_branch
          %2801 = sbr.rel (%p2799) target = $region106
        $region105: #{tpu_custom_call.1} parent=43 // pred_region
          %2803 = dma.done [#allocation19], 512
        $region106: #{tpu_custom_call.1} parent=43 // pred_fallthru
          _
        // Predicated region
        $region107: #{tpu_custom_call.1} parent=43 // pred_check
          %p2804 = pneg %p221
        $region108: #{tpu_custom_call.1} parent=43 // pred_check_branch
          %2806 = sbr.rel (%p2804) target = $region110
        $region109: #{tpu_custom_call.1} parent=43 // pred_region
          %2808 = dma.done [#allocation19], 512
        $region110: #{tpu_custom_call.1} parent=43 // pred_fallthru
          _
      $region44: #{tpu_custom_call.1} parent=5 // pred_fallthru
        _
      %p2809 = scmp.le.s32.totalorder 2, %s25
      // Predicated region
      $region111: #{tpu_custom_call.1} parent=5 // pred_check
        %p2810 = pneg %p2809
      $region112: #{tpu_custom_call.1} parent=5 // pred_check_branch
        %2812 = sbr.rel (%p2810) target = $region114
      $region113: #{tpu_custom_call.1} parent=5 // pred_region
        %s2813 = ssub.s32 %s25, 2
        // Predicated region
        $region115: #{tpu_custom_call.1} parent=113 // pred_check
          %p2814 = pneg %p185
        $region116: #{tpu_custom_call.1} parent=113 // pred_check_branch
          %2816 = sbr.rel (%p2814) target = $region118
        $region117: #{tpu_custom_call.1} parent=113 // pred_region
          %s2817 = sand.u32 %s170, 1
          %s2818 = scalar_lea.sflag [#allocation8], %s2817
          %s2819 = sand.u32 %s170, 1
          %s2820 = smul.addr %s2819, 128
          %s2821 = scalar_lea.vmem [#allocation17], %s2820
          %2823 = dma.done %s2818, 2048
        $region118: #{tpu_custom_call.1} parent=113 // pred_fallthru
          _
      $region114: #{tpu_custom_call.1} parent=5 // pred_fallthru
        _
    $region6: #{tpu_custom_call.1} parent=1 // loop_footer
      %s29 = sadd.s32 1, %s25
    $region7: #{tpu_custom_call.1} parent=1 // loop_footer_branch
      %24 = sbr.rel target = $region3
    $region8: #{tpu_custom_call.1} parent=1 // loop_exit
      _
    %2824 = vsyncpa [#allocation7], 1
    %s2825 = scalar_lea.sflag [#allocation7], 1
    %2826 = vsyncpa %s2825, 1
    %2827 = vsyncpa [#allocation10], 1
    %2828 = vsyncpa [#allocation13], 1
    %2829 = vsyncpa [#allocation16], 1
    %2830 = vsyncpa [#allocation8], 1
    %s2831 = scalar_lea.sflag [#allocation8], 1
    %2832 = vsyncpa %s2831, 1
    %2833 = vsyncpa [#allocation19], 1

</llo_original>
